<compile_context>
chip_gen: v5e
topology: v5e:2x2
jax: 0.10.0
libtpu: 0.0.40
codegen_flags: <defaults>
</compile_context>

<pallas_src>
import functools
import math

import jax
import jax.numpy as jnp
from jax import lax
from jax.experimental import pallas as pl
from jax.experimental.pallas import tpu as pltpu


def _round_up(x: int, m: int) -> int:
    return (x + m - 1) // m * m


def _nbytes(shape, dtype) -> int:
    return math.prod(shape) * jnp.dtype(dtype).itemsize


def _knncl_fused_kernel(hid_ref, wdense_ref, bdense_ref, w2_ref, b2_ref,
                        wc2_ref, bc2_ref, fqt_ref,
                        probs_ref, emb_ref, q_ref, cos_ref,
                        lq_scratch, *, num_classes, batch):
    """Grid axis 0 tiles the (transposed, bf16) feature queue along K.

    seq_embed, the classification head + softmax and the contrastive head run once at k == 0
    (resident / revisited output blocks; normalized liner_q cached in bf16 VMEM scratch); every
    grid step multiplies the resident liner_q against one streamed queue tile on the MXU.
    """
    k = pl.program_id(0)

    @pl.when(k == 0)
    def _():
        seq = hid_ref.shape[1]
        hp = wdense_ref.shape[0]

        # ---- mean pool over the sequence: one-shot XLU reduce, f32 accumulation ----
        seq_embed = jnp.sum(hid_ref[...], axis=1) * (1.0 / seq)           # [Bp, Hp] f32
        emb_ref[...] = seq_embed.astype(emb_ref.dtype)
        se = seq_embed.astype(wdense_ref.dtype)                            # bf16 MXU operand

        # ---- fused first "dense" of both heads: [Bp, Hp] @ [Hp, 2*Hp] (dropout = identity) ----
        h = jnp.tanh(jnp.dot(se, wdense_ref[...],
                             preferred_element_type=jnp.float32) + bdense_ref[...])
        x = h[:, :hp]             # classification branch
        xc = h[:, hp:]            # contrastive branch

        # ---- BertClassificationHead out_proj + softmax (exact reciprocal, runs once) ----
        logits = jnp.dot(x.astype(w2_ref.dtype), w2_ref[...],
                         preferred_element_type=jnp.float32) + b2_ref[...]
        class_col = lax.broadcasted_iota(jnp.int32, logits.shape, 1)
        logits = jnp.where(class_col < num_classes, logits, -jnp.inf)      # mask padded classes
        m = jnp.max(logits, axis=-1, keepdims=True)
        e = jnp.exp(logits - m)
        probs_ref[...] = (e / jnp.sum(e, axis=-1, keepdims=True)).astype(probs_ref.dtype)

        # ---- BertContrastiveHead (q) out layer + l2 normalize ----
        lq = jnp.dot(xc.astype(wc2_ref.dtype), wc2_ref[...],
                     preferred_element_type=jnp.float32) + bc2_ref[...]
        sumsq = jnp.sum(lq * lq, axis=-1, keepdims=True)
        row = lax.broadcasted_iota(jnp.int32, sumsq.shape, 0)
        # TODO(synk): module's l2norm has no epsilon; a genuinely all-zero real row still yields
        # NaN (matched).  Padded batch rows are zeroed so no NaN/Inf reaches q / cos outputs.
        lq_n = jnp.where(row < batch, lq * lax.rsqrt(sumsq), 0.0)
        q_ref[...] = lq_n.astype(q_ref.dtype)
        lq_scratch[...] = lq_n.astype(lq_scratch.dtype)                    # bf16 cache

    # ---- steady state: [Bp, Hp]bf16 @ [Hp, TK]bf16 on the MXU, f32 accumulation ----
    cos_ref[...] = jnp.dot(lq_scratch[...], fqt_ref[...],
                           preferred_element_type=jnp.float32).astype(cos_ref.dtype)


def knncl_fused_forward(hidden, w1, b1, w2, b2, wc1, bc1, wc2, bc2, feature_queue,
                        *, queue_tile=4096, vmem_limit_bytes=None):
    """Returns (probs [B,C], seq_embed [B,H], liner_q [B,H], cos_sim [B,K])."""
    B, S, H = hidden.shape
    C = w2.shape[1]
    K = feature_queue.shape[0]

    f32, bf16 = jnp.float32, jnp.bfloat16

    # lane/sublane-dense padded problem sizes
    Bp = _round_up(B, 8)
    Hp = _round_up(H, 128)
    Cp = _round_up(C, 128)
    tk = min(_round_up(queue_tile, 128), _round_up(K, 128))
    Kp = _round_up(K, tk)
    nk = Kp // tk

    def pad_to(a, shape, dtype=None):
        a = a.astype(dtype) if dtype is not None else a
        out = jnp.zeros(shape, a.dtype)
        return out.at[tuple(slice(0, s) for s in a.shape)].set(a)

    # TODO(synk): at BERT scale on v7x (64 MiB VMEM) the f32 hidden block should be streamed in
    # S-chunks (memory_space=pl.ANY) or pre-pooled outside the kernel; resident f32 is fine here.
    hid_p = pad_to(hidden, (Bp, S, Hp))
    # fused first dense of both heads -> one [Hp, 2*Hp] bf16 weight, f32 bias
    wdense_p = jnp.concatenate(
        [pad_to(w1, (Hp, Hp), bf16), pad_to(wc1, (Hp, Hp), bf16)], axis=1)
    bdense_p = jnp.concatenate(
        [pad_to(b1, (1, Hp), f32), pad_to(bc1, (1, Hp), f32)], axis=1)
    w2_p, b2_p = pad_to(w2, (Hp, Cp), bf16), pad_to(b2, (1, Cp), f32)
    wc2_p, bc2_p = pad_to(wc2, (Hp, Hp), bf16), pad_to(bc2, (1, Hp), f32)
    # queue: one-time layout plumbing -> transposed [H, K], bf16, lane-dense padded
    fqt_p = pad_to(feature_queue.T, (Hp, Kp), bf16)

    if vmem_limit_bytes is None:
        resident_in = (_nbytes((Bp, S, Hp), hid_p.dtype)
                       + _nbytes((Hp, 2 * Hp), bf16) + _nbytes((1, 2 * Hp), f32)
                       + _nbytes((Hp, Cp), bf16) + _nbytes((1, Cp), f32)
                       + _nbytes((Hp, Hp), bf16) + _nbytes((1, Hp), f32))
        streamed_in = 2 * _nbytes((Hp, tk), bf16)                    # double-buffered queue tile
        outs = 2 * (_nbytes((Bp, Cp), f32) + 2 * _nbytes((Bp, Hp), f32)
                    + _nbytes((Bp, tk), f32))
        scratch = _nbytes((Bp, Hp), bf16)
        # 2x resident covers the double-buffered fallback path; 8 MiB compiler headroom.
        vmem_limit_bytes = max(2 * resident_in + streamed_in + outs + scratch + (8 << 20),
                               16 << 20)

    kernel = functools.partial(_knncl_fused_kernel, num_classes=C, batch=B)
    args = (hid_p, wdense_p, bdense_p, w2_p, b2_p, wc2_p, bc2_p, fqt_p)

    def build_call(single_buffer_resident: bool):
        def resident_in_spec(shape):
            nd = len(shape)
            idx = lambda k, nd=nd: (0,) * nd
            if single_buffer_resident:
                # grid-invariant input blocks are DMA'd exactly once -> no second buffer needed
                return pl.BlockSpec(shape, idx, pipeline_mode=pl.Buffered(1))
            return pl.BlockSpec(shape, idx)

        def resident_out_spec(shape):
            nd = len(shape)
            return pl.BlockSpec(shape, lambda k, nd=nd: (0,) * nd)

        return pl.pallas_call(
            kernel,
            grid=(nk,),
            in_specs=[
                resident_in_spec((Bp, S, Hp)),                         # hidden states (resident)
                resident_in_spec((Hp, 2 * Hp)),                        # fused dense W (cls|ctr)
                resident_in_spec((1, 2 * Hp)),                         # fused dense bias
                resident_in_spec((Hp, Cp)), resident_in_spec((1, Cp)),  # classification out_proj
                resident_in_spec((Hp, Hp)), resident_in_spec((1, Hp)),  # contrastive out layer
                # streamed, double-buffered queue tile (bump to pl.Buffered(3) on v5e if the
                # DMA shows up exposed behind the small M=Bp matmul)
                pl.BlockSpec((Hp, tk), lambda k: (0, k)),
            ],
            out_specs=(
                resident_out_spec((Bp, Cp)),                           # probs (padded classes)
                resident_out_spec((Bp, Hp)),                           # seq_embed
                resident_out_spec((Bp, Hp)),                           # liner_q (l2 normalized)
                pl.BlockSpec((Bp, tk), lambda k: (0, k)),              # cos_sim tile
            ),
            out_shape=(
                jax.ShapeDtypeStruct((Bp, Cp), f32),
                jax.ShapeDtypeStruct((Bp, Hp), f32),
                jax.ShapeDtypeStruct((Bp, Hp), f32),
                jax.ShapeDtypeStruct((Bp, Kp), f32),
            ),
            scratch_shapes=[pltpu.VMEM((Bp, Hp), bf16)],
            compiler_params=pltpu.CompilerParams(
                # K axis must stay 'arbitrary': heads run once at k==0 and the resident liner_q
                # scratch / revisited output blocks carry across the K tiles.
                # TODO(synk): on v7x (2 TCs) hoist the heads out and mark K "parallel" to use
                # both cores for the queue matmul.
                dimension_semantics=("arbitrary",),
                vmem_limit_bytes=int(vmem_limit_bytes),
            ),
        )

    try:
        outs = jax.block_until_ready(build_call(True)(*args))
    except Exception:
        # Fallback if this JAX build rejects single-buffered (pl.Buffered(1)) resident blocks.
        outs = build_call(False)(*args)

    probs_p, emb_p, q_p, cos_p = outs
    return (probs_p[:B, :C], emb_p[:B, :H], q_p[:B, :H], cos_p[:B, :K])


# TODO(synk): HuggingFace transformer encoders (encoder_q/encoder_k), masked_select / dynamic
# top-k pos-neg sampling, queue mutation (_dequeue_and_enqueue) and the EMA update of encoder_k
# have no clean static-shape Pallas equivalent; the kernel consumes last_hidden_state directly.


if __name__ == "__main__":
    B, S, H, C, K = 2, 8, 32, 4, 7500   # batch, seq, hidden_size, num_labels, queue size

    key = jax.random.PRNGKey(0)
    ks = jax.random.split(key, 10)

    # stand-in for encoder_q(**batch).last_hidden_state
    hidden = jax.random.normal(ks[0], (B, S, H), jnp.float32)

    # BertClassificationHead params
    w1 = 0.02 * jax.random.normal(ks[1], (H, H), jnp.float32)
    b1 = 0.01 * jax.random.normal(ks[2], (1, H), jnp.float32)
    w2 = 0.02 * jax.random.normal(ks[3], (H, C), jnp.float32)
    b2 = 0.01 * jax.random.normal(ks[4], (1, C), jnp.float32)

    # BertContrastiveHead (q) params
    wc1 = 0.02 * jax.random.normal(ks[5], (H, H), jnp.float32)
    bc1 = 0.01 * jax.random.normal(ks[6], (1, H), jnp.float32)
    wc2 = 0.02 * jax.random.normal(ks[7], (H, H), jnp.float32)
    bc2 = 0.01 * jax.random.normal(ks[8], (1, H), jnp.float32)

    # feature_queue buffer, normalized along dim=0 as in the module's __init__
    fq = jax.random.normal(ks[9], (K, H), jnp.float32)
    fq = fq / jnp.sqrt(jnp.sum(fq * fq, axis=0, keepdims=True))

    probs, seq_embed, liner_q, cos_sim = knncl_fused_forward(
        hidden, w1, b1, w2, b2, wc1, bc1, wc2, bc2, fq)
    jax.block_until_ready((probs, seq_embed, liner_q, cos_sim))

    # --- plain-JAX reference ---
    ref_emb = jnp.mean(hidden, axis=1)
    ref_logits = jnp.tanh(ref_emb @ w1 + b1) @ w2 + b2
    ref_probs = jax.nn.softmax(ref_logits, axis=1)
    ref_q = jnp.tanh(ref_emb @ wc1 + bc1) @ wc2 + bc2
    ref_q = ref_q / jnp.sqrt(jnp.sum(ref_q * ref_q, axis=-1, keepdims=True))
    ref_cos = ref_q @ fq.T

    assert probs.shape == (B, C) and seq_embed.shape == (B, H)
    assert liner_q.shape == (B, H) and cos_sim.shape == (B, K)
    assert jnp.allclose(seq_embed, ref_emb, atol=2e-3, rtol=2e-3)
    # heads now run bf16 on the MXU with f32 accumulation -> slightly relaxed tolerances
    assert jnp.allclose(probs, ref_probs, atol=5e-3, rtol=5e-3)
    assert jnp.allclose(jnp.sum(probs, axis=1), jnp.ones((B,)), atol=1e-3)
    assert jnp.allclose(liner_q, ref_q, atol=3e-3, rtol=3e-3)
    assert jnp.allclose(cos_sim, ref_cos, atol=3e-3, rtol=3e-3)

    print("KERNEL_OK")
</pallas_src>

<mosaic_0001>
module attributes {stable_mosaic.version = 11 : i64} {
  func.func @_knncl_fused_kernel(%arg0: i32, %arg1: memref<8x8x128xf32, #tpu.memory_space<vmem>>, %arg2: memref<128x256xbf16, #tpu.memory_space<vmem>>, %arg3: memref<1x256xf32, #tpu.memory_space<vmem>>, %arg4: memref<128x128xbf16, #tpu.memory_space<vmem>>, %arg5: memref<1x128xf32, #tpu.memory_space<vmem>>, %arg6: memref<128x128xbf16, #tpu.memory_space<vmem>>, %arg7: memref<1x128xf32, #tpu.memory_space<vmem>>, %arg8: memref<128x4096xbf16, #tpu.memory_space<vmem>>, %arg9: memref<8x128xf32, #tpu.memory_space<vmem>>, %arg10: memref<8x128xf32, #tpu.memory_space<vmem>>, %arg11: memref<8x128xf32, #tpu.memory_space<vmem>>, %arg12: memref<8x4096xf32, #tpu.memory_space<vmem>>, %arg13: memref<8x128xbf16, #tpu.memory_space<vmem>>) attributes {dimension_semantics = [#tpu.dimension_semantics<arbitrary>], iteration_bounds = array<i64: 2>, scalar_prefetch = 0 : i64, scratch_operands = 1 : i64, tpu.core_type = #tpu.core_type<tc>, window_params = [{pipeline_mode = #tpu.pipeline_mode<synchronous>, transform_indices = @transform_0, window_bounds = array<i64: 8, 8, 128>}, {pipeline_mode = #tpu.pipeline_mode<synchronous>, transform_indices = @transform_1, window_bounds = array<i64: 128, 256>}, {pipeline_mode = #tpu.pipeline_mode<synchronous>, transform_indices = @transform_2, window_bounds = array<i64: 1, 256>}, {pipeline_mode = #tpu.pipeline_mode<synchronous>, transform_indices = @transform_3, window_bounds = array<i64: 128, 128>}, {pipeline_mode = #tpu.pipeline_mode<synchronous>, transform_indices = @transform_4, window_bounds = array<i64: 1, 128>}, {pipeline_mode = #tpu.pipeline_mode<synchronous>, transform_indices = @transform_5, window_bounds = array<i64: 128, 128>}, {pipeline_mode = #tpu.pipeline_mode<synchronous>, transform_indices = @transform_6, window_bounds = array<i64: 1, 128>}, {transform_indices = @transform_7, window_bounds = array<i64: 128, 4096>}, {pipeline_mode = #tpu.pipeline_mode<synchronous>, transform_indices = @transform_8, window_bounds = array<i64: 8, 128>}, {pipeline_mode = #tpu.pipeline_mode<synchronous>, transform_indices = @transform_9, window_bounds = array<i64: 8, 128>}, {pipeline_mode = #tpu.pipeline_mode<synchronous>, transform_indices = @transform_10, window_bounds = array<i64: 8, 128>}, {transform_indices = @transform_11, window_bounds = array<i64: 8, 4096>}]} {
    %c0_i32 = arith.constant 0 : i32
    %0 = arith.cmpi eq, %arg0, %c0_i32 : i32
    %1 = arith.extui %0 : i1 to i32
    %c0_i32_0 = arith.constant 0 : i32
    %2 = arith.cmpi ne, %1, %c0_i32_0 : i32
    scf.if %2 {
      %c0_6 = arith.constant 0 : index
      %c0_7 = arith.constant 0 : index
      %c0_8 = arith.constant 0 : index
      %7 = vector.load %arg1[%c0_6, %c0_7, %c0_8] : memref<8x8x128xf32, #tpu.memory_space<vmem>>, vector<8x8x128xf32>
      %cst_9 = arith.constant dense<0.000000e+00> : vector<8x128xf32>
      %8 = vector.multi_reduction <add>, %7, %cst_9 [1] : vector<8x8x128xf32> to vector<8x128xf32>
      %cst_10 = arith.constant 1.250000e-01 : f32
      %9 = vector.broadcast %cst_10 : f32 to vector<8x128xf32>
      %10 = arith.mulf %8, %9 : vector<8x128xf32>
      %c0_11 = arith.constant 0 : index
      %c0_12 = arith.constant 0 : index
      %11 = vector.load %arg10[%c0_11, %c0_12] : memref<8x128xf32, #tpu.memory_space<vmem>>, vector<8x128xf32>
      tpu.vector_store %arg10[%c0_11, %c0_12], %10 {strides = array<i32>} : memref<8x128xf32, #tpu.memory_space<vmem>>, vector<8x128xf32>,
      %12 = arith.truncf %10 : vector<8x128xf32> to vector<8x128xbf16>
      %c0_13 = arith.constant 0 : index
      %c0_14 = arith.constant 0 : index
      %13 = vector.load %arg2[%c0_13, %c0_14] : memref<128x256xbf16, #tpu.memory_space<vmem>>, vector<128x256xbf16>
      %cst_15 = arith.constant dense<0.000000e+00> : vector<8x256xf32>
      %14 = tpu.matmul %12, %13, %cst_15 {dimension_numbers = #tpu.dot_dimension_numbers<[1], [0], [0], [1], [0, 0, 1, 1], [], []>} : vector<8x128xbf16>, vector<128x256xbf16>, vector<8x256xf32> -> vector<8x256xf32>
      %c0_16 = arith.constant 0 : index
      %c0_17 = arith.constant 0 : index
      %15 = vector.load %arg3[%c0_16, %c0_17] : memref<1x256xf32, #tpu.memory_space<vmem>>, vector<1x256xf32>
      %16 = vector.broadcast %15 : vector<1x256xf32> to vector<8x256xf32>
      %17 = arith.addf %14, %16 : vector<8x256xf32>
      %18 = math.tanh %17 : vector<8x256xf32>
      %19 = vector.extract_strided_slice %18 {offsets = [0, 0], sizes = [8, 128], strides = [1, 1]} : vector<8x256xf32> to vector<8x128xf32>
      %20 = vector.extract_strided_slice %18 {offsets = [0, 128], sizes = [8, 128], strides = [1, 1]} : vector<8x256xf32> to vector<8x128xf32>
      %21 = arith.truncf %19 : vector<8x128xf32> to vector<8x128xbf16>
      %c0_18 = arith.constant 0 : index
      %c0_19 = arith.constant 0 : index
      %22 = vector.load %arg4[%c0_18, %c0_19] : memref<128x128xbf16, #tpu.memory_space<vmem>>, vector<128x128xbf16>
      %cst_20 = arith.constant dense<0.000000e+00> : vector<8x128xf32>
      %23 = tpu.matmul %21, %22, %cst_20 {dimension_numbers = #tpu.dot_dimension_numbers<[1], [0], [0], [1], [0, 0, 1, 1], [], []>} : vector<8x128xbf16>, vector<128x128xbf16>, vector<8x128xf32> -> vector<8x128xf32>
      %c0_21 = arith.constant 0 : index
      %c0_22 = arith.constant 0 : index
      %24 = vector.load %arg5[%c0_21, %c0_22] : memref<1x128xf32, #tpu.memory_space<vmem>>, vector<1x128xf32>
      %25 = vector.broadcast %24 : vector<1x128xf32> to vector<8x128xf32>
      %26 = arith.addf %23, %25 : vector<8x128xf32>
      %27 = tpu.iota {dimensions = array<i32: 1>} : vector<8x128xi32>
      %c4_i32 = arith.constant 4 : i32
      %28 = vector.broadcast %c4_i32 : i32 to vector<8x128xi32>
      %29 = arith.cmpi slt, %27, %28 : vector<8x128xi32>
      %cst_23 = arith.constant 0xFF800000 : f32
      %30 = vector.broadcast %cst_23 : f32 to vector<8x128xf32>
      %31 = arith.select %29, %26, %30 : vector<8x128xi1>, vector<8x128xf32>
      %cst_24 = arith.constant dense<0xFF800000> : vector<8xf32>
      %32 = vector.multi_reduction <maximumf>, %31, %cst_24 [1] : vector<8x128xf32> to vector<8xf32>
      %33 = vector.shape_cast %32 : vector<8xf32> to vector<8x1xf32>
      %34 = vector.broadcast %33 : vector<8x1xf32> to vector<8x128xf32>
      %35 = arith.subf %31, %34 : vector<8x128xf32>
      %36 = math.exp %35 : vector<8x128xf32>
      %cst_25 = arith.constant dense<0.000000e+00> : vector<8xf32>
      %37 = vector.multi_reduction <add>, %36, %cst_25 [1] : vector<8x128xf32> to vector<8xf32>
      %38 = vector.shape_cast %37 : vector<8xf32> to vector<8x1xf32>
      %39 = vector.broadcast %38 : vector<8x1xf32> to vector<8x128xf32>
      %40 = arith.divf %36, %39 : vector<8x128xf32>
      %c0_26 = arith.constant 0 : index
      %c0_27 = arith.constant 0 : index
      %41 = vector.load %arg9[%c0_26, %c0_27] : memref<8x128xf32, #tpu.memory_space<vmem>>, vector<8x128xf32>
      tpu.vector_store %arg9[%c0_26, %c0_27], %40 {strides = array<i32>} : memref<8x128xf32, #tpu.memory_space<vmem>>, vector<8x128xf32>,
      %42 = arith.truncf %20 : vector<8x128xf32> to vector<8x128xbf16>
      %c0_28 = arith.constant 0 : index
      %c0_29 = arith.constant 0 : index
      %43 = vector.load %arg6[%c0_28, %c0_29] : memref<128x128xbf16, #tpu.memory_space<vmem>>, vector<128x128xbf16>
      %cst_30 = arith.constant dense<0.000000e+00> : vector<8x128xf32>
      %44 = tpu.matmul %42, %43, %cst_30 {dimension_numbers = #tpu.dot_dimension_numbers<[1], [0], [0], [1], [0, 0, 1, 1], [], []>} : vector<8x128xbf16>, vector<128x128xbf16>, vector<8x128xf32> -> vector<8x128xf32>
      %c0_31 = arith.constant 0 : index
      %c0_32 = arith.constant 0 : index
      %45 = vector.load %arg7[%c0_31, %c0_32] : memref<1x128xf32, #tpu.memory_space<vmem>>, vector<1x128xf32>
      %46 = vector.broadcast %45 : vector<1x128xf32> to vector<8x128xf32>
      %47 = arith.addf %44, %46 : vector<8x128xf32>
      %48 = arith.mulf %47, %47 : vector<8x128xf32>
      %cst_33 = arith.constant dense<0.000000e+00> : vector<8xf32>
      %49 = vector.multi_reduction <add>, %48, %cst_33 [1] : vector<8x128xf32> to vector<8xf32>
      %50 = vector.shape_cast %49 : vector<8xf32> to vector<8x1xf32>
      %51 = tpu.iota {dimensions = array<i32: 0>} : vector<8x1xi32>
      %c2_i32 = arith.constant 2 : i32
      %52 = vector.broadcast %c2_i32 : i32 to vector<8x1xi32>
      %53 = arith.cmpi slt, %51, %52 : vector<8x1xi32>
      %54 = math.rsqrt %50 : vector<8x1xf32>
      %55 = vector.broadcast %54 : vector<8x1xf32> to vector<8x128xf32>
      %56 = arith.mulf %47, %55 : vector<8x128xf32>
      %cst_34 = arith.constant 0.000000e+00 : f32
      %57 = vector.shape_cast %53 : vector<8x1xi1> to vector<8x1xi1>
      %58 = vector.broadcast %57 : vector<8x1xi1> to vector<8x128xi1>
      %59 = vector.broadcast %cst_34 : f32 to vector<8x128xf32>
      %60 = arith.select %58, %56, %59 : vector<8x128xi1>, vector<8x128xf32>
      %c0_35 = arith.constant 0 : index
      %c0_36 = arith.constant 0 : index
      %61 = vector.load %arg11[%c0_35, %c0_36] : memref<8x128xf32, #tpu.memory_space<vmem>>, vector<8x128xf32>
      tpu.vector_store %arg11[%c0_35, %c0_36], %60 {strides = array<i32>} : memref<8x128xf32, #tpu.memory_space<vmem>>, vector<8x128xf32>,
      %62 = arith.truncf %60 : vector<8x128xf32> to vector<8x128xbf16>
      %c0_37 = arith.constant 0 : index
      %c0_38 = arith.constant 0 : index
      %63 = vector.load %arg13[%c0_37, %c0_38] : memref<8x128xbf16, #tpu.memory_space<vmem>>, vector<8x128xbf16>
      tpu.vector_store %arg13[%c0_37, %c0_38], %62 {strides = array<i32>} : memref<8x128xbf16, #tpu.memory_space<vmem>>, vector<8x128xbf16>,
    } else {
    }
    %c0 = arith.constant 0 : index
    %c0_1 = arith.constant 0 : index
    %3 = vector.load %arg13[%c0, %c0_1] : memref<8x128xbf16, #tpu.memory_space<vmem>>, vector<8x128xbf16>
    %c0_2 = arith.constant 0 : index
    %c0_3 = arith.constant 0 : index
    %4 = vector.load %arg8[%c0_2, %c0_3] : memref<128x4096xbf16, #tpu.memory_space<vmem>>, vector<128x4096xbf16>
    %cst = arith.constant dense<0.000000e+00> : vector<8x4096xf32>
    %5 = tpu.matmul %3, %4, %cst {dimension_numbers = #tpu.dot_dimension_numbers<[1], [0], [0], [1], [0, 0, 1, 1], [], []>} : vector<8x128xbf16>, vector<128x4096xbf16>, vector<8x4096xf32> -> vector<8x4096xf32>
    %c0_4 = arith.constant 0 : index
    %c0_5 = arith.constant 0 : index
    %6 = vector.load %arg12[%c0_4, %c0_5] : memref<8x4096xf32, #tpu.memory_space<vmem>>, vector<8x4096xf32>
    tpu.vector_store %arg12[%c0_4, %c0_5], %5 {strides = array<i32>} : memref<8x4096xf32, #tpu.memory_space<vmem>>, vector<8x4096xf32>,
    return
  }
  func.func @transform_0(%arg0: i32) -> (i32, i32, i32) {
    %c0_i32 = arith.constant 0 : i32
    %c0_i32_0 = arith.constant 0 : i32
    %c0_i32_1 = arith.constant 0 : i32
    %c0_i32_2 = arith.constant 0 : i32
    return %c0_i32, %c0_i32_0, %c0_i32_1 : i32, i32, i32
  }
  func.func @transform_1(%arg0: i32) -> (i32, i32) {
    %c0_i32 = arith.constant 0 : i32
    %c0_i32_0 = arith.constant 0 : i32
    %c0_i32_1 = arith.constant 0 : i32
    return %c0_i32, %c0_i32_0 : i32, i32
  }
  func.func @transform_2(%arg0: i32) -> (i32, i32) {
    %c0_i32 = arith.constant 0 : i32
    %c0_i32_0 = arith.constant 0 : i32
    %c0_i32_1 = arith.constant 0 : i32
    return %c0_i32, %c0_i32_0 : i32, i32
  }
  func.func @transform_3(%arg0: i32) -> (i32, i32) {
    %c0_i32 = arith.constant 0 : i32
    %c0_i32_0 = arith.constant 0 : i32
    %c0_i32_1 = arith.constant 0 : i32
    return %c0_i32, %c0_i32_0 : i32, i32
  }
  func.func @transform_4(%arg0: i32) -> (i32, i32) {
    %c0_i32 = arith.constant 0 : i32
    %c0_i32_0 = arith.constant 0 : i32
    %c0_i32_1 = arith.constant 0 : i32
    return %c0_i32, %c0_i32_0 : i32, i32
  }
  func.func @transform_5(%arg0: i32) -> (i32, i32) {
    %c0_i32 = arith.constant 0 : i32
    %c0_i32_0 = arith.constant 0 : i32
    %c0_i32_1 = arith.constant 0 : i32
    return %c0_i32, %c0_i32_0 : i32, i32
  }
  func.func @transform_6(%arg0: i32) -> (i32, i32) {
    %c0_i32 = arith.constant 0 : i32
    %c0_i32_0 = arith.constant 0 : i32
    %c0_i32_1 = arith.constant 0 : i32
    return %c0_i32, %c0_i32_0 : i32, i32
  }
  func.func @transform_7(%arg0: i32) -> (i32, i32) {
    %c0_i32 = arith.constant 0 : i32
    %c0_i32_0 = arith.constant 0 : i32
    return %c0_i32, %arg0 : i32, i32
  }
  func.func @transform_8(%arg0: i32) -> (i32, i32) {
    %c0_i32 = arith.constant 0 : i32
    %c0_i32_0 = arith.constant 0 : i32
    %c0_i32_1 = arith.constant 0 : i32
    return %c0_i32, %c0_i32_0 : i32, i32
  }
  func.func @transform_9(%arg0: i32) -> (i32, i32) {
    %c0_i32 = arith.constant 0 : i32
    %c0_i32_0 = arith.constant 0 : i32
    %c0_i32_1 = arith.constant 0 : i32
    return %c0_i32, %c0_i32_0 : i32, i32
  }
  func.func @transform_10(%arg0: i32) -> (i32, i32) {
    %c0_i32 = arith.constant 0 : i32
    %c0_i32_0 = arith.constant 0 : i32
    %c0_i32_1 = arith.constant 0 : i32
    return %c0_i32, %c0_i32_0 : i32, i32
  }
  func.func @transform_11(%arg0: i32) -> (i32, i32) {
    %c0_i32 = arith.constant 0 : i32
    %c0_i32_0 = arith.constant 0 : i32
    return %c0_i32, %arg0 : i32, i32
  }
}

module attributes {stable_mosaic.version = 11 : i64} {
  func.func @_knncl_fused_kernel(%arg0: i32, %arg1: memref<8x8x128xf32, #tpu.memory_space<vmem>>, %arg2: memref<128x256xbf16, #tpu.memory_space<vmem>>, %arg3: memref<1x256xf32, #tpu.memory_space<vmem>>, %arg4: memref<128x128xbf16, #tpu.memory_space<vmem>>, %arg5: memref<1x128xf32, #tpu.memory_space<vmem>>, %arg6: memref<128x128xbf16, #tpu.memory_space<vmem>>, %arg7: memref<1x128xf32, #tpu.memory_space<vmem>>, %arg8: memref<128x4096xbf16, #tpu.memory_space<vmem>>, %arg9: memref<8x128xf32, #tpu.memory_space<vmem>>, %arg10: memref<8x128xf32, #tpu.memory_space<vmem>>, %arg11: memref<8x128xf32, #tpu.memory_space<vmem>>, %arg12: memref<8x4096xf32, #tpu.memory_space<vmem>>, %arg13: memref<8x128xbf16, #tpu.memory_space<vmem>>) attributes {dimension_semantics = [#tpu.dimension_semantics<arbitrary>], iteration_bounds = array<i64: 2>, scalar_prefetch = 0 : i64, scratch_operands = 1 : i64, tpu.core_type = #tpu.core_type<tc>, window_params = [{pipeline_mode = #tpu.pipeline_mode<synchronous>, transform_indices = @transform_0, window_bounds = array<i64: 8, 8, 128>}, {pipeline_mode = #tpu.pipeline_mode<synchronous>, transform_indices = @transform_1, window_bounds = array<i64: 128, 256>}, {pipeline_mode = #tpu.pipeline_mode<synchronous>, transform_indices = @transform_2, window_bounds = array<i64: 1, 256>}, {pipeline_mode = #tpu.pipeline_mode<synchronous>, transform_indices = @transform_3, window_bounds = array<i64: 128, 128>}, {pipeline_mode = #tpu.pipeline_mode<synchronous>, transform_indices = @transform_4, window_bounds = array<i64: 1, 128>}, {pipeline_mode = #tpu.pipeline_mode<synchronous>, transform_indices = @transform_5, window_bounds = array<i64: 128, 128>}, {pipeline_mode = #tpu.pipeline_mode<synchronous>, transform_indices = @transform_6, window_bounds = array<i64: 1, 128>}, {transform_indices = @transform_7, window_bounds = array<i64: 128, 4096>}, {pipeline_mode = #tpu.pipeline_mode<synchronous>, transform_indices = @transform_8, window_bounds = array<i64: 8, 128>}, {pipeline_mode = #tpu.pipeline_mode<synchronous>, transform_indices = @transform_9, window_bounds = array<i64: 8, 128>}, {pipeline_mode = #tpu.pipeline_mode<synchronous>, transform_indices = @transform_10, window_bounds = array<i64: 8, 128>}, {transform_indices = @transform_11, window_bounds = array<i64: 8, 4096>}]} {
    %c0_i32 = arith.constant 0 : i32
    %0 = arith.cmpi eq, %arg0, %c0_i32 : i32
    %1 = arith.extui %0 : i1 to i32
    %c0_i32_0 = arith.constant 0 : i32
    %2 = arith.cmpi ne, %1, %c0_i32_0 : i32
    scf.if %2 {
      %c0_6 = arith.constant 0 : index
      %c0_7 = arith.constant 0 : index
      %c0_8 = arith.constant 0 : index
      %7 = vector.load %arg1[%c0_6, %c0_7, %c0_8] : memref<8x8x128xf32, #tpu.memory_space<vmem>>, vector<8x8x128xf32>
      %cst_9 = arith.constant dense<0.000000e+00> : vector<8x128xf32>
      %8 = vector.multi_reduction <add>, %7, %cst_9 [1] : vector<8x8x128xf32> to vector<8x128xf32>
      %cst_10 = arith.constant 1.250000e-01 : f32
      %9 = vector.broadcast %cst_10 : f32 to vector<8x128xf32>
      %10 = arith.mulf %8, %9 : vector<8x128xf32>
      %c0_11 = arith.constant 0 : index
      %c0_12 = arith.constant 0 : index
      %11 = vector.load %arg10[%c0_11, %c0_12] : memref<8x128xf32, #tpu.memory_space<vmem>>, vector<8x128xf32>
      tpu.vector_store %arg10[%c0_11, %c0_12], %10 {strides = array<i32>} : memref<8x128xf32, #tpu.memory_space<vmem>>, vector<8x128xf32>,
      %12 = arith.truncf %10 : vector<8x128xf32> to vector<8x128xbf16>
      %c0_13 = arith.constant 0 : index
      %c0_14 = arith.constant 0 : index
      %13 = vector.load %arg2[%c0_13, %c0_14] : memref<128x256xbf16, #tpu.memory_space<vmem>>, vector<128x256xbf16>
      %cst_15 = arith.constant dense<0.000000e+00> : vector<8x256xf32>
      %14 = tpu.matmul %12, %13, %cst_15 {dimension_numbers = #tpu.dot_dimension_numbers<[1], [0], [0], [1], [0, 0, 1, 1], [], []>} : vector<8x128xbf16>, vector<128x256xbf16>, vector<8x256xf32> -> vector<8x256xf32>
      %c0_16 = arith.constant 0 : index
      %c0_17 = arith.constant 0 : index
      %15 = vector.load %arg3[%c0_16, %c0_17] : memref<1x256xf32, #tpu.memory_space<vmem>>, vector<1x256xf32>
      %16 = vector.broadcast %15 : vector<1x256xf32> to vector<8x256xf32>
      %17 = arith.addf %14, %16 : vector<8x256xf32>
      %18 = math.tanh %17 : vector<8x256xf32>
      %19 = vector.extract_strided_slice %18 {offsets = [0, 0], sizes = [8, 128], strides = [1, 1]} : vector<8x256xf32> to vector<8x128xf32>
      %20 = vector.extract_strided_slice %18 {offsets = [0, 128], sizes = [8, 128], strides = [1, 1]} : vector<8x256xf32> to vector<8x128xf32>
      %21 = arith.truncf %19 : vector<8x128xf32> to vector<8x128xbf16>
      %c0_18 = arith.constant 0 : index
      %c0_19 = arith.constant 0 : index
      %22 = vector.load %arg4[%c0_18, %c0_19] : memref<128x128xbf16, #tpu.memory_space<vmem>>, vector<128x128xbf16>
      %cst_20 = arith.constant dense<0.000000e+00> : vector<8x128xf32>
      %23 = tpu.matmul %21, %22, %cst_20 {dimension_numbers = #tpu.dot_dimension_numbers<[1], [0], [0], [1], [0, 0, 1, 1], [], []>} : vector<8x128xbf16>, vector<128x128xbf16>, vector<8x128xf32> -> vector<8x128xf32>
      %c0_21 = arith.constant 0 : index
      %c0_22 = arith.constant 0 : index
      %24 = vector.load %arg5[%c0_21, %c0_22] : memref<1x128xf32, #tpu.memory_space<vmem>>, vector<1x128xf32>
      %25 = vector.broadcast %24 : vector<1x128xf32> to vector<8x128xf32>
      %26 = arith.addf %23, %25 : vector<8x128xf32>
      %27 = tpu.iota {dimensions = array<i32: 1>} : vector<8x128xi32>
      %c4_i32 = arith.constant 4 : i32
      %28 = vector.broadcast %c4_i32 : i32 to vector<8x128xi32>
      %29 = arith.cmpi slt, %27, %28 : vector<8x128xi32>
      %cst_23 = arith.constant 0xFF800000 : f32
      %30 = vector.broadcast %cst_23 : f32 to vector<8x128xf32>
      %31 = arith.select %29, %26, %30 : vector<8x128xi1>, vector<8x128xf32>
      %cst_24 = arith.constant dense<0xFF800000> : vector<8xf32>
      %32 = vector.multi_reduction <maximumf>, %31, %cst_24 [1] : vector<8x128xf32> to vector<8xf32>
      %33 = vector.shape_cast %32 : vector<8xf32> to vector<8x1xf32>
      %34 = vector.broadcast %33 : vector<8x1xf32> to vector<8x128xf32>
      %35 = arith.subf %31, %34 : vector<8x128xf32>
      %36 = math.exp %35 : vector<8x128xf32>
      %cst_25 = arith.constant dense<0.000000e+00> : vector<8xf32>
      %37 = vector.multi_reduction <add>, %36, %cst_25 [1] : vector<8x128xf32> to vector<8xf32>
      %38 = vector.shape_cast %37 : vector<8xf32> to vector<8x1xf32>
      %39 = vector.broadcast %38 : vector<8x1xf32> to vector<8x128xf32>
      %40 = arith.divf %36, %39 : vector<8x128xf32>
      %c0_26 = arith.constant 0 : index
      %c0_27 = arith.constant 0 : index
      %41 = vector.load %arg9[%c0_26, %c0_27] : memref<8x128xf32, #tpu.memory_space<vmem>>, vector<8x128xf32>
      tpu.vector_store %arg9[%c0_26, %c0_27], %40 {strides = array<i32>} : memref<8x128xf32, #tpu.memory_space<vmem>>, vector<8x128xf32>,
      %42 = arith.truncf %20 : vector<8x128xf32> to vector<8x128xbf16>
      %c0_28 = arith.constant 0 : index
      %c0_29 = arith.constant 0 : index
      %43 = vector.load %arg6[%c0_28, %c0_29] : memref<128x128xbf16, #tpu.memory_space<vmem>>, vector<128x128xbf16>
      %cst_30 = arith.constant dense<0.000000e+00> : vector<8x128xf32>
      %44 = tpu.matmul %42, %43, %cst_30 {dimension_numbers = #tpu.dot_dimension_numbers<[1], [0], [0], [1], [0, 0, 1, 1], [], []>} : vector<8x128xbf16>, vector<128x128xbf16>, vector<8x128xf32> -> vector<8x128xf32>
      %c0_31 = arith.constant 0 : index
      %c0_32 = arith.constant 0 : index
      %45 = vector.load %arg7[%c0_31, %c0_32] : memref<1x128xf32, #tpu.memory_space<vmem>>, vector<1x128xf32>
      %46 = vector.broadcast %45 : vector<1x128xf32> to vector<8x128xf32>
      %47 = arith.addf %44, %46 : vector<8x128xf32>
      %48 = arith.mulf %47, %47 : vector<8x128xf32>
      %cst_33 = arith.constant dense<0.000000e+00> : vector<8xf32>
      %49 = vector.multi_reduction <add>, %48, %cst_33 [1] : vector<8x128xf32> to vector<8xf32>
      %50 = vector.shape_cast %49 : vector<8xf32> to vector<8x1xf32>
      %51 = tpu.iota {dimensions = array<i32: 0>} : vector<8x1xi32>
      %c2_i32 = arith.constant 2 : i32
      %52 = vector.broadcast %c2_i32 : i32 to vector<8x1xi32>
      %53 = arith.cmpi slt, %51, %52 : vector<8x1xi32>
      %54 = math.rsqrt %50 : vector<8x1xf32>
      %55 = vector.broadcast %54 : vector<8x1xf32> to vector<8x128xf32>
      %56 = arith.mulf %47, %55 : vector<8x128xf32>
      %cst_34 = arith.constant 0.000000e+00 : f32
      %57 = vector.shape_cast %53 : vector<8x1xi1> to vector<8x1xi1>
      %58 = vector.broadcast %57 : vector<8x1xi1> to vector<8x128xi1>
      %59 = vector.broadcast %cst_34 : f32 to vector<8x128xf32>
      %60 = arith.select %58, %56, %59 : vector<8x128xi1>, vector<8x128xf32>
      %c0_35 = arith.constant 0 : index
      %c0_36 = arith.constant 0 : index
      %61 = vector.load %arg11[%c0_35, %c0_36] : memref<8x128xf32, #tpu.memory_space<vmem>>, vector<8x128xf32>
      tpu.vector_store %arg11[%c0_35, %c0_36], %60 {strides = array<i32>} : memref<8x128xf32, #tpu.memory_space<vmem>>, vector<8x128xf32>,
      %62 = arith.truncf %60 : vector<8x128xf32> to vector<8x128xbf16>
      %c0_37 = arith.constant 0 : index
      %c0_38 = arith.constant 0 : index
      %63 = vector.load %arg13[%c0_37, %c0_38] : memref<8x128xbf16, #tpu.memory_space<vmem>>, vector<8x128xbf16>
      tpu.vector_store %arg13[%c0_37, %c0_38], %62 {strides = array<i32>} : memref<8x128xbf16, #tpu.memory_space<vmem>>, vector<8x128xbf16>,
    } else {
    }
    %c0 = arith.constant 0 : index
    %c0_1 = arith.constant 0 : index
    %3 = vector.load %arg13[%c0, %c0_1] : memref<8x128xbf16, #tpu.memory_space<vmem>>, vector<8x128xbf16>
    %c0_2 = arith.constant 0 : index
    %c0_3 = arith.constant 0 : index
    %4 = vector.load %arg8[%c0_2, %c0_3] : memref<128x4096xbf16, #tpu.memory_space<vmem>>, vector<128x4096xbf16>
    %cst = arith.constant dense<0.000000e+00> : vector<8x4096xf32>
    %5 = tpu.matmul %3, %4, %cst {dimension_numbers = #tpu.dot_dimension_numbers<[1], [0], [0], [1], [0, 0, 1, 1], [], []>} : vector<8x128xbf16>, vector<128x4096xbf16>, vector<8x4096xf32> -> vector<8x4096xf32>
    %c0_4 = arith.constant 0 : index
    %c0_5 = arith.constant 0 : index
    %6 = vector.load %arg12[%c0_4, %c0_5] : memref<8x4096xf32, #tpu.memory_space<vmem>>, vector<8x4096xf32>
    tpu.vector_store %arg12[%c0_4, %c0_5], %5 {strides = array<i32>} : memref<8x4096xf32, #tpu.memory_space<vmem>>, vector<8x4096xf32>,
    return
  }
  func.func @transform_0(%arg0: i32) -> (i32, i32, i32) {
    %c0_i32 = arith.constant 0 : i32
    %c0_i32_0 = arith.constant 0 : i32
    %c0_i32_1 = arith.constant 0 : i32
    %c0_i32_2 = arith.constant 0 : i32
    return %c0_i32, %c0_i32_0, %c0_i32_1 : i32, i32, i32
  }
  func.func @transform_1(%arg0: i32) -> (i32, i32) {
    %c0_i32 = arith.constant 0 : i32
    %c0_i32_0 = arith.constant 0 : i32
    %c0_i32_1 = arith.constant 0 : i32
    return %c0_i32, %c0_i32_0 : i32, i32
  }
  func.func @transform_2(%arg0: i32) -> (i32, i32) {
    %c0_i32 = arith.constant 0 : i32
    %c0_i32_0 = arith.constant 0 : i32
    %c0_i32_1 = arith.constant 0 : i32
    return %c0_i32, %c0_i32_0 : i32, i32
  }
  func.func @transform_3(%arg0: i32) -> (i32, i32) {
    %c0_i32 = arith.constant 0 : i32
    %c0_i32_0 = arith.constant 0 : i32
    %c0_i32_1 = arith.constant 0 : i32
    return %c0_i32, %c0_i32_0 : i32, i32
  }
  func.func @transform_4(%arg0: i32) -> (i32, i32) {
    %c0_i32 = arith.constant 0 : i32
    %c0_i32_0 = arith.constant 0 : i32
    %c0_i32_1 = arith.constant 0 : i32
    return %c0_i32, %c0_i32_0 : i32, i32
  }
  func.func @transform_5(%arg0: i32) -> (i32, i32) {
    %c0_i32 = arith.constant 0 : i32
    %c0_i32_0 = arith.constant 0 : i32
    %c0_i32_1 = arith.constant 0 : i32
    return %c0_i32, %c0_i32_0 : i32, i32
  }
  func.func @transform_6(%arg0: i32) -> (i32, i32) {
    %c0_i32 = arith.constant 0 : i32
    %c0_i32_0 = arith.constant 0 : i32
    %c0_i32_1 = arith.constant 0 : i32
    return %c0_i32, %c0_i32_0 : i32, i32
  }
  func.func @transform_7(%arg0: i32) -> (i32, i32) {
    %c0_i32 = arith.constant 0 : i32
    %c0_i32_0 = arith.constant 0 : i32
    return %c0_i32, %arg0 : i32, i32
  }
  func.func @transform_8(%arg0: i32) -> (i32, i32) {
    %c0_i32 = arith.constant 0 : i32
    %c0_i32_0 = arith.constant 0 : i32
    %c0_i32_1 = arith.constant 0 : i32
    return %c0_i32, %c0_i32_0 : i32, i32
  }
  func.func @transform_9(%arg0: i32) -> (i32, i32) {
    %c0_i32 = arith.constant 0 : i32
    %c0_i32_0 = arith.constant 0 : i32
    %c0_i32_1 = arith.constant 0 : i32
    return %c0_i32, %c0_i32_0 : i32, i32
  }
  func.func @transform_10(%arg0: i32) -> (i32, i32) {
    %c0_i32 = arith.constant 0 : i32
    %c0_i32_0 = arith.constant 0 : i32
    %c0_i32_1 = arith.constant 0 : i32
    return %c0_i32, %c0_i32_0 : i32, i32
  }
  func.func @transform_11(%arg0: i32) -> (i32, i32) {
    %c0_i32 = arith.constant 0 : i32
    %c0_i32_0 = arith.constant 0 : i32
    return %c0_i32, %arg0 : i32, i32
  }
}

</mosaic_0001>

<llo_original>
// kernel: tpu_custom_call.1
$region0: #{tpu_custom_call.1}
  #allocation0 [shape = 'u32[]', space=smem, size = 0x4, offset = 0x4, fixed_abs, tag = 'smem constant byte address 0x4 - core index']
  #allocation1 [shape = 'u32[72,128]{1,0:T(1,128)}', space=vmem, size = 0x9000, scoped, tag = 'internal scratch']
  #allocation2 [shape = 'bf16[8,128]{1,0:T(8,128)(2,1)}', space=vmem, size = 0x800, scoped, tag = 'scratch operand']
  %s0 = inlined_call_operand.hbm [shape: f32[8,8,128], index: 0, kind: input, shape index: {}]
  %s1 = inlined_call_operand.hbm [shape: bf16[128,256], index: 1, kind: input, shape index: {}]
  %s2 = inlined_call_operand.hbm [shape: f32[1,256], index: 2, kind: input, shape index: {}]
  %s3 = inlined_call_operand.hbm [shape: bf16[128,128], index: 3, kind: input, shape index: {}]
  %s4 = inlined_call_operand.hbm [shape: f32[1,128], index: 4, kind: input, shape index: {}]
  %s5 = inlined_call_operand.hbm [shape: bf16[128,128], index: 5, kind: input, shape index: {}]
  %s6 = inlined_call_operand.hbm [shape: f32[1,128], index: 6, kind: input, shape index: {}]
  %s7 = inlined_call_operand.hbm [shape: bf16[128,8192], index: 7, kind: input, shape index: {}]
  %s8 = inlined_call_operand.hbm [shape: f32[8,128], index: 8, kind: output, shape index: {0}]
  %s9 = inlined_call_operand.hbm [shape: f32[8,128], index: 9, kind: output, shape index: {1}]
  %s10 = inlined_call_operand.hbm [shape: f32[8,128], index: 10, kind: output, shape index: {2}]
  %s11 = inlined_call_operand.hbm [shape: f32[8,8192], index: 11, kind: output, shape index: {3}]
  %12 = xla_tuple %s8, %s9, %s10, %s11
  %s13 = sld [smem:[#allocation0]]
  $region125: #{tpu_custom_call.1} parent=0
    _
  %s15 = ssub.s32 1, %s13
  %s16 = scalar_select 0, %s15, %s13
  $region1: #{tpu_custom_call.1} parent=0
    #allocation3 [shape = 'u8[32768]{0}', space=vmem, size = 0x8000, scoped, tag = 'input window, operand 0, single buffered']
    #allocation4 [shape = 's32[2]{0}', space=sflag, size = 0x8, scoped, tag = 'scoped memory for tpu_custom_call.1']
    #allocation5 [shape = 's32[2]{0}', space=sflag, size = 0x8, scoped, tag = 'scoped memory for tpu_custom_call.1']
    #allocation6 [shape = 'u8[65536]{0}', space=vmem, size = 0x10000, scoped, tag = 'input window, operand 1, single buffered']
    #allocation7 [shape = 's32[1]{0}', space=sflag, size = 0x4, scoped, tag = 'scoped memory for tpu_custom_call.1']
    #allocation8 [shape = 'u8[1024]{0}', space=vmem, size = 0x400, scoped, tag = 'input window, operand 2, single buffered']
    #allocation9 [shape = 'u8[32768]{0}', space=vmem, size = 0x8000, scoped, tag = 'input window, operand 3, single buffered']
    #allocation10 [shape = 's32[1]{0}', space=sflag, size = 0x4, scoped, tag = 'scoped memory for tpu_custom_call.1']
    #allocation11 [shape = 'u8[512]{0}', space=vmem, size = 0x400, scoped, tag = 'input window, operand 4, single buffered']
    #allocation12 [shape = 'u8[32768]{0}', space=vmem, size = 0x8000, scoped, tag = 'input window, operand 5, single buffered']
    #allocation13 [shape = 's32[1]{0}', space=sflag, size = 0x4, scoped, tag = 'scoped memory for tpu_custom_call.1']
    #allocation14 [shape = 'u8[512]{0}', space=vmem, size = 0x400, scoped, tag = 'input window, operand 6, single buffered']
    #allocation15 [shape = 'u8[2097152]{0}', space=vmem, size = 0x200000, scoped, tag = 'input window, operand 7']
    #allocation16 [shape = 's32[2]{0}', space=sflag, size = 0x8, scoped, tag = 'scoped memory for tpu_custom_call.1']
    #allocation17 [shape = 'u8[4096]{0}', space=vmem, size = 0x1000, scoped, tag = 'output window, operand 0, single buffered']
    #allocation18 [shape = 'u8[4096]{0}', space=vmem, size = 0x1000, scoped, tag = 'output window, operand 1, single buffered']
    #allocation19 [shape = 's32[1]{0}', space=sflag, size = 0x4, scoped, tag = 'scoped memory for tpu_custom_call.1']
    #allocation20 [shape = 'u8[4096]{0}', space=vmem, size = 0x1000, scoped, tag = 'output window, operand 2, single buffered']
    #allocation21 [shape = 'u8[262144]{0}', space=vmem, size = 0x40000, scoped, tag = 'output window, operand 3']
    #allocation22 [shape = 's32[2]{0}', space=sflag, size = 0x8, scoped, tag = 'scoped memory for tpu_custom_call.1']
    %17 = vsyncpa [#allocation4], 0
    %18 = vsyncpa [#allocation7], 0
    %19 = vsyncpa [#allocation10], 0
    %20 = vsyncpa [#allocation13], 0
    %21 = vsyncpa [#allocation16], 0
    %s22 = scalar_lea.sflag [#allocation16], 1
    %23 = vsyncpa %s22, 0
    %24 = vsyncpa [#allocation5], 0
    %25 = vsyncpa [#allocation19], 0
    %26 = vsyncpa [#allocation22], 0
    %s27 = scalar_lea.sflag [#allocation22], 1
    %28 = vsyncpa %s27, 0
    loop: start=0, step=1, limit=4
    $region2: #{tpu_custom_call.1} parent=1 // loop_pre_header
      _
    $region3: #{tpu_custom_call.1} parent=1 // loop_header
      %s30 = sphi 0, %s34
      %p31 = scmp.ge.s32.totalorder %s30, 4
      %s38 = sphi 0, %s38
      %s40 = sphi 0, %s38
      %s41 = sphi 0, %s40
      %s55 = sphi 0, %s41
      %s59 = sphi 0, %s59
      %s61 = sphi 0, %s59
      %s62 = sphi 0, %s61
      %s76 = sphi 0, %s62
      %s80 = sphi 0, %s80
      %s82 = sphi 0, %s80
      %s83 = sphi 0, %s82
      %s97 = sphi 0, %s83
      %s101 = sphi 0, %s101
      %s103 = sphi 0, %s101
      %s104 = sphi 0, %s103
      %s118 = sphi 0, %s104
      %s122 = sphi 0, %s122
      %s124 = sphi 0, %s122
      %s125 = sphi 0, %s124
      %s139 = sphi 0, %s125
      %s143 = sphi 0, %s143
      %s145 = sphi 0, %s143
      %s146 = sphi 0, %s145
      %s160 = sphi 0, %s146
      %s164 = sphi 0, %s164
      %s166 = sphi 0, %s164
      %s167 = sphi 0, %s166
      %s181 = sphi 0, %s167
      %s187 = sphi 0, %s189
      %s190 = sphi 0, %s187
      %s191 = sphi 0, %s190
      %s207 = sphi 0, %s191
      %s211 = sphi 0, %s211
      %s213 = sphi 0, %s211
      %s214 = sphi 0, %s213
      %s228 = sphi 0, %s214
      %s232 = sphi 0, %s232
      %s234 = sphi 0, %s232
      %s235 = sphi 0, %s234
      %s249 = sphi 0, %s235
      %s253 = sphi 0, %s253
      %s255 = sphi 0, %s253
      %s256 = sphi 0, %s255
      %s270 = sphi 0, %s256
      %s276 = sphi 0, %s278
      %s279 = sphi 0, %s276
      %s280 = sphi 0, %s279
      %s296 = sphi 0, %s280
    $region4: #{tpu_custom_call.1} parent=1 // loop_header_branch
      %33 = sbr.rel (%p31) target = $region8
    $region5: #{tpu_custom_call.1} parent=1 // loop_body
      %s35 = ssub.s32 %s30, 1
      %s36 = ssub.s32 %s30, 2
      %s37 = sadd.s32 %s30, 1
      %s39 = sadd.s32 %s38, 1
      %p42 = scmp.eq.s32.totalorder %s30, 1
      %p43 = scmp.ne.s32.totalorder %s38, %s40
      %p44 = scmp.eq.s32.totalorder %s30, 0
      %p45 = por %p43, %p44
      %p46 = scmp.ne.s32.totalorder %s38, %s40
      %p47 = scmp.eq.s32.totalorder %s35, 1
      %p48 = por %p46, %p47
      %p49 = scmp.ne.s32.totalorder %s40, %s41
      %p50 = scmp.eq.s32.totalorder %s35, 0
      %p51 = por %p49, %p50
      %p52 = scmp.ne.s32.totalorder %s40, %s41
      %p53 = scmp.eq.s32.totalorder %s36, 1
      %p54 = por %p52, %p53
      %p56 = scmp.ne.s32.totalorder %s41, %s55
      %p57 = scmp.eq.s32.totalorder %s36, 0
      %p58 = por %p56, %p57
      %s60 = sadd.s32 %s59, 1
      %p63 = scmp.eq.s32.totalorder %s30, 1
      %p64 = scmp.ne.s32.totalorder %s59, %s61
      %p65 = scmp.eq.s32.totalorder %s30, 0
      %p66 = por %p64, %p65
      %p67 = scmp.ne.s32.totalorder %s59, %s61
      %p68 = scmp.eq.s32.totalorder %s35, 1
      %p69 = por %p67, %p68
      %p70 = scmp.ne.s32.totalorder %s61, %s62
      %p71 = scmp.eq.s32.totalorder %s35, 0
      %p72 = por %p70, %p71
      %p73 = scmp.ne.s32.totalorder %s61, %s62
      %p74 = scmp.eq.s32.totalorder %s36, 1
      %p75 = por %p73, %p74
      %p77 = scmp.ne.s32.totalorder %s62, %s76
      %p78 = scmp.eq.s32.totalorder %s36, 0
      %p79 = por %p77, %p78
      %s81 = sadd.s32 %s80, 1
      %p84 = scmp.eq.s32.totalorder %s30, 1
      %p85 = scmp.ne.s32.totalorder %s80, %s82
      %p86 = scmp.eq.s32.totalorder %s30, 0
      %p87 = por %p85, %p86
      %p88 = scmp.ne.s32.totalorder %s80, %s82
      %p89 = scmp.eq.s32.totalorder %s35, 1
      %p90 = por %p88, %p89
      %p91 = scmp.ne.s32.totalorder %s82, %s83
      %p92 = scmp.eq.s32.totalorder %s35, 0
      %p93 = por %p91, %p92
      %p94 = scmp.ne.s32.totalorder %s82, %s83
      %p95 = scmp.eq.s32.totalorder %s36, 1
      %p96 = por %p94, %p95
      %p98 = scmp.ne.s32.totalorder %s83, %s97
      %p99 = scmp.eq.s32.totalorder %s36, 0
      %p100 = por %p98, %p99
      %s102 = sadd.s32 %s101, 1
      %p105 = scmp.eq.s32.totalorder %s30, 1
      %p106 = scmp.ne.s32.totalorder %s101, %s103
      %p107 = scmp.eq.s32.totalorder %s30, 0
      %p108 = por %p106, %p107
      %p109 = scmp.ne.s32.totalorder %s101, %s103
      %p110 = scmp.eq.s32.totalorder %s35, 1
      %p111 = por %p109, %p110
      %p112 = scmp.ne.s32.totalorder %s103, %s104
      %p113 = scmp.eq.s32.totalorder %s35, 0
      %p114 = por %p112, %p113
      %p115 = scmp.ne.s32.totalorder %s103, %s104
      %p116 = scmp.eq.s32.totalorder %s36, 1
      %p117 = por %p115, %p116
      %p119 = scmp.ne.s32.totalorder %s104, %s118
      %p120 = scmp.eq.s32.totalorder %s36, 0
      %p121 = por %p119, %p120
      %s123 = sadd.s32 %s122, 1
      %p126 = scmp.eq.s32.totalorder %s30, 1
      %p127 = scmp.ne.s32.totalorder %s122, %s124
      %p128 = scmp.eq.s32.totalorder %s30, 0
      %p129 = por %p127, %p128
      %p130 = scmp.ne.s32.totalorder %s122, %s124
      %p131 = scmp.eq.s32.totalorder %s35, 1
      %p132 = por %p130, %p131
      %p133 = scmp.ne.s32.totalorder %s124, %s125
      %p134 = scmp.eq.s32.totalorder %s35, 0
      %p135 = por %p133, %p134
      %p136 = scmp.ne.s32.totalorder %s124, %s125
      %p137 = scmp.eq.s32.totalorder %s36, 1
      %p138 = por %p136, %p137
      %p140 = scmp.ne.s32.totalorder %s125, %s139
      %p141 = scmp.eq.s32.totalorder %s36, 0
      %p142 = por %p140, %p141
      %s144 = sadd.s32 %s143, 1
      %p147 = scmp.eq.s32.totalorder %s30, 1
      %p148 = scmp.ne.s32.totalorder %s143, %s145
      %p149 = scmp.eq.s32.totalorder %s30, 0
      %p150 = por %p148, %p149
      %p151 = scmp.ne.s32.totalorder %s143, %s145
      %p152 = scmp.eq.s32.totalorder %s35, 1
      %p153 = por %p151, %p152
      %p154 = scmp.ne.s32.totalorder %s145, %s146
      %p155 = scmp.eq.s32.totalorder %s35, 0
      %p156 = por %p154, %p155
      %p157 = scmp.ne.s32.totalorder %s145, %s146
      %p158 = scmp.eq.s32.totalorder %s36, 1
      %p159 = por %p157, %p158
      %p161 = scmp.ne.s32.totalorder %s146, %s160
      %p162 = scmp.eq.s32.totalorder %s36, 0
      %p163 = por %p161, %p162
      %s165 = sadd.s32 %s164, 1
      %p168 = scmp.eq.s32.totalorder %s30, 1
      %p169 = scmp.ne.s32.totalorder %s164, %s166
      %p170 = scmp.eq.s32.totalorder %s30, 0
      %p171 = por %p169, %p170
      %p172 = scmp.ne.s32.totalorder %s164, %s166
      %p173 = scmp.eq.s32.totalorder %s35, 1
      %p174 = por %p172, %p173
      %p175 = scmp.ne.s32.totalorder %s166, %s167
      %p176 = scmp.eq.s32.totalorder %s35, 0
      %p177 = por %p175, %p176
      %p178 = scmp.ne.s32.totalorder %s166, %s167
      %p179 = scmp.eq.s32.totalorder %s36, 1
      %p180 = por %p178, %p179
      %p182 = scmp.ne.s32.totalorder %s167, %s181
      %p183 = scmp.eq.s32.totalorder %s36, 0
      %p184 = por %p182, %p183
      %s185 = ssub.s32 %s30, %s37
      %p186 = scmp.eq.s32.totalorder %s185, 0
      %s188 = sadd.s32 %s187, 1
      %s189 = scalar_select %p186, %s187, %s188
      %p192 = pneg %p186
      %p193 = scmp.eq.s32.totalorder %s30, 1
      %p194 = por %p192, %p193
      %p195 = scmp.ne.s32.totalorder %s187, %s190
      %p196 = scmp.eq.s32.totalorder %s30, 0
      %p197 = por %p195, %p196
      %p198 = scmp.ne.s32.totalorder %s187, %s190
      %p199 = scmp.eq.s32.totalorder %s35, 1
      %p200 = por %p198, %p199
      %p201 = scmp.ne.s32.totalorder %s190, %s191
      %p202 = scmp.eq.s32.totalorder %s35, 0
      %p203 = por %p201, %p202
      %p204 = scmp.ne.s32.totalorder %s190, %s191
      %p205 = scmp.eq.s32.totalorder %s36, 1
      %p206 = por %p204, %p205
      %p208 = scmp.ne.s32.totalorder %s191, %s207
      %p209 = scmp.eq.s32.totalorder %s36, 0
      %p210 = por %p208, %p209
      %s212 = sadd.s32 %s211, 1
      %p215 = scmp.eq.s32.totalorder %s30, 1
      %p216 = scmp.ne.s32.totalorder %s211, %s213
      %p217 = scmp.eq.s32.totalorder %s30, 0
      %p218 = por %p216, %p217
      %p219 = scmp.ne.s32.totalorder %s211, %s213
      %p220 = scmp.eq.s32.totalorder %s35, 1
      %p221 = por %p219, %p220
      %p222 = scmp.ne.s32.totalorder %s213, %s214
      %p223 = scmp.eq.s32.totalorder %s35, 0
      %p224 = por %p222, %p223
      %p225 = scmp.ne.s32.totalorder %s213, %s214
      %p226 = scmp.eq.s32.totalorder %s36, 1
      %p227 = por %p225, %p226
      %p229 = scmp.ne.s32.totalorder %s214, %s228
      %p230 = scmp.eq.s32.totalorder %s36, 0
      %p231 = por %p229, %p230
      %s233 = sadd.s32 %s232, 1
      %p236 = scmp.eq.s32.totalorder %s30, 1
      %p237 = scmp.ne.s32.totalorder %s232, %s234
      %p238 = scmp.eq.s32.totalorder %s30, 0
      %p239 = por %p237, %p238
      %p240 = scmp.ne.s32.totalorder %s232, %s234
      %p241 = scmp.eq.s32.totalorder %s35, 1
      %p242 = por %p240, %p241
      %p243 = scmp.ne.s32.totalorder %s234, %s235
      %p244 = scmp.eq.s32.totalorder %s35, 0
      %p245 = por %p243, %p244
      %p246 = scmp.ne.s32.totalorder %s234, %s235
      %p247 = scmp.eq.s32.totalorder %s36, 1
      %p248 = por %p246, %p247
      %p250 = scmp.ne.s32.totalorder %s235, %s249
      %p251 = scmp.eq.s32.totalorder %s36, 0
      %p252 = por %p250, %p251
      %s254 = sadd.s32 %s253, 1
      %p257 = scmp.eq.s32.totalorder %s30, 1
      %p258 = scmp.ne.s32.totalorder %s253, %s255
      %p259 = scmp.eq.s32.totalorder %s30, 0
      %p260 = por %p258, %p259
      %p261 = scmp.ne.s32.totalorder %s253, %s255
      %p262 = scmp.eq.s32.totalorder %s35, 1
      %p263 = por %p261, %p262
      %p264 = scmp.ne.s32.totalorder %s255, %s256
      %p265 = scmp.eq.s32.totalorder %s35, 0
      %p266 = por %p264, %p265
      %p267 = scmp.ne.s32.totalorder %s255, %s256
      %p268 = scmp.eq.s32.totalorder %s36, 1
      %p269 = por %p267, %p268
      %p271 = scmp.ne.s32.totalorder %s256, %s270
      %p272 = scmp.eq.s32.totalorder %s36, 0
      %p273 = por %p271, %p272
      %s274 = ssub.s32 %s30, %s37
      %p275 = scmp.eq.s32.totalorder %s274, 0
      %s277 = sadd.s32 %s276, 1
      %s278 = scalar_select %p275, %s276, %s277
      %p281 = pneg %p275
      %p282 = scmp.eq.s32.totalorder %s30, 1
      %p283 = por %p281, %p282
      %p284 = scmp.ne.s32.totalorder %s276, %s279
      %p285 = scmp.eq.s32.totalorder %s30, 0
      %p286 = por %p284, %p285
      %p287 = scmp.ne.s32.totalorder %s276, %s279
      %p288 = scmp.eq.s32.totalorder %s35, 1
      %p289 = por %p287, %p288
      %p290 = scmp.ne.s32.totalorder %s279, %s280
      %p291 = scmp.eq.s32.totalorder %s35, 0
      %p292 = por %p290, %p291
      %p293 = scmp.ne.s32.totalorder %s279, %s280
      %p294 = scmp.eq.s32.totalorder %s36, 1
      %p295 = por %p293, %p294
      %p297 = scmp.ne.s32.totalorder %s280, %s296
      %p298 = scmp.eq.s32.totalorder %s36, 0
      %p299 = por %p297, %p298
      %p300 = scmp.le.s32.totalorder 1, %s30
      %p301 = scmp.lt.s32.totalorder %s30, 3
      %p302 = pnand %p300, %p301
      %p303 = pneg %p302
      // Predicated region
      $region9: #{tpu_custom_call.1} parent=5 // pred_check
        _
      $region10: #{tpu_custom_call.1} parent=5 // pred_check_branch
        %305 = sbr.rel (%p302) target = $region12
      $region11: #{tpu_custom_call.1} parent=5 // pred_region
        %s306 = ssub.s32 %s30, 1
        // Predicated region
        $region13: #{tpu_custom_call.1} parent=11 // pred_check
          %p307 = pneg %p51
        $region14: #{tpu_custom_call.1} parent=11 // pred_check_branch
          %309 = sbr.rel (%p307) target = $region16
        $region15: #{tpu_custom_call.1} parent=11 // pred_region
          %311 = vsyncadd [#allocation4], 0
          %s312 = sshll.u32 %s0, 4
          %s313 = int_to_ptr.hbm [resolvable:$true] %s312
          %s314 = sshll.u32 [#allocation3], 4
          %s315 = int_to_ptr.vmem [resolvable:$true] %s314
          %320 = dma.hbm_to_vmem [thread:$0]  %s313, 1024, %s315, [#allocation4], 128, 128, 8
        $region16: #{tpu_custom_call.1} parent=11 // pred_fallthru
          _
        // Predicated region
        $region17: #{tpu_custom_call.1} parent=11 // pred_check
          %p321 = pneg %p72
        $region18: #{tpu_custom_call.1} parent=11 // pred_check_branch
          %323 = sbr.rel (%p321) target = $region20
        $region19: #{tpu_custom_call.1} parent=11 // pred_region
          %325 = vsyncadd [#allocation7], 0
          %s326 = sshll.u32 %s1, 4
          %s327 = int_to_ptr.hbm [resolvable:$true] %s326
          %s328 = sshll.u32 [#allocation6], 4
          %s329 = int_to_ptr.vmem [resolvable:$true] %s328
          %334 = dma.hbm_to_vmem [thread:$0]  %s327, 2048, %s329, [#allocation7], 128, 128, 8
        $region20: #{tpu_custom_call.1} parent=11 // pred_fallthru
          _
        // Predicated region
        $region21: #{tpu_custom_call.1} parent=11 // pred_check
          %p335 = pneg %p93
        $region22: #{tpu_custom_call.1} parent=11 // pred_check_branch
          %337 = sbr.rel (%p335) target = $region24
        $region23: #{tpu_custom_call.1} parent=11 // pred_region
          %339 = vsyncadd [#allocation7], 0
          %s341 = sshll.u32 %s2, 4
          %s342 = int_to_ptr.hbm [resolvable:$true] %s341
          %s343 = sshll.u32 [#allocation8], 4
          %s344 = int_to_ptr.vmem [resolvable:$true] %s343
          %346 = dma.hbm_to_vmem [thread:$0]  %s342, 32, %s344, [#allocation7]
        $region24: #{tpu_custom_call.1} parent=11 // pred_fallthru
          _
        // Predicated region
        $region25: #{tpu_custom_call.1} parent=11 // pred_check
          %p347 = pneg %p114
        $region26: #{tpu_custom_call.1} parent=11 // pred_check_branch
          %349 = sbr.rel (%p347) target = $region28
        $region27: #{tpu_custom_call.1} parent=11 // pred_region
          %351 = vsyncadd [#allocation10], 0
          %s352 = sshll.u32 %s3, 4
          %s353 = int_to_ptr.hbm [resolvable:$true] %s352
          %s354 = sshll.u32 [#allocation9], 4
          %s355 = int_to_ptr.vmem [resolvable:$true] %s354
          %360 = dma.hbm_to_vmem [thread:$0]  %s353, 1024, %s355, [#allocation10], 64, 64, 4
        $region28: #{tpu_custom_call.1} parent=11 // pred_fallthru
          _
        // Predicated region
        $region29: #{tpu_custom_call.1} parent=11 // pred_check
          %p361 = pneg %p135
        $region30: #{tpu_custom_call.1} parent=11 // pred_check_branch
          %363 = sbr.rel (%p361) target = $region32
        $region31: #{tpu_custom_call.1} parent=11 // pred_region
          %365 = vsyncadd [#allocation10], 0
          %s367 = sshll.u32 %s4, 4
          %s368 = int_to_ptr.hbm [resolvable:$true] %s367
          %s369 = sshll.u32 [#allocation11], 4
          %s370 = int_to_ptr.vmem [resolvable:$true] %s369
          %372 = dma.hbm_to_vmem [thread:$0]  %s368, 16, %s370, [#allocation10]
        $region32: #{tpu_custom_call.1} parent=11 // pred_fallthru
          _
        // Predicated region
        $region33: #{tpu_custom_call.1} parent=11 // pred_check
          %p373 = pneg %p156
        $region34: #{tpu_custom_call.1} parent=11 // pred_check_branch
          %375 = sbr.rel (%p373) target = $region36
        $region35: #{tpu_custom_call.1} parent=11 // pred_region
          %377 = vsyncadd [#allocation13], 0
          %s378 = sshll.u32 %s5, 4
          %s379 = int_to_ptr.hbm [resolvable:$true] %s378
          %s380 = sshll.u32 [#allocation12], 4
          %s381 = int_to_ptr.vmem [resolvable:$true] %s380
          %386 = dma.hbm_to_vmem [thread:$0]  %s379, 1024, %s381, [#allocation13], 64, 64, 4
        $region36: #{tpu_custom_call.1} parent=11 // pred_fallthru
          _
        // Predicated region
        $region37: #{tpu_custom_call.1} parent=11 // pred_check
          %p387 = pneg %p177
        $region38: #{tpu_custom_call.1} parent=11 // pred_check_branch
          %389 = sbr.rel (%p387) target = $region40
        $region39: #{tpu_custom_call.1} parent=11 // pred_region
          %391 = vsyncadd [#allocation13], 0
          %s393 = sshll.u32 %s6, 4
          %s394 = int_to_ptr.hbm [resolvable:$true] %s393
          %s395 = sshll.u32 [#allocation14], 4
          %s396 = int_to_ptr.vmem [resolvable:$true] %s395
          %398 = dma.hbm_to_vmem [thread:$0]  %s394, 16, %s396, [#allocation13]
        $region40: #{tpu_custom_call.1} parent=11 // pred_fallthru
          _
      $region12: #{tpu_custom_call.1} parent=5 // pred_fallthru
        _
      %p399 = scmp.lt.s32.totalorder %s30, 2
      // Predicated region
      $region41: #{tpu_custom_call.1} parent=5 // pred_check
        %p400 = pneg %p399
      $region42: #{tpu_custom_call.1} parent=5 // pred_check_branch
        %402 = sbr.rel (%p400) target = $region44
      $region43: #{tpu_custom_call.1} parent=5 // pred_region
        // Predicated region
        $region45: #{tpu_custom_call.1} parent=43 // pred_check
          %p403 = pneg %p197
        $region46: #{tpu_custom_call.1} parent=43 // pred_check_branch
          %405 = sbr.rel (%p403) target = $region48
        $region47: #{tpu_custom_call.1} parent=43 // pred_region
          %s406 = sand.u32 %s187, 1
          %s407 = scalar_lea.sflag [#allocation16], %s406
          %s408 = sand.u32 %s187, 1
          %s409 = smul.addr %s408, 2048
          %s410 = scalar_lea.vmem [#allocation15], %s409
          %s411 = smul.u32 32, %s30
          %413 = vsyncadd %s407, 0
          %s414 = smul.addr %s411, 4
          %s415 = scalar_lea.hbm %s7, %s414
          %s416 = sshll.u32 %s415, 4
          %s417 = int_to_ptr.hbm [resolvable:$true] %s416
          %s418 = sshll.u32 %s410, 4
          %s419 = int_to_ptr.vmem [resolvable:$true] %s418
          %424 = dma.hbm_to_vmem [thread:$0]  %s417, 32768, %s419, %s407, 4096, 2048, 128
        $region48: #{tpu_custom_call.1} parent=43 // pred_fallthru
          _
      $region44: #{tpu_custom_call.1} parent=5 // pred_fallthru
        _
      %p425 = scmp.le.s32.totalorder 1, %s30
      %p426 = scmp.lt.s32.totalorder %s30, 3
      %p427 = pnand %p425, %p426
      %p428 = pneg %p427
      // Predicated region
      $region49: #{tpu_custom_call.1} parent=5 // pred_check
        _
      $region50: #{tpu_custom_call.1} parent=5 // pred_check_branch
        %430 = sbr.rel (%p427) target = $region52
      $region51: #{tpu_custom_call.1} parent=5 // pred_region
        %s431 = ssub.s32 %s30, 1
        // Predicated region
        $region53: #{tpu_custom_call.1} parent=51 // pred_check
          %p432 = pneg %p51
        $region54: #{tpu_custom_call.1} parent=51 // pred_check_branch
          %434 = sbr.rel (%p432) target = $region56
        $region55: #{tpu_custom_call.1} parent=51 // pred_region
          %436 = dma.done [#allocation4], 1024
        $region56: #{tpu_custom_call.1} parent=51 // pred_fallthru
          _
        // Predicated region
        $region57: #{tpu_custom_call.1} parent=51 // pred_check
          %p437 = pneg %p72
        $region58: #{tpu_custom_call.1} parent=51 // pred_check_branch
          %439 = sbr.rel (%p437) target = $region60
        $region59: #{tpu_custom_call.1} parent=51 // pred_region
          %441 = dma.done [#allocation7], 2048
        $region60: #{tpu_custom_call.1} parent=51 // pred_fallthru
          _
        // Predicated region
        $region61: #{tpu_custom_call.1} parent=51 // pred_check
          %p442 = pneg %p93
        $region62: #{tpu_custom_call.1} parent=51 // pred_check_branch
          %444 = sbr.rel (%p442) target = $region64
        $region63: #{tpu_custom_call.1} parent=51 // pred_region
          %446 = dma.done [#allocation7], 32
        $region64: #{tpu_custom_call.1} parent=51 // pred_fallthru
          _
        // Predicated region
        $region65: #{tpu_custom_call.1} parent=51 // pred_check
          %p447 = pneg %p114
        $region66: #{tpu_custom_call.1} parent=51 // pred_check_branch
          %449 = sbr.rel (%p447) target = $region68
        $region67: #{tpu_custom_call.1} parent=51 // pred_region
          %451 = dma.done [#allocation10], 1024
        $region68: #{tpu_custom_call.1} parent=51 // pred_fallthru
          _
        // Predicated region
        $region69: #{tpu_custom_call.1} parent=51 // pred_check
          %p452 = pneg %p135
        $region70: #{tpu_custom_call.1} parent=51 // pred_check_branch
          %454 = sbr.rel (%p452) target = $region72
        $region71: #{tpu_custom_call.1} parent=51 // pred_region
          %456 = dma.done [#allocation10], 16
        $region72: #{tpu_custom_call.1} parent=51 // pred_fallthru
          _
        // Predicated region
        $region73: #{tpu_custom_call.1} parent=51 // pred_check
          %p457 = pneg %p156
        $region74: #{tpu_custom_call.1} parent=51 // pred_check_branch
          %459 = sbr.rel (%p457) target = $region76
        $region75: #{tpu_custom_call.1} parent=51 // pred_region
          %461 = dma.done [#allocation13], 1024
        $region76: #{tpu_custom_call.1} parent=51 // pred_fallthru
          _
        // Predicated region
        $region77: #{tpu_custom_call.1} parent=51 // pred_check
          %p462 = pneg %p177
        $region78: #{tpu_custom_call.1} parent=51 // pred_check_branch
          %464 = sbr.rel (%p462) target = $region80
        $region79: #{tpu_custom_call.1} parent=51 // pred_region
          %466 = dma.done [#allocation13], 16
        $region80: #{tpu_custom_call.1} parent=51 // pred_fallthru
          _
        %s467 = sand.u32 %s190, 1
        %s468 = scalar_lea.sflag [#allocation16], %s467
        %s469 = sand.u32 %s190, 1
        %s470 = smul.addr %s469, 2048
        %s471 = scalar_lea.vmem [#allocation15], %s470
        // Predicated region
        $region81: #{tpu_custom_call.1} parent=51 // pred_check
          %p472 = pneg %p203
        $region82: #{tpu_custom_call.1} parent=51 // pred_check_branch
          %474 = sbr.rel (%p472) target = $region84
        $region83: #{tpu_custom_call.1} parent=51 // pred_region
          %476 = dma.done %s468, 32768
        $region84: #{tpu_custom_call.1} parent=51 // pred_fallthru
          _
        %p477 = pneg %p51
        %p478 = pneg %p48
        %p479 = pneg %p72
        %p480 = pneg %p69
        %p481 = pneg %p93
        %p482 = pneg %p90
        %p483 = pneg %p114
        %p484 = pneg %p111
        %p485 = pneg %p135
        %p486 = pneg %p132
        %p487 = pneg %p156
        %p488 = pneg %p153
        %p489 = pneg %p177
        %p490 = pneg %p174
        %s491 = sand.u32 %s190, 1
        %s492 = scalar_lea.sflag [#allocation16], %s491
        %s493 = sand.u32 %s190, 1
        %s494 = smul.addr %s493, 2048
        %s495 = scalar_lea.vmem [#allocation15], %s494
        %p496 = pneg %p203
        %p497 = pneg %p200
        %p498 = pneg %p224
        %p499 = pneg %p221
        %p500 = pneg %p245
        %p501 = pneg %p242
        %p502 = pneg %p266
        %p503 = pneg %p263
        %p504 = pneg %p292
        %p505 = pneg %p289
        %s506 = sand.u32 %s279, 1
        %s507 = scalar_lea.sflag [#allocation22], %s506
        %s508 = sand.u32 %s279, 1
        %s509 = smul.addr %s508, 256
        %s510 = scalar_lea.vmem [#allocation21], %s509
        %s511 = smul.u32 32, %s35
        %s512 = smul.u32 32, %s35
        %p513 = scmp.eq.s32.totalorder %s35, 0
        // Predicated region
        $region85: #{tpu_custom_call.1} parent=51 // pred_check
          %p514 = pneg %p513
        $region86: #{tpu_custom_call.1} parent=51 // pred_check_branch
          %516 = sbr.rel (%p514) target = $region88
        $region87: #{tpu_custom_call.1} parent=51 // pred_region
          %v517 = vld [vmem:[#allocation3] sm:$0xff]
          %v518 = vld [vmem:[#allocation3 + $0x8] sm:$0xff]
          %v519 = vld [vmem:[#allocation3 + $0x10] sm:$0xff]
          %v520 = vld [vmem:[#allocation3 + $0x18] sm:$0xff]
          %v521 = vld [vmem:[#allocation3 + $0x20] sm:$0xff]
          %v522 = vld [vmem:[#allocation3 + $0x28] sm:$0xff]
          %v523 = vld [vmem:[#allocation3 + $0x30] sm:$0xff]
          %v524 = vld [vmem:[#allocation3 + $0x38] sm:$0xff]
          %v525 = vrot.slane %v517, 4
          %v526 = vadd.f32 %v517, %v525
          %v527 = vrot.slane %v526, 2
          %v528 = vadd.f32 %v526, %v527
          %v529 = vrot.slane %v528, 1
          %v530 = vadd.f32 %v528, %v529
          %v531 = vrot.slane %v518, 4
          %v532 = vadd.f32 %v518, %v531
          %v533 = vrot.slane %v532, 2
          %v534 = vadd.f32 %v532, %v533
          %v535 = vrot.slane %v534, 1
          %v536 = vadd.f32 %v534, %v535
          %v537 = vrot.slane %v519, 4
          %v538 = vadd.f32 %v519, %v537
          %v539 = vrot.slane %v538, 2
          %v540 = vadd.f32 %v538, %v539
          %v541 = vrot.slane %v540, 1
          %v542 = vadd.f32 %v540, %v541
          %v543 = vrot.slane %v520, 4
          %v544 = vadd.f32 %v520, %v543
          %v545 = vrot.slane %v544, 2
          %v546 = vadd.f32 %v544, %v545
          %v547 = vrot.slane %v546, 1
          %v548 = vadd.f32 %v546, %v547
          %v549 = vrot.slane %v521, 4
          %v550 = vadd.f32 %v521, %v549
          %v551 = vrot.slane %v550, 2
          %v552 = vadd.f32 %v550, %v551
          %v553 = vrot.slane %v552, 1
          %v554 = vadd.f32 %v552, %v553
          %v555 = vrot.slane %v522, 4
          %v556 = vadd.f32 %v522, %v555
          %v557 = vrot.slane %v556, 2
          %v558 = vadd.f32 %v556, %v557
          %v559 = vrot.slane %v558, 1
          %v560 = vadd.f32 %v558, %v559
          %v561 = vrot.slane %v523, 4
          %v562 = vadd.f32 %v523, %v561
          %v563 = vrot.slane %v562, 2
          %v564 = vadd.f32 %v562, %v563
          %v565 = vrot.slane %v564, 1
          %v566 = vadd.f32 %v564, %v565
          %v567 = vrot.slane %v524, 4
          %v568 = vadd.f32 %v524, %v567
          %v569 = vrot.slane %v568, 2
          %v570 = vadd.f32 %v568, %v569
          %v571 = vrot.slane %v570, 1
          %v572 = vadd.f32 %v570, %v571
          %v573 = vmul.f32 %v530, 0.125
          %v574 = vmul.f32 %v536, 0.125
          %v575 = vmul.f32 %v542, 0.125
          %v576 = vmul.f32 %v548, 0.125
          %v577 = vmul.f32 %v554, 0.125
          %v578 = vmul.f32 %v560, 0.125
          %v579 = vmul.f32 %v566, 0.125
          %v580 = vmul.f32 %v572, 0.125
          %vm589 = vcmask 1041409
          %v590 = vsel %vm589, %v574, %v573
          %vm591 = vcmask 1042434
          %v592 = vsel %vm591, %v575, %v590
          %vm593 = vcmask 1043459
          %v594 = vsel %vm593, %v576, %v592
          %vm595 = vcmask 1044484
          %v596 = vsel %vm595, %v577, %v594
          %vm597 = vcmask 1045509
          %v598 = vsel %vm597, %v578, %v596
          %vm599 = vcmask 1046534
          %v600 = vsel %vm599, %v579, %v598
          %vm601 = vcmask 1047559
          %v602 = vsel %vm601, %v580, %v600
          %604 = vst [vmem:[#allocation18] sm:$0xff] %v602
          %v605 = vpack.c.bf16 %v573, %v573
          %v606 = vpack.c.bf16 %v574, %v574
          %v607 = vpack.c.bf16 %v575, %v575
          %v608 = vpack.c.bf16 %v576, %v576
          %v609 = vpack.c.bf16 %v577, %v577
          %v610 = vpack.c.bf16 %v578, %v578
          %v611 = vpack.c.bf16 %v579, %v579
          %v612 = vpack.c.bf16 %v580, %v580
          %v613 = vld [vmem:[#allocation6] sm:$0xff]
          %v614 = vld [vmem:[#allocation6 + $0x8] sm:$0xff]
          %v615 = vld [vmem:[#allocation6 + $0x10] sm:$0xff]
          %v616 = vld [vmem:[#allocation6 + $0x18] sm:$0xff]
          %v617 = vld [vmem:[#allocation6 + $0x20] sm:$0xff]
          %v618 = vld [vmem:[#allocation6 + $0x28] sm:$0xff]
          %v619 = vld [vmem:[#allocation6 + $0x30] sm:$0xff]
          %v620 = vld [vmem:[#allocation6 + $0x38] sm:$0xff]
          %v621 = vld [vmem:[#allocation6 + $0x40] sm:$0xff]
          %v622 = vld [vmem:[#allocation6 + $0x48] sm:$0xff]
          %v623 = vld [vmem:[#allocation6 + $0x50] sm:$0xff]
          %v624 = vld [vmem:[#allocation6 + $0x58] sm:$0xff]
          %v625 = vld [vmem:[#allocation6 + $0x60] sm:$0xff]
          %v626 = vld [vmem:[#allocation6 + $0x68] sm:$0xff]
          %v627 = vld [vmem:[#allocation6 + $0x70] sm:$0xff]
          %v628 = vld [vmem:[#allocation6 + $0x78] sm:$0xff]
          %v629 = vld [vmem:[#allocation8] sm:$0x3]
          %v631 = vperm.slane %v629, 0
          %v632 = vperm.slane %v629, 1
          %v643 = vunpack.c.l.b16 %v605
          %v644 = vunpack.c.l.b16 %v606
          %v645 = vunpack.c.l.b16 %v607
          %v646 = vunpack.c.l.b16 %v608
          %v647 = vunpack.c.l.b16 %v609
          %v648 = vunpack.c.l.b16 %v610
          %v649 = vunpack.c.l.b16 %v611
          %v650 = vunpack.c.l.b16 %v612
          %v651 = vsel %vm589, %v644, %v643
          %v652 = vsel %vm591, %v645, %v651
          %v653 = vsel %vm593, %v646, %v652
          %v654 = vsel %vm595, %v647, %v653
          %v655 = vsel %vm597, %v648, %v654
          %v656 = vsel %vm599, %v649, %v655
          %v657 = vsel %vm601, %v650, %v656
          %v658 = vpack.c.b16 %v657, %v657
          %v676 = vunpack.c.l.b16 %v613
          %v677 = vunpack.c.h.b16 %v613
          %v678 = vunpack.c.l.b16 %v614
          %v679 = vunpack.c.h.b16 %v614
          %v680 = vunpack.c.l.b16 %v615
          %v681 = vunpack.c.h.b16 %v615
          %v682 = vunpack.c.l.b16 %v616
          %v683 = vunpack.c.h.b16 %v616
          %v684 = vunpack.c.l.b16 %v617
          %v685 = vunpack.c.h.b16 %v617
          %v686 = vunpack.c.l.b16 %v618
          %v687 = vunpack.c.h.b16 %v618
          %v688 = vunpack.c.l.b16 %v619
          %v689 = vunpack.c.h.b16 %v619
          %v690 = vunpack.c.l.b16 %v620
          %v691 = vunpack.c.h.b16 %v620
          %v692 = vunpack.c.l.b16 %v621
          %v693 = vunpack.c.h.b16 %v621
          %v694 = vunpack.c.l.b16 %v622
          %v695 = vunpack.c.h.b16 %v622
          %v696 = vunpack.c.l.b16 %v623
          %v697 = vunpack.c.h.b16 %v623
          %v698 = vunpack.c.l.b16 %v624
          %v699 = vunpack.c.h.b16 %v624
          %v700 = vunpack.c.l.b16 %v625
          %v701 = vunpack.c.h.b16 %v625
          %v702 = vunpack.c.l.b16 %v626
          %v703 = vunpack.c.h.b16 %v626
          %v704 = vunpack.c.l.b16 %v627
          %v705 = vunpack.c.h.b16 %v627
          %v706 = vunpack.c.l.b16 %v628
          %v707 = vunpack.c.h.b16 %v628
          %v708 = vpack.c.b16 %v678, %v676
          %v709 = vpack.c.b16 %v679, %v677
          %v710 = vpack.c.b16 %v682, %v680
          %v711 = vpack.c.b16 %v683, %v681
          %v712 = vpack.c.b16 %v686, %v684
          %v713 = vpack.c.b16 %v687, %v685
          %v714 = vpack.c.b16 %v690, %v688
          %v715 = vpack.c.b16 %v691, %v689
          %v716 = vpack.c.b16 %v694, %v692
          %v717 = vpack.c.b16 %v695, %v693
          %v718 = vpack.c.b16 %v698, %v696
          %v719 = vpack.c.b16 %v699, %v697
          %v720 = vpack.c.b16 %v702, %v700
          %v721 = vpack.c.b16 %v703, %v701
          %v722 = vpack.c.b16 %v706, %v704
          %v723 = vpack.c.b16 %v707, %v705
          %740 = vmatpush.bf16.msra.mxu0 %v722
          %741 = vmatpush.bf16.msra.mxu0 %v720
          %742 = vmatpush.bf16.msra.mxu0 %v718
          %743 = vmatpush.bf16.msra.mxu0 %v716
          %744 = vmatpush.bf16.msra.mxu0 %v714
          %745 = vmatpush.bf16.msra.mxu0 %v712
          %746 = vmatpush.bf16.msra.mxu0 %v710
          %747 = vmatpush.bf16.msra.mxu0 %v708
          %748 = vmatmul.bf16.gmra.mxu0 %v658
          %v749 = vpop.f32.mrf.mxu0
          %v750 = vadd.f32 %v631, %v749
          %v751 = vpop.f32.mrf.mxu0
          %752 = vdwg.mxu0
          %753 = vmatpush.bf16.msra.mxu0 %v723
          %754 = vmatpush.bf16.msra.mxu0 %v721
          %755 = vmatpush.bf16.msra.mxu0 %v719
          %756 = vmatpush.bf16.msra.mxu0 %v717
          %757 = vmatpush.bf16.msra.mxu0 %v715
          %758 = vmatpush.bf16.msra.mxu0 %v713
          %759 = vmatpush.bf16.msra.mxu0 %v711
          %760 = vmatpush.bf16.msra.mxu0 %v709
          %761 = vmatmul.bf16.gmra.mxu0 %v658
          %v762 = vpop.f32.mrf.mxu0
          %v763 = vadd.f32 %v632, %v762
          %v764 = vpop.f32.mrf.mxu0
          %765 = vdwg.mxu0
          %v766 = vtanh.pop %v750
          %v767 = vtanh.pop %v763
          %v768 = vpack.c.bf16 %v766, %v766
          %v769 = vld [vmem:[#allocation9] sm:$0xf]
          %v770 = vld [vmem:[#allocation9 + $0x4] sm:$0xf]
          %v771 = vld [vmem:[#allocation9 + $0x8] sm:$0xf]
          %v772 = vld [vmem:[#allocation9 + $0xc] sm:$0xf]
          %v773 = vld [vmem:[#allocation9 + $0x10] sm:$0xf]
          %v774 = vld [vmem:[#allocation9 + $0x14] sm:$0xf]
          %v775 = vld [vmem:[#allocation9 + $0x18] sm:$0xf]
          %v776 = vld [vmem:[#allocation9 + $0x1c] sm:$0xf]
          %v777 = vld [vmem:[#allocation9 + $0x20] sm:$0xf]
          %v778 = vld [vmem:[#allocation9 + $0x24] sm:$0xf]
          %v779 = vld [vmem:[#allocation9 + $0x28] sm:$0xf]
          %v780 = vld [vmem:[#allocation9 + $0x2c] sm:$0xf]
          %v781 = vld [vmem:[#allocation9 + $0x30] sm:$0xf]
          %v782 = vld [vmem:[#allocation9 + $0x34] sm:$0xf]
          %v783 = vld [vmem:[#allocation9 + $0x38] sm:$0xf]
          %v784 = vld [vmem:[#allocation9 + $0x3c] sm:$0xf]
          %v785 = vld [vmem:[#allocation11] sm:$0x1]
          %v787 = vperm.slane %v785, 0
          %v805 = vunpack.c.l.b16 %v769
          %v806 = vunpack.c.l.b16 %v770
          %v807 = vunpack.c.l.b16 %v771
          %v808 = vunpack.c.l.b16 %v772
          %v809 = vunpack.c.l.b16 %v773
          %v810 = vunpack.c.l.b16 %v774
          %v811 = vunpack.c.l.b16 %v775
          %v812 = vunpack.c.l.b16 %v776
          %v813 = vunpack.c.l.b16 %v777
          %v814 = vunpack.c.l.b16 %v778
          %v815 = vunpack.c.l.b16 %v779
          %v816 = vunpack.c.l.b16 %v780
          %v817 = vunpack.c.l.b16 %v781
          %v818 = vunpack.c.l.b16 %v782
          %v819 = vunpack.c.l.b16 %v783
          %v820 = vunpack.c.l.b16 %v784
          %v821 = vpack.c.b16 %v806, %v805
          %v822 = vpack.c.b16 %v808, %v807
          %v823 = vpack.c.b16 %v810, %v809
          %v824 = vpack.c.b16 %v812, %v811
          %v825 = vpack.c.b16 %v814, %v813
          %v826 = vpack.c.b16 %v816, %v815
          %v827 = vpack.c.b16 %v818, %v817
          %v828 = vpack.c.b16 %v820, %v819
          %837 = vmatpush.bf16.msra.mxu0 %v828
          %838 = vmatpush.bf16.msra.mxu0 %v827
          %839 = vmatpush.bf16.msra.mxu0 %v826
          %840 = vmatpush.bf16.msra.mxu0 %v825
          %841 = vmatpush.bf16.msra.mxu0 %v824
          %842 = vmatpush.bf16.msra.mxu0 %v823
          %843 = vmatpush.bf16.msra.mxu0 %v822
          %844 = vmatpush.bf16.msra.mxu0 %v821
          %845 = vmatmul.bf16.gmra.mxu0 %v768
          %v846 = vpop.f32.mrf.mxu0
          %v847 = vadd.f32 %v787, %v846
          %v848 = vpop.f32.mrf.mxu0
          %849 = vdwg.mxu0
          %v850 = vlaneseq
          %v851 = vand.u32 %v850, 127
          %vm852 = vcmp.lt.s32.totalorder %v851, 4
          %v853 = vsel %vm852, %v847, -inf
          %854 = vmax.xlane.f32.xlu0 %v853
          %v855 = vpop.xlane.xlu0 %854
          %v856 = vsub.f32 %v853, %v855
          %v857 = vmul.f32 %v856, 1.442695
          %v858 = vpow.pop %v857
          %859 = vadd.xlane.f32.xlu0 %v858
          %v860 = vpop.xlane.xlu0 %859
          %v861 = vrcp.pop %v860
          %v862 = vmul.f32 %v860, %v861
          %v863 = vsub.f32 1.0, %v862
          %v864 = vmul.f32 %v861, %v863
          %v865 = vadd.f32 %v861, %v864
          %vm866 = vweird.f32 %v860
          %vm867 = vweird.f32 %v861
          %vm868 = vmor %vm866, %vm867
          %v869 = vsel %vm868, %v861, %v865
          %v870 = vand.u32 2147483647, %v860
          %vm871 = vcmp.eq.f32.partialorder %v870, 8.507059e+37
          %v872 = vand.u32 %v860, 2147483648
          %v873 = vor.u32 1.1754944e-38, %v872
          %v874 = vsel %vm871, %v873, %v869
          %v875 = vmul.f32 %v858, %v874
          %876 = vst [vmem:[#allocation17] sm:$0xff] %v875
          %v877 = vpack.c.bf16 %v767, %v767
          %v878 = vld [vmem:[#allocation12] sm:$0xf]
          %v879 = vld [vmem:[#allocation12 + $0x4] sm:$0xf]
          %v880 = vld [vmem:[#allocation12 + $0x8] sm:$0xf]
          %v881 = vld [vmem:[#allocation12 + $0xc] sm:$0xf]
          %v882 = vld [vmem:[#allocation12 + $0x10] sm:$0xf]
          %v883 = vld [vmem:[#allocation12 + $0x14] sm:$0xf]
          %v884 = vld [vmem:[#allocation12 + $0x18] sm:$0xf]
          %v885 = vld [vmem:[#allocation12 + $0x1c] sm:$0xf]
          %v886 = vld [vmem:[#allocation12 + $0x20] sm:$0xf]
          %v887 = vld [vmem:[#allocation12 + $0x24] sm:$0xf]
          %v888 = vld [vmem:[#allocation12 + $0x28] sm:$0xf]
          %v889 = vld [vmem:[#allocation12 + $0x2c] sm:$0xf]
          %v890 = vld [vmem:[#allocation12 + $0x30] sm:$0xf]
          %v891 = vld [vmem:[#allocation12 + $0x34] sm:$0xf]
          %v892 = vld [vmem:[#allocation12 + $0x38] sm:$0xf]
          %v893 = vld [vmem:[#allocation12 + $0x3c] sm:$0xf]
          %v894 = vld [vmem:[#allocation14] sm:$0x1]
          %v896 = vperm.slane %v894, 0
          %v914 = vunpack.c.l.b16 %v878
          %v915 = vunpack.c.l.b16 %v879
          %v916 = vunpack.c.l.b16 %v880
          %v917 = vunpack.c.l.b16 %v881
          %v918 = vunpack.c.l.b16 %v882
          %v919 = vunpack.c.l.b16 %v883
          %v920 = vunpack.c.l.b16 %v884
          %v921 = vunpack.c.l.b16 %v885
          %v922 = vunpack.c.l.b16 %v886
          %v923 = vunpack.c.l.b16 %v887
          %v924 = vunpack.c.l.b16 %v888
          %v925 = vunpack.c.l.b16 %v889
          %v926 = vunpack.c.l.b16 %v890
          %v927 = vunpack.c.l.b16 %v891
          %v928 = vunpack.c.l.b16 %v892
          %v929 = vunpack.c.l.b16 %v893
          %v930 = vpack.c.b16 %v915, %v914
          %v931 = vpack.c.b16 %v917, %v916
          %v932 = vpack.c.b16 %v919, %v918
          %v933 = vpack.c.b16 %v921, %v920
          %v934 = vpack.c.b16 %v923, %v922
          %v935 = vpack.c.b16 %v925, %v924
          %v936 = vpack.c.b16 %v927, %v926
          %v937 = vpack.c.b16 %v929, %v928
          %946 = vmatpush.bf16.msra.mxu0 %v937
          %947 = vmatpush.bf16.msra.mxu0 %v936
          %948 = vmatpush.bf16.msra.mxu0 %v935
          %949 = vmatpush.bf16.msra.mxu0 %v934
          %950 = vmatpush.bf16.msra.mxu0 %v933
          %951 = vmatpush.bf16.msra.mxu0 %v932
          %952 = vmatpush.bf16.msra.mxu0 %v931
          %953 = vmatpush.bf16.msra.mxu0 %v930
          %954 = vmatmul.bf16.gmra.mxu0 %v877
          %v955 = vpop.f32.mrf.mxu0
          %v956 = vadd.f32 %v896, %v955
          %v957 = vpop.f32.mrf.mxu0
          %958 = vdwg.mxu0
          %v959 = vmul.f32 %v956, %v956
          %960 = vadd.xlane.f32.xlu0 %v959
          %v961 = vpop.xlane.xlu0 %960
          %v962 = vlaneseq
          %v963 = vshrl.u32 %v962, 7
          %vm964 = vcmp.lt.s32.totalorder %v963, 2
          %v965 = vrsqrt.pop %v961
          %v966 = vmul.f32 %v965, %v961
          %v967 = vmul.f32 %v966, %v965
          %v968 = vmul.f32 0.5, %v967
          %v969 = vsub.f32 1.5, %v968
          %v970 = vmul.f32 %v965, %v969
          %vm971 = vweird.f32 %v961
          %vm972 = vweird.f32 %v965
          %vm973 = vmor %vm971, %vm972
          %v974 = vsel %vm973, %v965, %v970
          %v975 = vmul.f32 %v956, %v974
          %v976 = vsel %vm964, 1, 0
          %vm977 = vcmp.eq.s32.totalorder %v976, 1
          %v978 = vsel %vm977, %v975, 0.0
          %979 = vst [vmem:[#allocation20] sm:$0xff] %v978
          %v980 = vpack.c.bf16 %v978, %v978
          %981 = vst [vmem:[#allocation2] sm:$0xf] %v980
        $region88: #{tpu_custom_call.1} parent=51 // pred_fallthru
          _
        %v982 = vld [vmem:[#allocation2] sm:$0xf]
        %v983 = vld [vmem:[%s471] sm:$0xff]
        %v984 = vld [vmem:[%s471 + $0x8] sm:$0xff]
        %v985 = vld [vmem:[%s471 + $0x10] sm:$0xff]
        %v986 = vld [vmem:[%s471 + $0x18] sm:$0xff]
        %v987 = vld [vmem:[%s471 + $0x20] sm:$0xff]
        %v988 = vld [vmem:[%s471 + $0x28] sm:$0xff]
        %v989 = vld [vmem:[%s471 + $0x30] sm:$0xff]
        %v990 = vld [vmem:[%s471 + $0x38] sm:$0xff]
        %v991 = vld [vmem:[%s471 + $0x40] sm:$0xff]
        %v992 = vld [vmem:[%s471 + $0x48] sm:$0xff]
        %v993 = vld [vmem:[%s471 + $0x50] sm:$0xff]
        %v994 = vld [vmem:[%s471 + $0x58] sm:$0xff]
        %v995 = vld [vmem:[%s471 + $0x60] sm:$0xff]
        %v996 = vld [vmem:[%s471 + $0x68] sm:$0xff]
        %v997 = vld [vmem:[%s471 + $0x70] sm:$0xff]
        %v998 = vld [vmem:[%s471 + $0x78] sm:$0xff]
        %v999 = vld [vmem:[%s471 + $0x80] sm:$0xff]
        %v1000 = vld [vmem:[%s471 + $0x88] sm:$0xff]
        %v1001 = vld [vmem:[%s471 + $0x90] sm:$0xff]
        %v1002 = vld [vmem:[%s471 + $0x98] sm:$0xff]
        %v1003 = vld [vmem:[%s471 + $0xa0] sm:$0xff]
        %v1004 = vld [vmem:[%s471 + $0xa8] sm:$0xff]
        %v1005 = vld [vmem:[%s471 + $0xb0] sm:$0xff]
        %v1006 = vld [vmem:[%s471 + $0xb8] sm:$0xff]
        %v1007 = vld [vmem:[%s471 + $0xc0] sm:$0xff]
        %v1008 = vld [vmem:[%s471 + $0xc8] sm:$0xff]
        %v1009 = vld [vmem:[%s471 + $0xd0] sm:$0xff]
        %v1010 = vld [vmem:[%s471 + $0xd8] sm:$0xff]
        %v1011 = vld [vmem:[%s471 + $0xe0] sm:$0xff]
        %v1012 = vld [vmem:[%s471 + $0xe8] sm:$0xff]
        %v1013 = vld [vmem:[%s471 + $0xf0] sm:$0xff]
        %v1014 = vld [vmem:[%s471 + $0xf8] sm:$0xff]
        %v1015 = vld [vmem:[%s471 + $0x100] sm:$0xff]
        %v1016 = vld [vmem:[%s471 + $0x108] sm:$0xff]
        %v1017 = vld [vmem:[%s471 + $0x110] sm:$0xff]
        %v1018 = vld [vmem:[%s471 + $0x118] sm:$0xff]
        %v1019 = vld [vmem:[%s471 + $0x120] sm:$0xff]
        %v1020 = vld [vmem:[%s471 + $0x128] sm:$0xff]
        %v1021 = vld [vmem:[%s471 + $0x130] sm:$0xff]
        %v1022 = vld [vmem:[%s471 + $0x138] sm:$0xff]
        %v1023 = vld [vmem:[%s471 + $0x140] sm:$0xff]
        %v1024 = vld [vmem:[%s471 + $0x148] sm:$0xff]
        %v1025 = vld [vmem:[%s471 + $0x150] sm:$0xff]
        %v1026 = vld [vmem:[%s471 + $0x158] sm:$0xff]
        %v1027 = vld [vmem:[%s471 + $0x160] sm:$0xff]
        %v1028 = vld [vmem:[%s471 + $0x168] sm:$0xff]
        %v1029 = vld [vmem:[%s471 + $0x170] sm:$0xff]
        %v1030 = vld [vmem:[%s471 + $0x178] sm:$0xff]
        %v1031 = vld [vmem:[%s471 + $0x180] sm:$0xff]
        %v1032 = vld [vmem:[%s471 + $0x188] sm:$0xff]
        %v1033 = vld [vmem:[%s471 + $0x190] sm:$0xff]
        %v1034 = vld [vmem:[%s471 + $0x198] sm:$0xff]
        %v1035 = vld [vmem:[%s471 + $0x1a0] sm:$0xff]
        %v1036 = vld [vmem:[%s471 + $0x1a8] sm:$0xff]
        %v1037 = vld [vmem:[%s471 + $0x1b0] sm:$0xff]
        %v1038 = vld [vmem:[%s471 + $0x1b8] sm:$0xff]
        %v1039 = vld [vmem:[%s471 + $0x1c0] sm:$0xff]
        %v1040 = vld [vmem:[%s471 + $0x1c8] sm:$0xff]
        %v1041 = vld [vmem:[%s471 + $0x1d0] sm:$0xff]
        %v1042 = vld [vmem:[%s471 + $0x1d8] sm:$0xff]
        %v1043 = vld [vmem:[%s471 + $0x1e0] sm:$0xff]
        %v1044 = vld [vmem:[%s471 + $0x1e8] sm:$0xff]
        %v1045 = vld [vmem:[%s471 + $0x1f0] sm:$0xff]
        %v1046 = vld [vmem:[%s471 + $0x1f8] sm:$0xff]
        %v1047 = vld [vmem:[%s471 + $0x200] sm:$0xff]
        %v1048 = vld [vmem:[%s471 + $0x208] sm:$0xff]
        %v1049 = vld [vmem:[%s471 + $0x210] sm:$0xff]
        %v1050 = vld [vmem:[%s471 + $0x218] sm:$0xff]
        %v1051 = vld [vmem:[%s471 + $0x220] sm:$0xff]
        %v1052 = vld [vmem:[%s471 + $0x228] sm:$0xff]
        %v1053 = vld [vmem:[%s471 + $0x230] sm:$0xff]
        %v1054 = vld [vmem:[%s471 + $0x238] sm:$0xff]
        %v1055 = vld [vmem:[%s471 + $0x240] sm:$0xff]
        %v1056 = vld [vmem:[%s471 + $0x248] sm:$0xff]
        %v1057 = vld [vmem:[%s471 + $0x250] sm:$0xff]
        %v1058 = vld [vmem:[%s471 + $0x258] sm:$0xff]
        %v1059 = vld [vmem:[%s471 + $0x260] sm:$0xff]
        %v1060 = vld [vmem:[%s471 + $0x268] sm:$0xff]
        %v1061 = vld [vmem:[%s471 + $0x270] sm:$0xff]
        %v1062 = vld [vmem:[%s471 + $0x278] sm:$0xff]
        %v1063 = vld [vmem:[%s471 + $0x280] sm:$0xff]
        %v1064 = vld [vmem:[%s471 + $0x288] sm:$0xff]
        %v1065 = vld [vmem:[%s471 + $0x290] sm:$0xff]
        %v1066 = vld [vmem:[%s471 + $0x298] sm:$0xff]
        %v1067 = vld [vmem:[%s471 + $0x2a0] sm:$0xff]
        %v1068 = vld [vmem:[%s471 + $0x2a8] sm:$0xff]
        %v1069 = vld [vmem:[%s471 + $0x2b0] sm:$0xff]
        %v1070 = vld [vmem:[%s471 + $0x2b8] sm:$0xff]
        %v1071 = vld [vmem:[%s471 + $0x2c0] sm:$0xff]
        %v1072 = vld [vmem:[%s471 + $0x2c8] sm:$0xff]
        %v1073 = vld [vmem:[%s471 + $0x2d0] sm:$0xff]
        %v1074 = vld [vmem:[%s471 + $0x2d8] sm:$0xff]
        %v1075 = vld [vmem:[%s471 + $0x2e0] sm:$0xff]
        %v1076 = vld [vmem:[%s471 + $0x2e8] sm:$0xff]
        %v1077 = vld [vmem:[%s471 + $0x2f0] sm:$0xff]
        %v1078 = vld [vmem:[%s471 + $0x2f8] sm:$0xff]
        %v1079 = vld [vmem:[%s471 + $0x300] sm:$0xff]
        %v1080 = vld [vmem:[%s471 + $0x308] sm:$0xff]
        %v1081 = vld [vmem:[%s471 + $0x310] sm:$0xff]
        %v1082 = vld [vmem:[%s471 + $0x318] sm:$0xff]
        %v1083 = vld [vmem:[%s471 + $0x320] sm:$0xff]
        %v1084 = vld [vmem:[%s471 + $0x328] sm:$0xff]
        %v1085 = vld [vmem:[%s471 + $0x330] sm:$0xff]
        %v1086 = vld [vmem:[%s471 + $0x338] sm:$0xff]
        %v1087 = vld [vmem:[%s471 + $0x340] sm:$0xff]
        %v1088 = vld [vmem:[%s471 + $0x348] sm:$0xff]
        %v1089 = vld [vmem:[%s471 + $0x350] sm:$0xff]
        %v1090 = vld [vmem:[%s471 + $0x358] sm:$0xff]
        %v1091 = vld [vmem:[%s471 + $0x360] sm:$0xff]
        %v1092 = vld [vmem:[%s471 + $0x368] sm:$0xff]
        %v1093 = vld [vmem:[%s471 + $0x370] sm:$0xff]
        %v1094 = vld [vmem:[%s471 + $0x378] sm:$0xff]
        %v1095 = vld [vmem:[%s471 + $0x380] sm:$0xff]
        %v1096 = vld [vmem:[%s471 + $0x388] sm:$0xff]
        %v1097 = vld [vmem:[%s471 + $0x390] sm:$0xff]
        %v1098 = vld [vmem:[%s471 + $0x398] sm:$0xff]
        %v1099 = vld [vmem:[%s471 + $0x3a0] sm:$0xff]
        %v1100 = vld [vmem:[%s471 + $0x3a8] sm:$0xff]
        %v1101 = vld [vmem:[%s471 + $0x3b0] sm:$0xff]
        %v1102 = vld [vmem:[%s471 + $0x3b8] sm:$0xff]
        %v1103 = vld [vmem:[%s471 + $0x3c0] sm:$0xff]
        %v1104 = vld [vmem:[%s471 + $0x3c8] sm:$0xff]
        %v1105 = vld [vmem:[%s471 + $0x3d0] sm:$0xff]
        %v1106 = vld [vmem:[%s471 + $0x3d8] sm:$0xff]
        %v1107 = vld [vmem:[%s471 + $0x3e0] sm:$0xff]
        %v1108 = vld [vmem:[%s471 + $0x3e8] sm:$0xff]
        %v1109 = vld [vmem:[%s471 + $0x3f0] sm:$0xff]
        %v1110 = vld [vmem:[%s471 + $0x3f8] sm:$0xff]
        %v1111 = vld [vmem:[%s471 + $0x400] sm:$0xff]
        %v1112 = vld [vmem:[%s471 + $0x408] sm:$0xff]
        %v1113 = vld [vmem:[%s471 + $0x410] sm:$0xff]
        %v1114 = vld [vmem:[%s471 + $0x418] sm:$0xff]
        %v1115 = vld [vmem:[%s471 + $0x420] sm:$0xff]
        %v1116 = vld [vmem:[%s471 + $0x428] sm:$0xff]
        %v1117 = vld [vmem:[%s471 + $0x430] sm:$0xff]
        %v1118 = vld [vmem:[%s471 + $0x438] sm:$0xff]
        %v1119 = vld [vmem:[%s471 + $0x440] sm:$0xff]
        %v1120 = vld [vmem:[%s471 + $0x448] sm:$0xff]
        %v1121 = vld [vmem:[%s471 + $0x450] sm:$0xff]
        %v1122 = vld [vmem:[%s471 + $0x458] sm:$0xff]
        %v1123 = vld [vmem:[%s471 + $0x460] sm:$0xff]
        %v1124 = vld [vmem:[%s471 + $0x468] sm:$0xff]
        %v1125 = vld [vmem:[%s471 + $0x470] sm:$0xff]
        %v1126 = vld [vmem:[%s471 + $0x478] sm:$0xff]
        %v1127 = vld [vmem:[%s471 + $0x480] sm:$0xff]
        %v1128 = vld [vmem:[%s471 + $0x488] sm:$0xff]
        %v1129 = vld [vmem:[%s471 + $0x490] sm:$0xff]
        %v1130 = vld [vmem:[%s471 + $0x498] sm:$0xff]
        %v1131 = vld [vmem:[%s471 + $0x4a0] sm:$0xff]
        %v1132 = vld [vmem:[%s471 + $0x4a8] sm:$0xff]
        %v1133 = vld [vmem:[%s471 + $0x4b0] sm:$0xff]
        %v1134 = vld [vmem:[%s471 + $0x4b8] sm:$0xff]
        %v1135 = vld [vmem:[%s471 + $0x4c0] sm:$0xff]
        %v1136 = vld [vmem:[%s471 + $0x4c8] sm:$0xff]
        %v1137 = vld [vmem:[%s471 + $0x4d0] sm:$0xff]
        %v1138 = vld [vmem:[%s471 + $0x4d8] sm:$0xff]
        %v1139 = vld [vmem:[%s471 + $0x4e0] sm:$0xff]
        %v1140 = vld [vmem:[%s471 + $0x4e8] sm:$0xff]
        %v1141 = vld [vmem:[%s471 + $0x4f0] sm:$0xff]
        %v1142 = vld [vmem:[%s471 + $0x4f8] sm:$0xff]
        %v1143 = vld [vmem:[%s471 + $0x500] sm:$0xff]
        %v1144 = vld [vmem:[%s471 + $0x508] sm:$0xff]
        %v1145 = vld [vmem:[%s471 + $0x510] sm:$0xff]
        %v1146 = vld [vmem:[%s471 + $0x518] sm:$0xff]
        %v1147 = vld [vmem:[%s471 + $0x520] sm:$0xff]
        %v1148 = vld [vmem:[%s471 + $0x528] sm:$0xff]
        %v1149 = vld [vmem:[%s471 + $0x530] sm:$0xff]
        %v1150 = vld [vmem:[%s471 + $0x538] sm:$0xff]
        %v1151 = vld [vmem:[%s471 + $0x540] sm:$0xff]
        %v1152 = vld [vmem:[%s471 + $0x548] sm:$0xff]
        %v1153 = vld [vmem:[%s471 + $0x550] sm:$0xff]
        %v1154 = vld [vmem:[%s471 + $0x558] sm:$0xff]
        %v1155 = vld [vmem:[%s471 + $0x560] sm:$0xff]
        %v1156 = vld [vmem:[%s471 + $0x568] sm:$0xff]
        %v1157 = vld [vmem:[%s471 + $0x570] sm:$0xff]
        %v1158 = vld [vmem:[%s471 + $0x578] sm:$0xff]
        %v1159 = vld [vmem:[%s471 + $0x580] sm:$0xff]
        %v1160 = vld [vmem:[%s471 + $0x588] sm:$0xff]
        %v1161 = vld [vmem:[%s471 + $0x590] sm:$0xff]
        %v1162 = vld [vmem:[%s471 + $0x598] sm:$0xff]
        %v1163 = vld [vmem:[%s471 + $0x5a0] sm:$0xff]
        %v1164 = vld [vmem:[%s471 + $0x5a8] sm:$0xff]
        %v1165 = vld [vmem:[%s471 + $0x5b0] sm:$0xff]
        %v1166 = vld [vmem:[%s471 + $0x5b8] sm:$0xff]
        %v1167 = vld [vmem:[%s471 + $0x5c0] sm:$0xff]
        %v1168 = vld [vmem:[%s471 + $0x5c8] sm:$0xff]
        %v1169 = vld [vmem:[%s471 + $0x5d0] sm:$0xff]
        %v1170 = vld [vmem:[%s471 + $0x5d8] sm:$0xff]
        %v1171 = vld [vmem:[%s471 + $0x5e0] sm:$0xff]
        %v1172 = vld [vmem:[%s471 + $0x5e8] sm:$0xff]
        %v1173 = vld [vmem:[%s471 + $0x5f0] sm:$0xff]
        %v1174 = vld [vmem:[%s471 + $0x5f8] sm:$0xff]
        %v1175 = vld [vmem:[%s471 + $0x600] sm:$0xff]
        %v1176 = vld [vmem:[%s471 + $0x608] sm:$0xff]
        %v1177 = vld [vmem:[%s471 + $0x610] sm:$0xff]
        %v1178 = vld [vmem:[%s471 + $0x618] sm:$0xff]
        %v1179 = vld [vmem:[%s471 + $0x620] sm:$0xff]
        %v1180 = vld [vmem:[%s471 + $0x628] sm:$0xff]
        %v1181 = vld [vmem:[%s471 + $0x630] sm:$0xff]
        %v1182 = vld [vmem:[%s471 + $0x638] sm:$0xff]
        %v1183 = vld [vmem:[%s471 + $0x640] sm:$0xff]
        %v1184 = vld [vmem:[%s471 + $0x648] sm:$0xff]
        %v1185 = vld [vmem:[%s471 + $0x650] sm:$0xff]
        %v1186 = vld [vmem:[%s471 + $0x658] sm:$0xff]
        %v1187 = vld [vmem:[%s471 + $0x660] sm:$0xff]
        %v1188 = vld [vmem:[%s471 + $0x668] sm:$0xff]
        %v1189 = vld [vmem:[%s471 + $0x670] sm:$0xff]
        %v1190 = vld [vmem:[%s471 + $0x678] sm:$0xff]
        %v1191 = vld [vmem:[%s471 + $0x680] sm:$0xff]
        %v1192 = vld [vmem:[%s471 + $0x688] sm:$0xff]
        %v1193 = vld [vmem:[%s471 + $0x690] sm:$0xff]
        %v1194 = vld [vmem:[%s471 + $0x698] sm:$0xff]
        %v1195 = vld [vmem:[%s471 + $0x6a0] sm:$0xff]
        %v1196 = vld [vmem:[%s471 + $0x6a8] sm:$0xff]
        %v1197 = vld [vmem:[%s471 + $0x6b0] sm:$0xff]
        %v1198 = vld [vmem:[%s471 + $0x6b8] sm:$0xff]
        %v1199 = vld [vmem:[%s471 + $0x6c0] sm:$0xff]
        %v1200 = vld [vmem:[%s471 + $0x6c8] sm:$0xff]
        %v1201 = vld [vmem:[%s471 + $0x6d0] sm:$0xff]
        %v1202 = vld [vmem:[%s471 + $0x6d8] sm:$0xff]
        %v1203 = vld [vmem:[%s471 + $0x6e0] sm:$0xff]
        %v1204 = vld [vmem:[%s471 + $0x6e8] sm:$0xff]
        %v1205 = vld [vmem:[%s471 + $0x6f0] sm:$0xff]
        %v1206 = vld [vmem:[%s471 + $0x6f8] sm:$0xff]
        %v1207 = vld [vmem:[%s471 + $0x700] sm:$0xff]
        %v1208 = vld [vmem:[%s471 + $0x708] sm:$0xff]
        %v1209 = vld [vmem:[%s471 + $0x710] sm:$0xff]
        %v1210 = vld [vmem:[%s471 + $0x718] sm:$0xff]
        %v1211 = vld [vmem:[%s471 + $0x720] sm:$0xff]
        %v1212 = vld [vmem:[%s471 + $0x728] sm:$0xff]
        %v1213 = vld [vmem:[%s471 + $0x730] sm:$0xff]
        %v1214 = vld [vmem:[%s471 + $0x738] sm:$0xff]
        %v1215 = vld [vmem:[%s471 + $0x740] sm:$0xff]
        %v1216 = vld [vmem:[%s471 + $0x748] sm:$0xff]
        %v1217 = vld [vmem:[%s471 + $0x750] sm:$0xff]
        %v1218 = vld [vmem:[%s471 + $0x758] sm:$0xff]
        %v1219 = vld [vmem:[%s471 + $0x760] sm:$0xff]
        %v1220 = vld [vmem:[%s471 + $0x768] sm:$0xff]
        %v1221 = vld [vmem:[%s471 + $0x770] sm:$0xff]
        %v1222 = vld [vmem:[%s471 + $0x778] sm:$0xff]
        %v1223 = vld [vmem:[%s471 + $0x780] sm:$0xff]
        %v1224 = vld [vmem:[%s471 + $0x788] sm:$0xff]
        %v1225 = vld [vmem:[%s471 + $0x790] sm:$0xff]
        %v1226 = vld [vmem:[%s471 + $0x798] sm:$0xff]
        %v1227 = vld [vmem:[%s471 + $0x7a0] sm:$0xff]
        %v1228 = vld [vmem:[%s471 + $0x7a8] sm:$0xff]
        %v1229 = vld [vmem:[%s471 + $0x7b0] sm:$0xff]
        %v1230 = vld [vmem:[%s471 + $0x7b8] sm:$0xff]
        %v1231 = vld [vmem:[%s471 + $0x7c0] sm:$0xff]
        %v1232 = vld [vmem:[%s471 + $0x7c8] sm:$0xff]
        %v1233 = vld [vmem:[%s471 + $0x7d0] sm:$0xff]
        %v1234 = vld [vmem:[%s471 + $0x7d8] sm:$0xff]
        %v1235 = vld [vmem:[%s471 + $0x7e0] sm:$0xff]
        %v1236 = vld [vmem:[%s471 + $0x7e8] sm:$0xff]
        %v1237 = vld [vmem:[%s471 + $0x7f0] sm:$0xff]
        %v1238 = vld [vmem:[%s471 + $0x7f8] sm:$0xff]
        %v1495 = vunpack.c.l.b16 %v983
        %v1496 = vunpack.c.h.b16 %v983
        %v1497 = vunpack.c.l.b16 %v984
        %v1498 = vunpack.c.h.b16 %v984
        %v1499 = vunpack.c.l.b16 %v985
        %v1500 = vunpack.c.h.b16 %v985
        %v1501 = vunpack.c.l.b16 %v986
        %v1502 = vunpack.c.h.b16 %v986
        %v1503 = vunpack.c.l.b16 %v987
        %v1504 = vunpack.c.h.b16 %v987
        %v1505 = vunpack.c.l.b16 %v988
        %v1506 = vunpack.c.h.b16 %v988
        %v1507 = vunpack.c.l.b16 %v989
        %v1508 = vunpack.c.h.b16 %v989
        %v1509 = vunpack.c.l.b16 %v990
        %v1510 = vunpack.c.h.b16 %v990
        %v1511 = vunpack.c.l.b16 %v991
        %v1512 = vunpack.c.h.b16 %v991
        %v1513 = vunpack.c.l.b16 %v992
        %v1514 = vunpack.c.h.b16 %v992
        %v1515 = vunpack.c.l.b16 %v993
        %v1516 = vunpack.c.h.b16 %v993
        %v1517 = vunpack.c.l.b16 %v994
        %v1518 = vunpack.c.h.b16 %v994
        %v1519 = vunpack.c.l.b16 %v995
        %v1520 = vunpack.c.h.b16 %v995
        %v1521 = vunpack.c.l.b16 %v996
        %v1522 = vunpack.c.h.b16 %v996
        %v1523 = vunpack.c.l.b16 %v997
        %v1524 = vunpack.c.h.b16 %v997
        %v1525 = vunpack.c.l.b16 %v998
        %v1526 = vunpack.c.h.b16 %v998
        %v1527 = vunpack.c.l.b16 %v999
        %v1528 = vunpack.c.h.b16 %v999
        %v1529 = vunpack.c.l.b16 %v1000
        %v1530 = vunpack.c.h.b16 %v1000
        %v1531 = vunpack.c.l.b16 %v1001
        %v1532 = vunpack.c.h.b16 %v1001
        %v1533 = vunpack.c.l.b16 %v1002
        %v1534 = vunpack.c.h.b16 %v1002
        %v1535 = vunpack.c.l.b16 %v1003
        %v1536 = vunpack.c.h.b16 %v1003
        %v1537 = vunpack.c.l.b16 %v1004
        %v1538 = vunpack.c.h.b16 %v1004
        %v1539 = vunpack.c.l.b16 %v1005
        %v1540 = vunpack.c.h.b16 %v1005
        %v1541 = vunpack.c.l.b16 %v1006
        %v1542 = vunpack.c.h.b16 %v1006
        %v1543 = vunpack.c.l.b16 %v1007
        %v1544 = vunpack.c.h.b16 %v1007
        %v1545 = vunpack.c.l.b16 %v1008
        %v1546 = vunpack.c.h.b16 %v1008
        %v1547 = vunpack.c.l.b16 %v1009
        %v1548 = vunpack.c.h.b16 %v1009
        %v1549 = vunpack.c.l.b16 %v1010
        %v1550 = vunpack.c.h.b16 %v1010
        %v1551 = vunpack.c.l.b16 %v1011
        %v1552 = vunpack.c.h.b16 %v1011
        %v1553 = vunpack.c.l.b16 %v1012
        %v1554 = vunpack.c.h.b16 %v1012
        %v1555 = vunpack.c.l.b16 %v1013
        %v1556 = vunpack.c.h.b16 %v1013
        %v1557 = vunpack.c.l.b16 %v1014
        %v1558 = vunpack.c.h.b16 %v1014
        %v1559 = vunpack.c.l.b16 %v1015
        %v1560 = vunpack.c.h.b16 %v1015
        %v1561 = vunpack.c.l.b16 %v1016
        %v1562 = vunpack.c.h.b16 %v1016
        %v1563 = vunpack.c.l.b16 %v1017
        %v1564 = vunpack.c.h.b16 %v1017
        %v1565 = vunpack.c.l.b16 %v1018
        %v1566 = vunpack.c.h.b16 %v1018
        %v1567 = vunpack.c.l.b16 %v1019
        %v1568 = vunpack.c.h.b16 %v1019
        %v1569 = vunpack.c.l.b16 %v1020
        %v1570 = vunpack.c.h.b16 %v1020
        %v1571 = vunpack.c.l.b16 %v1021
        %v1572 = vunpack.c.h.b16 %v1021
        %v1573 = vunpack.c.l.b16 %v1022
        %v1574 = vunpack.c.h.b16 %v1022
        %v1575 = vunpack.c.l.b16 %v1023
        %v1576 = vunpack.c.h.b16 %v1023
        %v1577 = vunpack.c.l.b16 %v1024
        %v1578 = vunpack.c.h.b16 %v1024
        %v1579 = vunpack.c.l.b16 %v1025
        %v1580 = vunpack.c.h.b16 %v1025
        %v1581 = vunpack.c.l.b16 %v1026
        %v1582 = vunpack.c.h.b16 %v1026
        %v1583 = vunpack.c.l.b16 %v1027
        %v1584 = vunpack.c.h.b16 %v1027
        %v1585 = vunpack.c.l.b16 %v1028
        %v1586 = vunpack.c.h.b16 %v1028
        %v1587 = vunpack.c.l.b16 %v1029
        %v1588 = vunpack.c.h.b16 %v1029
        %v1589 = vunpack.c.l.b16 %v1030
        %v1590 = vunpack.c.h.b16 %v1030
        %v1591 = vunpack.c.l.b16 %v1031
        %v1592 = vunpack.c.h.b16 %v1031
        %v1593 = vunpack.c.l.b16 %v1032
        %v1594 = vunpack.c.h.b16 %v1032
        %v1595 = vunpack.c.l.b16 %v1033
        %v1596 = vunpack.c.h.b16 %v1033
        %v1597 = vunpack.c.l.b16 %v1034
        %v1598 = vunpack.c.h.b16 %v1034
        %v1599 = vunpack.c.l.b16 %v1035
        %v1600 = vunpack.c.h.b16 %v1035
        %v1601 = vunpack.c.l.b16 %v1036
        %v1602 = vunpack.c.h.b16 %v1036
        %v1603 = vunpack.c.l.b16 %v1037
        %v1604 = vunpack.c.h.b16 %v1037
        %v1605 = vunpack.c.l.b16 %v1038
        %v1606 = vunpack.c.h.b16 %v1038
        %v1607 = vunpack.c.l.b16 %v1039
        %v1608 = vunpack.c.h.b16 %v1039
        %v1609 = vunpack.c.l.b16 %v1040
        %v1610 = vunpack.c.h.b16 %v1040
        %v1611 = vunpack.c.l.b16 %v1041
        %v1612 = vunpack.c.h.b16 %v1041
        %v1613 = vunpack.c.l.b16 %v1042
        %v1614 = vunpack.c.h.b16 %v1042
        %v1615 = vunpack.c.l.b16 %v1043
        %v1616 = vunpack.c.h.b16 %v1043
        %v1617 = vunpack.c.l.b16 %v1044
        %v1618 = vunpack.c.h.b16 %v1044
        %v1619 = vunpack.c.l.b16 %v1045
        %v1620 = vunpack.c.h.b16 %v1045
        %v1621 = vunpack.c.l.b16 %v1046
        %v1622 = vunpack.c.h.b16 %v1046
        %v1623 = vunpack.c.l.b16 %v1047
        %v1624 = vunpack.c.h.b16 %v1047
        %v1625 = vunpack.c.l.b16 %v1048
        %v1626 = vunpack.c.h.b16 %v1048
        %v1627 = vunpack.c.l.b16 %v1049
        %v1628 = vunpack.c.h.b16 %v1049
        %v1629 = vunpack.c.l.b16 %v1050
        %v1630 = vunpack.c.h.b16 %v1050
        %v1631 = vunpack.c.l.b16 %v1051
        %v1632 = vunpack.c.h.b16 %v1051
        %v1633 = vunpack.c.l.b16 %v1052
        %v1634 = vunpack.c.h.b16 %v1052
        %v1635 = vunpack.c.l.b16 %v1053
        %v1636 = vunpack.c.h.b16 %v1053
        %v1637 = vunpack.c.l.b16 %v1054
        %v1638 = vunpack.c.h.b16 %v1054
        %v1639 = vunpack.c.l.b16 %v1055
        %v1640 = vunpack.c.h.b16 %v1055
        %v1641 = vunpack.c.l.b16 %v1056
        %v1642 = vunpack.c.h.b16 %v1056
        %v1643 = vunpack.c.l.b16 %v1057
        %v1644 = vunpack.c.h.b16 %v1057
        %v1645 = vunpack.c.l.b16 %v1058
        %v1646 = vunpack.c.h.b16 %v1058
        %v1647 = vunpack.c.l.b16 %v1059
        %v1648 = vunpack.c.h.b16 %v1059
        %v1649 = vunpack.c.l.b16 %v1060
        %v1650 = vunpack.c.h.b16 %v1060
        %v1651 = vunpack.c.l.b16 %v1061
        %v1652 = vunpack.c.h.b16 %v1061
        %v1653 = vunpack.c.l.b16 %v1062
        %v1654 = vunpack.c.h.b16 %v1062
        %v1655 = vunpack.c.l.b16 %v1063
        %v1656 = vunpack.c.h.b16 %v1063
        %v1657 = vunpack.c.l.b16 %v1064
        %v1658 = vunpack.c.h.b16 %v1064
        %v1659 = vunpack.c.l.b16 %v1065
        %v1660 = vunpack.c.h.b16 %v1065
        %v1661 = vunpack.c.l.b16 %v1066
        %v1662 = vunpack.c.h.b16 %v1066
        %v1663 = vunpack.c.l.b16 %v1067
        %v1664 = vunpack.c.h.b16 %v1067
        %v1665 = vunpack.c.l.b16 %v1068
        %v1666 = vunpack.c.h.b16 %v1068
        %v1667 = vunpack.c.l.b16 %v1069
        %v1668 = vunpack.c.h.b16 %v1069
        %v1669 = vunpack.c.l.b16 %v1070
        %v1670 = vunpack.c.h.b16 %v1070
        %v1671 = vunpack.c.l.b16 %v1071
        %v1672 = vunpack.c.h.b16 %v1071
        %v1673 = vunpack.c.l.b16 %v1072
        %v1674 = vunpack.c.h.b16 %v1072
        %v1675 = vunpack.c.l.b16 %v1073
        %v1676 = vunpack.c.h.b16 %v1073
        %v1677 = vunpack.c.l.b16 %v1074
        %v1678 = vunpack.c.h.b16 %v1074
        %v1679 = vunpack.c.l.b16 %v1075
        %v1680 = vunpack.c.h.b16 %v1075
        %v1681 = vunpack.c.l.b16 %v1076
        %v1682 = vunpack.c.h.b16 %v1076
        %v1683 = vunpack.c.l.b16 %v1077
        %v1684 = vunpack.c.h.b16 %v1077
        %v1685 = vunpack.c.l.b16 %v1078
        %v1686 = vunpack.c.h.b16 %v1078
        %v1687 = vunpack.c.l.b16 %v1079
        %v1688 = vunpack.c.h.b16 %v1079
        %v1689 = vunpack.c.l.b16 %v1080
        %v1690 = vunpack.c.h.b16 %v1080
        %v1691 = vunpack.c.l.b16 %v1081
        %v1692 = vunpack.c.h.b16 %v1081
        %v1693 = vunpack.c.l.b16 %v1082
        %v1694 = vunpack.c.h.b16 %v1082
        %v1695 = vunpack.c.l.b16 %v1083
        %v1696 = vunpack.c.h.b16 %v1083
        %v1697 = vunpack.c.l.b16 %v1084
        %v1698 = vunpack.c.h.b16 %v1084
        %v1699 = vunpack.c.l.b16 %v1085
        %v1700 = vunpack.c.h.b16 %v1085
        %v1701 = vunpack.c.l.b16 %v1086
        %v1702 = vunpack.c.h.b16 %v1086
        %v1703 = vunpack.c.l.b16 %v1087
        %v1704 = vunpack.c.h.b16 %v1087
        %v1705 = vunpack.c.l.b16 %v1088
        %v1706 = vunpack.c.h.b16 %v1088
        %v1707 = vunpack.c.l.b16 %v1089
        %v1708 = vunpack.c.h.b16 %v1089
        %v1709 = vunpack.c.l.b16 %v1090
        %v1710 = vunpack.c.h.b16 %v1090
        %v1711 = vunpack.c.l.b16 %v1091
        %v1712 = vunpack.c.h.b16 %v1091
        %v1713 = vunpack.c.l.b16 %v1092
        %v1714 = vunpack.c.h.b16 %v1092
        %v1715 = vunpack.c.l.b16 %v1093
        %v1716 = vunpack.c.h.b16 %v1093
        %v1717 = vunpack.c.l.b16 %v1094
        %v1718 = vunpack.c.h.b16 %v1094
        %v1719 = vunpack.c.l.b16 %v1095
        %v1720 = vunpack.c.h.b16 %v1095
        %v1721 = vunpack.c.l.b16 %v1096
        %v1722 = vunpack.c.h.b16 %v1096
        %v1723 = vunpack.c.l.b16 %v1097
        %v1724 = vunpack.c.h.b16 %v1097
        %v1725 = vunpack.c.l.b16 %v1098
        %v1726 = vunpack.c.h.b16 %v1098
        %v1727 = vunpack.c.l.b16 %v1099
        %v1728 = vunpack.c.h.b16 %v1099
        %v1729 = vunpack.c.l.b16 %v1100
        %v1730 = vunpack.c.h.b16 %v1100
        %v1731 = vunpack.c.l.b16 %v1101
        %v1732 = vunpack.c.h.b16 %v1101
        %v1733 = vunpack.c.l.b16 %v1102
        %v1734 = vunpack.c.h.b16 %v1102
        %v1735 = vunpack.c.l.b16 %v1103
        %v1736 = vunpack.c.h.b16 %v1103
        %v1737 = vunpack.c.l.b16 %v1104
        %v1738 = vunpack.c.h.b16 %v1104
        %v1739 = vunpack.c.l.b16 %v1105
        %v1740 = vunpack.c.h.b16 %v1105
        %v1741 = vunpack.c.l.b16 %v1106
        %v1742 = vunpack.c.h.b16 %v1106
        %v1743 = vunpack.c.l.b16 %v1107
        %v1744 = vunpack.c.h.b16 %v1107
        %v1745 = vunpack.c.l.b16 %v1108
        %v1746 = vunpack.c.h.b16 %v1108
        %v1747 = vunpack.c.l.b16 %v1109
        %v1748 = vunpack.c.h.b16 %v1109
        %v1749 = vunpack.c.l.b16 %v1110
        %v1750 = vunpack.c.h.b16 %v1110
        %v1751 = vunpack.c.l.b16 %v1111
        %v1752 = vunpack.c.h.b16 %v1111
        %v1753 = vunpack.c.l.b16 %v1112
        %v1754 = vunpack.c.h.b16 %v1112
        %v1755 = vunpack.c.l.b16 %v1113
        %v1756 = vunpack.c.h.b16 %v1113
        %v1757 = vunpack.c.l.b16 %v1114
        %v1758 = vunpack.c.h.b16 %v1114
        %v1759 = vunpack.c.l.b16 %v1115
        %v1760 = vunpack.c.h.b16 %v1115
        %v1761 = vunpack.c.l.b16 %v1116
        %v1762 = vunpack.c.h.b16 %v1116
        %v1763 = vunpack.c.l.b16 %v1117
        %v1764 = vunpack.c.h.b16 %v1117
        %v1765 = vunpack.c.l.b16 %v1118
        %v1766 = vunpack.c.h.b16 %v1118
        %v1767 = vunpack.c.l.b16 %v1119
        %v1768 = vunpack.c.h.b16 %v1119
        %v1769 = vunpack.c.l.b16 %v1120
        %v1770 = vunpack.c.h.b16 %v1120
        %v1771 = vunpack.c.l.b16 %v1121
        %v1772 = vunpack.c.h.b16 %v1121
        %v1773 = vunpack.c.l.b16 %v1122
        %v1774 = vunpack.c.h.b16 %v1122
        %v1775 = vunpack.c.l.b16 %v1123
        %v1776 = vunpack.c.h.b16 %v1123
        %v1777 = vunpack.c.l.b16 %v1124
        %v1778 = vunpack.c.h.b16 %v1124
        %v1779 = vunpack.c.l.b16 %v1125
        %v1780 = vunpack.c.h.b16 %v1125
        %v1781 = vunpack.c.l.b16 %v1126
        %v1782 = vunpack.c.h.b16 %v1126
        %v1783 = vunpack.c.l.b16 %v1127
        %v1784 = vunpack.c.h.b16 %v1127
        %v1785 = vunpack.c.l.b16 %v1128
        %v1786 = vunpack.c.h.b16 %v1128
        %v1787 = vunpack.c.l.b16 %v1129
        %v1788 = vunpack.c.h.b16 %v1129
        %v1789 = vunpack.c.l.b16 %v1130
        %v1790 = vunpack.c.h.b16 %v1130
        %v1791 = vunpack.c.l.b16 %v1131
        %v1792 = vunpack.c.h.b16 %v1131
        %v1793 = vunpack.c.l.b16 %v1132
        %v1794 = vunpack.c.h.b16 %v1132
        %v1795 = vunpack.c.l.b16 %v1133
        %v1796 = vunpack.c.h.b16 %v1133
        %v1797 = vunpack.c.l.b16 %v1134
        %v1798 = vunpack.c.h.b16 %v1134
        %v1799 = vunpack.c.l.b16 %v1135
        %v1800 = vunpack.c.h.b16 %v1135
        %v1801 = vunpack.c.l.b16 %v1136
        %v1802 = vunpack.c.h.b16 %v1136
        %v1803 = vunpack.c.l.b16 %v1137
        %v1804 = vunpack.c.h.b16 %v1137
        %v1805 = vunpack.c.l.b16 %v1138
        %v1806 = vunpack.c.h.b16 %v1138
        %v1807 = vunpack.c.l.b16 %v1139
        %v1808 = vunpack.c.h.b16 %v1139
        %v1809 = vunpack.c.l.b16 %v1140
        %v1810 = vunpack.c.h.b16 %v1140
        %v1811 = vunpack.c.l.b16 %v1141
        %v1812 = vunpack.c.h.b16 %v1141
        %v1813 = vunpack.c.l.b16 %v1142
        %v1814 = vunpack.c.h.b16 %v1142
        %v1815 = vunpack.c.l.b16 %v1143
        %v1816 = vunpack.c.h.b16 %v1143
        %v1817 = vunpack.c.l.b16 %v1144
        %v1818 = vunpack.c.h.b16 %v1144
        %v1819 = vunpack.c.l.b16 %v1145
        %v1820 = vunpack.c.h.b16 %v1145
        %v1821 = vunpack.c.l.b16 %v1146
        %v1822 = vunpack.c.h.b16 %v1146
        %v1823 = vunpack.c.l.b16 %v1147
        %v1824 = vunpack.c.h.b16 %v1147
        %v1825 = vunpack.c.l.b16 %v1148
        %v1826 = vunpack.c.h.b16 %v1148
        %v1827 = vunpack.c.l.b16 %v1149
        %v1828 = vunpack.c.h.b16 %v1149
        %v1829 = vunpack.c.l.b16 %v1150
        %v1830 = vunpack.c.h.b16 %v1150
        %v1831 = vunpack.c.l.b16 %v1151
        %v1832 = vunpack.c.h.b16 %v1151
        %v1833 = vunpack.c.l.b16 %v1152
        %v1834 = vunpack.c.h.b16 %v1152
        %v1835 = vunpack.c.l.b16 %v1153
        %v1836 = vunpack.c.h.b16 %v1153
        %v1837 = vunpack.c.l.b16 %v1154
        %v1838 = vunpack.c.h.b16 %v1154
        %v1839 = vunpack.c.l.b16 %v1155
        %v1840 = vunpack.c.h.b16 %v1155
        %v1841 = vunpack.c.l.b16 %v1156
        %v1842 = vunpack.c.h.b16 %v1156
        %v1843 = vunpack.c.l.b16 %v1157
        %v1844 = vunpack.c.h.b16 %v1157
        %v1845 = vunpack.c.l.b16 %v1158
        %v1846 = vunpack.c.h.b16 %v1158
        %v1847 = vunpack.c.l.b16 %v1159
        %v1848 = vunpack.c.h.b16 %v1159
        %v1849 = vunpack.c.l.b16 %v1160
        %v1850 = vunpack.c.h.b16 %v1160
        %v1851 = vunpack.c.l.b16 %v1161
        %v1852 = vunpack.c.h.b16 %v1161
        %v1853 = vunpack.c.l.b16 %v1162
        %v1854 = vunpack.c.h.b16 %v1162
        %v1855 = vunpack.c.l.b16 %v1163
        %v1856 = vunpack.c.h.b16 %v1163
        %v1857 = vunpack.c.l.b16 %v1164
        %v1858 = vunpack.c.h.b16 %v1164
        %v1859 = vunpack.c.l.b16 %v1165
        %v1860 = vunpack.c.h.b16 %v1165
        %v1861 = vunpack.c.l.b16 %v1166
        %v1862 = vunpack.c.h.b16 %v1166
        %v1863 = vunpack.c.l.b16 %v1167
        %v1864 = vunpack.c.h.b16 %v1167
        %v1865 = vunpack.c.l.b16 %v1168
        %v1866 = vunpack.c.h.b16 %v1168
        %v1867 = vunpack.c.l.b16 %v1169
        %v1868 = vunpack.c.h.b16 %v1169
        %v1869 = vunpack.c.l.b16 %v1170
        %v1870 = vunpack.c.h.b16 %v1170
        %v1871 = vunpack.c.l.b16 %v1171
        %v1872 = vunpack.c.h.b16 %v1171
        %v1873 = vunpack.c.l.b16 %v1172
        %v1874 = vunpack.c.h.b16 %v1172
        %v1875 = vunpack.c.l.b16 %v1173
        %v1876 = vunpack.c.h.b16 %v1173
        %v1877 = vunpack.c.l.b16 %v1174
        %v1878 = vunpack.c.h.b16 %v1174
        %v1879 = vunpack.c.l.b16 %v1175
        %v1880 = vunpack.c.h.b16 %v1175
        %v1881 = vunpack.c.l.b16 %v1176
        %v1882 = vunpack.c.h.b16 %v1176
        %v1883 = vunpack.c.l.b16 %v1177
        %v1884 = vunpack.c.h.b16 %v1177
        %v1885 = vunpack.c.l.b16 %v1178
        %v1886 = vunpack.c.h.b16 %v1178
        %v1887 = vunpack.c.l.b16 %v1179
        %v1888 = vunpack.c.h.b16 %v1179
        %v1889 = vunpack.c.l.b16 %v1180
        %v1890 = vunpack.c.h.b16 %v1180
        %v1891 = vunpack.c.l.b16 %v1181
        %v1892 = vunpack.c.h.b16 %v1181
        %v1893 = vunpack.c.l.b16 %v1182
        %v1894 = vunpack.c.h.b16 %v1182
        %v1895 = vunpack.c.l.b16 %v1183
        %v1896 = vunpack.c.h.b16 %v1183
        %v1897 = vunpack.c.l.b16 %v1184
        %v1898 = vunpack.c.h.b16 %v1184
        %v1899 = vunpack.c.l.b16 %v1185
        %v1900 = vunpack.c.h.b16 %v1185
        %v1901 = vunpack.c.l.b16 %v1186
        %v1902 = vunpack.c.h.b16 %v1186
        %v1903 = vunpack.c.l.b16 %v1187
        %v1904 = vunpack.c.h.b16 %v1187
        %v1905 = vunpack.c.l.b16 %v1188
        %v1906 = vunpack.c.h.b16 %v1188
        %v1907 = vunpack.c.l.b16 %v1189
        %v1908 = vunpack.c.h.b16 %v1189
        %v1909 = vunpack.c.l.b16 %v1190
        %v1910 = vunpack.c.h.b16 %v1190
        %v1911 = vunpack.c.l.b16 %v1191
        %v1912 = vunpack.c.h.b16 %v1191
        %v1913 = vunpack.c.l.b16 %v1192
        %v1914 = vunpack.c.h.b16 %v1192
        %v1915 = vunpack.c.l.b16 %v1193
        %v1916 = vunpack.c.h.b16 %v1193
        %v1917 = vunpack.c.l.b16 %v1194
        %v1918 = vunpack.c.h.b16 %v1194
        %v1919 = vunpack.c.l.b16 %v1195
        %v1920 = vunpack.c.h.b16 %v1195
        %v1921 = vunpack.c.l.b16 %v1196
        %v1922 = vunpack.c.h.b16 %v1196
        %v1923 = vunpack.c.l.b16 %v1197
        %v1924 = vunpack.c.h.b16 %v1197
        %v1925 = vunpack.c.l.b16 %v1198
        %v1926 = vunpack.c.h.b16 %v1198
        %v1927 = vunpack.c.l.b16 %v1199
        %v1928 = vunpack.c.h.b16 %v1199
        %v1929 = vunpack.c.l.b16 %v1200
        %v1930 = vunpack.c.h.b16 %v1200
        %v1931 = vunpack.c.l.b16 %v1201
        %v1932 = vunpack.c.h.b16 %v1201
        %v1933 = vunpack.c.l.b16 %v1202
        %v1934 = vunpack.c.h.b16 %v1202
        %v1935 = vunpack.c.l.b16 %v1203
        %v1936 = vunpack.c.h.b16 %v1203
        %v1937 = vunpack.c.l.b16 %v1204
        %v1938 = vunpack.c.h.b16 %v1204
        %v1939 = vunpack.c.l.b16 %v1205
        %v1940 = vunpack.c.h.b16 %v1205
        %v1941 = vunpack.c.l.b16 %v1206
        %v1942 = vunpack.c.h.b16 %v1206
        %v1943 = vunpack.c.l.b16 %v1207
        %v1944 = vunpack.c.h.b16 %v1207
        %v1945 = vunpack.c.l.b16 %v1208
        %v1946 = vunpack.c.h.b16 %v1208
        %v1947 = vunpack.c.l.b16 %v1209
        %v1948 = vunpack.c.h.b16 %v1209
        %v1949 = vunpack.c.l.b16 %v1210
        %v1950 = vunpack.c.h.b16 %v1210
        %v1951 = vunpack.c.l.b16 %v1211
        %v1952 = vunpack.c.h.b16 %v1211
        %v1953 = vunpack.c.l.b16 %v1212
        %v1954 = vunpack.c.h.b16 %v1212
        %v1955 = vunpack.c.l.b16 %v1213
        %v1956 = vunpack.c.h.b16 %v1213
        %v1957 = vunpack.c.l.b16 %v1214
        %v1958 = vunpack.c.h.b16 %v1214
        %v1959 = vunpack.c.l.b16 %v1215
        %v1960 = vunpack.c.h.b16 %v1215
        %v1961 = vunpack.c.l.b16 %v1216
        %v1962 = vunpack.c.h.b16 %v1216
        %v1963 = vunpack.c.l.b16 %v1217
        %v1964 = vunpack.c.h.b16 %v1217
        %v1965 = vunpack.c.l.b16 %v1218
        %v1966 = vunpack.c.h.b16 %v1218
        %v1967 = vunpack.c.l.b16 %v1219
        %v1968 = vunpack.c.h.b16 %v1219
        %v1969 = vunpack.c.l.b16 %v1220
        %v1970 = vunpack.c.h.b16 %v1220
        %v1971 = vunpack.c.l.b16 %v1221
        %v1972 = vunpack.c.h.b16 %v1221
        %v1973 = vunpack.c.l.b16 %v1222
        %v1974 = vunpack.c.h.b16 %v1222
        %v1975 = vunpack.c.l.b16 %v1223
        %v1976 = vunpack.c.h.b16 %v1223
        %v1977 = vunpack.c.l.b16 %v1224
        %v1978 = vunpack.c.h.b16 %v1224
        %v1979 = vunpack.c.l.b16 %v1225
        %v1980 = vunpack.c.h.b16 %v1225
        %v1981 = vunpack.c.l.b16 %v1226
        %v1982 = vunpack.c.h.b16 %v1226
        %v1983 = vunpack.c.l.b16 %v1227
        %v1984 = vunpack.c.h.b16 %v1227
        %v1985 = vunpack.c.l.b16 %v1228
        %v1986 = vunpack.c.h.b16 %v1228
        %v1987 = vunpack.c.l.b16 %v1229
        %v1988 = vunpack.c.h.b16 %v1229
        %v1989 = vunpack.c.l.b16 %v1230
        %v1990 = vunpack.c.h.b16 %v1230
        %v1991 = vunpack.c.l.b16 %v1231
        %v1992 = vunpack.c.h.b16 %v1231
        %v1993 = vunpack.c.l.b16 %v1232
        %v1994 = vunpack.c.h.b16 %v1232
        %v1995 = vunpack.c.l.b16 %v1233
        %v1996 = vunpack.c.h.b16 %v1233
        %v1997 = vunpack.c.l.b16 %v1234
        %v1998 = vunpack.c.h.b16 %v1234
        %v1999 = vunpack.c.l.b16 %v1235
        %v2000 = vunpack.c.h.b16 %v1235
        %v2001 = vunpack.c.l.b16 %v1236
        %v2002 = vunpack.c.h.b16 %v1236
        %v2003 = vunpack.c.l.b16 %v1237
        %v2004 = vunpack.c.h.b16 %v1237
        %v2005 = vunpack.c.l.b16 %v1238
        %v2006 = vunpack.c.h.b16 %v1238
        %v2007 = vpack.c.b16 %v1527, %v1495
        %v2008 = vpack.c.b16 %v1528, %v1496
        %v2009 = vpack.c.b16 %v1529, %v1497
        %v2010 = vpack.c.b16 %v1530, %v1498
        %v2011 = vpack.c.b16 %v1531, %v1499
        %v2012 = vpack.c.b16 %v1532, %v1500
        %v2013 = vpack.c.b16 %v1533, %v1501
        %v2014 = vpack.c.b16 %v1534, %v1502
        %v2015 = vpack.c.b16 %v1535, %v1503
        %v2016 = vpack.c.b16 %v1536, %v1504
        %v2017 = vpack.c.b16 %v1537, %v1505
        %v2018 = vpack.c.b16 %v1538, %v1506
        %v2019 = vpack.c.b16 %v1539, %v1507
        %v2020 = vpack.c.b16 %v1540, %v1508
        %v2021 = vpack.c.b16 %v1541, %v1509
        %v2022 = vpack.c.b16 %v1542, %v1510
        %v2023 = vpack.c.b16 %v1543, %v1511
        %v2024 = vpack.c.b16 %v1544, %v1512
        %v2025 = vpack.c.b16 %v1545, %v1513
        %v2026 = vpack.c.b16 %v1546, %v1514
        %v2027 = vpack.c.b16 %v1547, %v1515
        %v2028 = vpack.c.b16 %v1548, %v1516
        %v2029 = vpack.c.b16 %v1549, %v1517
        %v2030 = vpack.c.b16 %v1550, %v1518
        %v2031 = vpack.c.b16 %v1551, %v1519
        %v2032 = vpack.c.b16 %v1552, %v1520
        %v2033 = vpack.c.b16 %v1553, %v1521
        %v2034 = vpack.c.b16 %v1554, %v1522
        %v2035 = vpack.c.b16 %v1555, %v1523
        %v2036 = vpack.c.b16 %v1556, %v1524
        %v2037 = vpack.c.b16 %v1557, %v1525
        %v2038 = vpack.c.b16 %v1558, %v1526
        %v2039 = vpack.c.b16 %v1591, %v1559
        %v2040 = vpack.c.b16 %v1592, %v1560
        %v2041 = vpack.c.b16 %v1593, %v1561
        %v2042 = vpack.c.b16 %v1594, %v1562
        %v2043 = vpack.c.b16 %v1595, %v1563
        %v2044 = vpack.c.b16 %v1596, %v1564
        %v2045 = vpack.c.b16 %v1597, %v1565
        %v2046 = vpack.c.b16 %v1598, %v1566
        %v2047 = vpack.c.b16 %v1599, %v1567
        %v2048 = vpack.c.b16 %v1600, %v1568
        %v2049 = vpack.c.b16 %v1601, %v1569
        %v2050 = vpack.c.b16 %v1602, %v1570
        %v2051 = vpack.c.b16 %v1603, %v1571
        %v2052 = vpack.c.b16 %v1604, %v1572
        %v2053 = vpack.c.b16 %v1605, %v1573
        %v2054 = vpack.c.b16 %v1606, %v1574
        %v2055 = vpack.c.b16 %v1607, %v1575
        %v2056 = vpack.c.b16 %v1608, %v1576
        %v2057 = vpack.c.b16 %v1609, %v1577
        %v2058 = vpack.c.b16 %v1610, %v1578
        %v2059 = vpack.c.b16 %v1611, %v1579
        %v2060 = vpack.c.b16 %v1612, %v1580
        %v2061 = vpack.c.b16 %v1613, %v1581
        %v2062 = vpack.c.b16 %v1614, %v1582
        %v2063 = vpack.c.b16 %v1615, %v1583
        %v2064 = vpack.c.b16 %v1616, %v1584
        %v2065 = vpack.c.b16 %v1617, %v1585
        %v2066 = vpack.c.b16 %v1618, %v1586
        %v2067 = vpack.c.b16 %v1619, %v1587
        %v2068 = vpack.c.b16 %v1620, %v1588
        %v2069 = vpack.c.b16 %v1621, %v1589
        %v2070 = vpack.c.b16 %v1622, %v1590
        %v2071 = vpack.c.b16 %v1655, %v1623
        %v2072 = vpack.c.b16 %v1656, %v1624
        %v2073 = vpack.c.b16 %v1657, %v1625
        %v2074 = vpack.c.b16 %v1658, %v1626
        %v2075 = vpack.c.b16 %v1659, %v1627
        %v2076 = vpack.c.b16 %v1660, %v1628
        %v2077 = vpack.c.b16 %v1661, %v1629
        %v2078 = vpack.c.b16 %v1662, %v1630
        %v2079 = vpack.c.b16 %v1663, %v1631
        %v2080 = vpack.c.b16 %v1664, %v1632
        %v2081 = vpack.c.b16 %v1665, %v1633
        %v2082 = vpack.c.b16 %v1666, %v1634
        %v2083 = vpack.c.b16 %v1667, %v1635
        %v2084 = vpack.c.b16 %v1668, %v1636
        %v2085 = vpack.c.b16 %v1669, %v1637
        %v2086 = vpack.c.b16 %v1670, %v1638
        %v2087 = vpack.c.b16 %v1671, %v1639
        %v2088 = vpack.c.b16 %v1672, %v1640
        %v2089 = vpack.c.b16 %v1673, %v1641
        %v2090 = vpack.c.b16 %v1674, %v1642
        %v2091 = vpack.c.b16 %v1675, %v1643
        %v2092 = vpack.c.b16 %v1676, %v1644
        %v2093 = vpack.c.b16 %v1677, %v1645
        %v2094 = vpack.c.b16 %v1678, %v1646
        %v2095 = vpack.c.b16 %v1679, %v1647
        %v2096 = vpack.c.b16 %v1680, %v1648
        %v2097 = vpack.c.b16 %v1681, %v1649
        %v2098 = vpack.c.b16 %v1682, %v1650
        %v2099 = vpack.c.b16 %v1683, %v1651
        %v2100 = vpack.c.b16 %v1684, %v1652
        %v2101 = vpack.c.b16 %v1685, %v1653
        %v2102 = vpack.c.b16 %v1686, %v1654
        %v2103 = vpack.c.b16 %v1719, %v1687
        %v2104 = vpack.c.b16 %v1720, %v1688
        %v2105 = vpack.c.b16 %v1721, %v1689
        %v2106 = vpack.c.b16 %v1722, %v1690
        %v2107 = vpack.c.b16 %v1723, %v1691
        %v2108 = vpack.c.b16 %v1724, %v1692
        %v2109 = vpack.c.b16 %v1725, %v1693
        %v2110 = vpack.c.b16 %v1726, %v1694
        %v2111 = vpack.c.b16 %v1727, %v1695
        %v2112 = vpack.c.b16 %v1728, %v1696
        %v2113 = vpack.c.b16 %v1729, %v1697
        %v2114 = vpack.c.b16 %v1730, %v1698
        %v2115 = vpack.c.b16 %v1731, %v1699
        %v2116 = vpack.c.b16 %v1732, %v1700
        %v2117 = vpack.c.b16 %v1733, %v1701
        %v2118 = vpack.c.b16 %v1734, %v1702
        %v2119 = vpack.c.b16 %v1735, %v1703
        %v2120 = vpack.c.b16 %v1736, %v1704
        %v2121 = vpack.c.b16 %v1737, %v1705
        %v2122 = vpack.c.b16 %v1738, %v1706
        %v2123 = vpack.c.b16 %v1739, %v1707
        %v2124 = vpack.c.b16 %v1740, %v1708
        %v2125 = vpack.c.b16 %v1741, %v1709
        %v2126 = vpack.c.b16 %v1742, %v1710
        %v2127 = vpack.c.b16 %v1743, %v1711
        %v2128 = vpack.c.b16 %v1744, %v1712
        %v2129 = vpack.c.b16 %v1745, %v1713
        %v2130 = vpack.c.b16 %v1746, %v1714
        %v2131 = vpack.c.b16 %v1747, %v1715
        %v2132 = vpack.c.b16 %v1748, %v1716
        %v2133 = vpack.c.b16 %v1749, %v1717
        %v2134 = vpack.c.b16 %v1750, %v1718
        %v2135 = vpack.c.b16 %v1783, %v1751
        %v2136 = vpack.c.b16 %v1784, %v1752
        %v2137 = vpack.c.b16 %v1785, %v1753
        %v2138 = vpack.c.b16 %v1786, %v1754
        %v2139 = vpack.c.b16 %v1787, %v1755
        %v2140 = vpack.c.b16 %v1788, %v1756
        %v2141 = vpack.c.b16 %v1789, %v1757
        %v2142 = vpack.c.b16 %v1790, %v1758
        %v2143 = vpack.c.b16 %v1791, %v1759
        %v2144 = vpack.c.b16 %v1792, %v1760
        %v2145 = vpack.c.b16 %v1793, %v1761
        %v2146 = vpack.c.b16 %v1794, %v1762
        %v2147 = vpack.c.b16 %v1795, %v1763
        %v2148 = vpack.c.b16 %v1796, %v1764
        %v2149 = vpack.c.b16 %v1797, %v1765
        %v2150 = vpack.c.b16 %v1798, %v1766
        %v2151 = vpack.c.b16 %v1799, %v1767
        %v2152 = vpack.c.b16 %v1800, %v1768
        %v2153 = vpack.c.b16 %v1801, %v1769
        %v2154 = vpack.c.b16 %v1802, %v1770
        %v2155 = vpack.c.b16 %v1803, %v1771
        %v2156 = vpack.c.b16 %v1804, %v1772
        %v2157 = vpack.c.b16 %v1805, %v1773
        %v2158 = vpack.c.b16 %v1806, %v1774
        %v2159 = vpack.c.b16 %v1807, %v1775
        %v2160 = vpack.c.b16 %v1808, %v1776
        %v2161 = vpack.c.b16 %v1809, %v1777
        %v2162 = vpack.c.b16 %v1810, %v1778
        %v2163 = vpack.c.b16 %v1811, %v1779
        %v2164 = vpack.c.b16 %v1812, %v1780
        %v2165 = vpack.c.b16 %v1813, %v1781
        %v2166 = vpack.c.b16 %v1814, %v1782
        %v2167 = vpack.c.b16 %v1847, %v1815
        %v2168 = vpack.c.b16 %v1848, %v1816
        %v2169 = vpack.c.b16 %v1849, %v1817
        %v2170 = vpack.c.b16 %v1850, %v1818
        %v2171 = vpack.c.b16 %v1851, %v1819
        %v2172 = vpack.c.b16 %v1852, %v1820
        %v2173 = vpack.c.b16 %v1853, %v1821
        %v2174 = vpack.c.b16 %v1854, %v1822
        %v2175 = vpack.c.b16 %v1855, %v1823
        %v2176 = vpack.c.b16 %v1856, %v1824
        %v2177 = vpack.c.b16 %v1857, %v1825
        %v2178 = vpack.c.b16 %v1858, %v1826
        %v2179 = vpack.c.b16 %v1859, %v1827
        %v2180 = vpack.c.b16 %v1860, %v1828
        %v2181 = vpack.c.b16 %v1861, %v1829
        %v2182 = vpack.c.b16 %v1862, %v1830
        %v2183 = vpack.c.b16 %v1863, %v1831
        %v2184 = vpack.c.b16 %v1864, %v1832
        %v2185 = vpack.c.b16 %v1865, %v1833
        %v2186 = vpack.c.b16 %v1866, %v1834
        %v2187 = vpack.c.b16 %v1867, %v1835
        %v2188 = vpack.c.b16 %v1868, %v1836
        %v2189 = vpack.c.b16 %v1869, %v1837
        %v2190 = vpack.c.b16 %v1870, %v1838
        %v2191 = vpack.c.b16 %v1871, %v1839
        %v2192 = vpack.c.b16 %v1872, %v1840
        %v2193 = vpack.c.b16 %v1873, %v1841
        %v2194 = vpack.c.b16 %v1874, %v1842
        %v2195 = vpack.c.b16 %v1875, %v1843
        %v2196 = vpack.c.b16 %v1876, %v1844
        %v2197 = vpack.c.b16 %v1877, %v1845
        %v2198 = vpack.c.b16 %v1878, %v1846
        %v2199 = vpack.c.b16 %v1911, %v1879
        %v2200 = vpack.c.b16 %v1912, %v1880
        %v2201 = vpack.c.b16 %v1913, %v1881
        %v2202 = vpack.c.b16 %v1914, %v1882
        %v2203 = vpack.c.b16 %v1915, %v1883
        %v2204 = vpack.c.b16 %v1916, %v1884
        %v2205 = vpack.c.b16 %v1917, %v1885
        %v2206 = vpack.c.b16 %v1918, %v1886
        %v2207 = vpack.c.b16 %v1919, %v1887
        %v2208 = vpack.c.b16 %v1920, %v1888
        %v2209 = vpack.c.b16 %v1921, %v1889
        %v2210 = vpack.c.b16 %v1922, %v1890
        %v2211 = vpack.c.b16 %v1923, %v1891
        %v2212 = vpack.c.b16 %v1924, %v1892
        %v2213 = vpack.c.b16 %v1925, %v1893
        %v2214 = vpack.c.b16 %v1926, %v1894
        %v2215 = vpack.c.b16 %v1927, %v1895
        %v2216 = vpack.c.b16 %v1928, %v1896
        %v2217 = vpack.c.b16 %v1929, %v1897
        %v2218 = vpack.c.b16 %v1930, %v1898
        %v2219 = vpack.c.b16 %v1931, %v1899
        %v2220 = vpack.c.b16 %v1932, %v1900
        %v2221 = vpack.c.b16 %v1933, %v1901
        %v2222 = vpack.c.b16 %v1934, %v1902
        %v2223 = vpack.c.b16 %v1935, %v1903
        %v2224 = vpack.c.b16 %v1936, %v1904
        %v2225 = vpack.c.b16 %v1937, %v1905
        %v2226 = vpack.c.b16 %v1938, %v1906
        %v2227 = vpack.c.b16 %v1939, %v1907
        %v2228 = vpack.c.b16 %v1940, %v1908
        %v2229 = vpack.c.b16 %v1941, %v1909
        %v2230 = vpack.c.b16 %v1942, %v1910
        %v2231 = vpack.c.b16 %v1975, %v1943
        %v2232 = vpack.c.b16 %v1976, %v1944
        %v2233 = vpack.c.b16 %v1977, %v1945
        %v2234 = vpack.c.b16 %v1978, %v1946
        %v2235 = vpack.c.b16 %v1979, %v1947
        %v2236 = vpack.c.b16 %v1980, %v1948
        %v2237 = vpack.c.b16 %v1981, %v1949
        %v2238 = vpack.c.b16 %v1982, %v1950
        %v2239 = vpack.c.b16 %v1983, %v1951
        %v2240 = vpack.c.b16 %v1984, %v1952
        %v2241 = vpack.c.b16 %v1985, %v1953
        %v2242 = vpack.c.b16 %v1986, %v1954
        %v2243 = vpack.c.b16 %v1987, %v1955
        %v2244 = vpack.c.b16 %v1988, %v1956
        %v2245 = vpack.c.b16 %v1989, %v1957
        %v2246 = vpack.c.b16 %v1990, %v1958
        %v2247 = vpack.c.b16 %v1991, %v1959
        %v2248 = vpack.c.b16 %v1992, %v1960
        %v2249 = vpack.c.b16 %v1993, %v1961
        %v2250 = vpack.c.b16 %v1994, %v1962
        %v2251 = vpack.c.b16 %v1995, %v1963
        %v2252 = vpack.c.b16 %v1996, %v1964
        %v2253 = vpack.c.b16 %v1997, %v1965
        %v2254 = vpack.c.b16 %v1998, %v1966
        %v2255 = vpack.c.b16 %v1999, %v1967
        %v2256 = vpack.c.b16 %v2000, %v1968
        %v2257 = vpack.c.b16 %v2001, %v1969
        %v2258 = vpack.c.b16 %v2002, %v1970
        %v2259 = vpack.c.b16 %v2003, %v1971
        %v2260 = vpack.c.b16 %v2004, %v1972
        %v2261 = vpack.c.b16 %v2005, %v1973
        %v2262 = vpack.c.b16 %v2006, %v1974
        %2519 = vmatpush.bf16.msra.mxu0 %v2231
        %2520 = vmatpush.bf16.msra.mxu0 %v2199
        %2521 = vmatpush.bf16.msra.mxu0 %v2167
        %2522 = vmatpush.bf16.msra.mxu0 %v2135
        %2523 = vmatpush.bf16.msra.mxu0 %v2103
        %2524 = vmatpush.bf16.msra.mxu0 %v2071
        %2525 = vmatpush.bf16.msra.mxu0 %v2039
        %2526 = vmatpush.bf16.msra.mxu0 %v2007
        %2527 = vmatmul.bf16.gmra.mxu0 %v982
        %v2528 = vpop.f32.mrf.mxu0
        %v2529 = vadd.f32 0.0, %v2528
        %v2530 = vpop.f32.mrf.mxu0
        %2531 = vdwg.mxu0
        %2532 = vmatpush.bf16.msra.mxu0 %v2232
        %2533 = vmatpush.bf16.msra.mxu0 %v2200
        %2534 = vmatpush.bf16.msra.mxu0 %v2168
        %2535 = vmatpush.bf16.msra.mxu0 %v2136
        %2536 = vmatpush.bf16.msra.mxu0 %v2104
        %2537 = vmatpush.bf16.msra.mxu0 %v2072
        %2538 = vmatpush.bf16.msra.mxu0 %v2040
        %2539 = vmatpush.bf16.msra.mxu0 %v2008
        %2540 = vmatmul.bf16.gmra.mxu0 %v982
        %v2541 = vpop.f32.mrf.mxu0
        %v2542 = vadd.f32 0.0, %v2541
        %v2543 = vpop.f32.mrf.mxu0
        %2544 = vdwg.mxu0
        %2545 = vmatpush.bf16.msra.mxu0 %v2233
        %2546 = vmatpush.bf16.msra.mxu0 %v2201
        %2547 = vmatpush.bf16.msra.mxu0 %v2169
        %2548 = vmatpush.bf16.msra.mxu0 %v2137
        %2549 = vmatpush.bf16.msra.mxu0 %v2105
        %2550 = vmatpush.bf16.msra.mxu0 %v2073
        %2551 = vmatpush.bf16.msra.mxu0 %v2041
        %2552 = vmatpush.bf16.msra.mxu0 %v2009
        %2553 = vmatmul.bf16.gmra.mxu0 %v982
        %v2554 = vpop.f32.mrf.mxu0
        %v2555 = vadd.f32 0.0, %v2554
        %v2556 = vpop.f32.mrf.mxu0
        %2557 = vdwg.mxu0
        %2558 = vmatpush.bf16.msra.mxu0 %v2234
        %2559 = vmatpush.bf16.msra.mxu0 %v2202
        %2560 = vmatpush.bf16.msra.mxu0 %v2170
        %2561 = vmatpush.bf16.msra.mxu0 %v2138
        %2562 = vmatpush.bf16.msra.mxu0 %v2106
        %2563 = vmatpush.bf16.msra.mxu0 %v2074
        %2564 = vmatpush.bf16.msra.mxu0 %v2042
        %2565 = vmatpush.bf16.msra.mxu0 %v2010
        %2566 = vmatmul.bf16.gmra.mxu0 %v982
        %v2567 = vpop.f32.mrf.mxu0
        %v2568 = vadd.f32 0.0, %v2567
        %v2569 = vpop.f32.mrf.mxu0
        %2570 = vdwg.mxu0
        %2571 = vmatpush.bf16.msra.mxu0 %v2235
        %2572 = vmatpush.bf16.msra.mxu0 %v2203
        %2573 = vmatpush.bf16.msra.mxu0 %v2171
        %2574 = vmatpush.bf16.msra.mxu0 %v2139
        %2575 = vmatpush.bf16.msra.mxu0 %v2107
        %2576 = vmatpush.bf16.msra.mxu0 %v2075
        %2577 = vmatpush.bf16.msra.mxu0 %v2043
        %2578 = vmatpush.bf16.msra.mxu0 %v2011
        %2579 = vmatmul.bf16.gmra.mxu0 %v982
        %v2580 = vpop.f32.mrf.mxu0
        %v2581 = vadd.f32 0.0, %v2580
        %v2582 = vpop.f32.mrf.mxu0
        %2583 = vdwg.mxu0
        %2584 = vmatpush.bf16.msra.mxu0 %v2236
        %2585 = vmatpush.bf16.msra.mxu0 %v2204
        %2586 = vmatpush.bf16.msra.mxu0 %v2172
        %2587 = vmatpush.bf16.msra.mxu0 %v2140
        %2588 = vmatpush.bf16.msra.mxu0 %v2108
        %2589 = vmatpush.bf16.msra.mxu0 %v2076
        %2590 = vmatpush.bf16.msra.mxu0 %v2044
        %2591 = vmatpush.bf16.msra.mxu0 %v2012
        %2592 = vmatmul.bf16.gmra.mxu0 %v982
        %v2593 = vpop.f32.mrf.mxu0
        %v2594 = vadd.f32 0.0, %v2593
        %v2595 = vpop.f32.mrf.mxu0
        %2596 = vdwg.mxu0
        %2597 = vmatpush.bf16.msra.mxu0 %v2237
        %2598 = vmatpush.bf16.msra.mxu0 %v2205
        %2599 = vmatpush.bf16.msra.mxu0 %v2173
        %2600 = vmatpush.bf16.msra.mxu0 %v2141
        %2601 = vmatpush.bf16.msra.mxu0 %v2109
        %2602 = vmatpush.bf16.msra.mxu0 %v2077
        %2603 = vmatpush.bf16.msra.mxu0 %v2045
        %2604 = vmatpush.bf16.msra.mxu0 %v2013
        %2605 = vmatmul.bf16.gmra.mxu0 %v982
        %v2606 = vpop.f32.mrf.mxu0
        %v2607 = vadd.f32 0.0, %v2606
        %v2608 = vpop.f32.mrf.mxu0
        %2609 = vdwg.mxu0
        %2610 = vmatpush.bf16.msra.mxu0 %v2238
        %2611 = vmatpush.bf16.msra.mxu0 %v2206
        %2612 = vmatpush.bf16.msra.mxu0 %v2174
        %2613 = vmatpush.bf16.msra.mxu0 %v2142
        %2614 = vmatpush.bf16.msra.mxu0 %v2110
        %2615 = vmatpush.bf16.msra.mxu0 %v2078
        %2616 = vmatpush.bf16.msra.mxu0 %v2046
        %2617 = vmatpush.bf16.msra.mxu0 %v2014
        %2618 = vmatmul.bf16.gmra.mxu0 %v982
        %v2619 = vpop.f32.mrf.mxu0
        %v2620 = vadd.f32 0.0, %v2619
        %v2621 = vpop.f32.mrf.mxu0
        %2622 = vdwg.mxu0
        %2623 = vmatpush.bf16.msra.mxu0 %v2239
        %2624 = vmatpush.bf16.msra.mxu0 %v2207
        %2625 = vmatpush.bf16.msra.mxu0 %v2175
        %2626 = vmatpush.bf16.msra.mxu0 %v2143
        %2627 = vmatpush.bf16.msra.mxu0 %v2111
        %2628 = vmatpush.bf16.msra.mxu0 %v2079
        %2629 = vmatpush.bf16.msra.mxu0 %v2047
        %2630 = vmatpush.bf16.msra.mxu0 %v2015
        %2631 = vmatmul.bf16.gmra.mxu0 %v982
        %v2632 = vpop.f32.mrf.mxu0
        %v2633 = vadd.f32 0.0, %v2632
        %v2634 = vpop.f32.mrf.mxu0
        %2635 = vdwg.mxu0
        %2636 = vmatpush.bf16.msra.mxu0 %v2240
        %2637 = vmatpush.bf16.msra.mxu0 %v2208
        %2638 = vmatpush.bf16.msra.mxu0 %v2176
        %2639 = vmatpush.bf16.msra.mxu0 %v2144
        %2640 = vmatpush.bf16.msra.mxu0 %v2112
        %2641 = vmatpush.bf16.msra.mxu0 %v2080
        %2642 = vmatpush.bf16.msra.mxu0 %v2048
        %2643 = vmatpush.bf16.msra.mxu0 %v2016
        %2644 = vmatmul.bf16.gmra.mxu0 %v982
        %v2645 = vpop.f32.mrf.mxu0
        %v2646 = vadd.f32 0.0, %v2645
        %v2647 = vpop.f32.mrf.mxu0
        %2648 = vdwg.mxu0
        %2649 = vmatpush.bf16.msra.mxu0 %v2241
        %2650 = vmatpush.bf16.msra.mxu0 %v2209
        %2651 = vmatpush.bf16.msra.mxu0 %v2177
        %2652 = vmatpush.bf16.msra.mxu0 %v2145
        %2653 = vmatpush.bf16.msra.mxu0 %v2113
        %2654 = vmatpush.bf16.msra.mxu0 %v2081
        %2655 = vmatpush.bf16.msra.mxu0 %v2049
        %2656 = vmatpush.bf16.msra.mxu0 %v2017
        %2657 = vmatmul.bf16.gmra.mxu0 %v982
        %v2658 = vpop.f32.mrf.mxu0
        %v2659 = vadd.f32 0.0, %v2658
        %v2660 = vpop.f32.mrf.mxu0
        %2661 = vdwg.mxu0
        %2662 = vmatpush.bf16.msra.mxu0 %v2242
        %2663 = vmatpush.bf16.msra.mxu0 %v2210
        %2664 = vmatpush.bf16.msra.mxu0 %v2178
        %2665 = vmatpush.bf16.msra.mxu0 %v2146
        %2666 = vmatpush.bf16.msra.mxu0 %v2114
        %2667 = vmatpush.bf16.msra.mxu0 %v2082
        %2668 = vmatpush.bf16.msra.mxu0 %v2050
        %2669 = vmatpush.bf16.msra.mxu0 %v2018
        %2670 = vmatmul.bf16.gmra.mxu0 %v982
        %v2671 = vpop.f32.mrf.mxu0
        %v2672 = vadd.f32 0.0, %v2671
        %v2673 = vpop.f32.mrf.mxu0
        %2674 = vdwg.mxu0
        %2675 = vmatpush.bf16.msra.mxu0 %v2243
        %2676 = vmatpush.bf16.msra.mxu0 %v2211
        %2677 = vmatpush.bf16.msra.mxu0 %v2179
        %2678 = vmatpush.bf16.msra.mxu0 %v2147
        %2679 = vmatpush.bf16.msra.mxu0 %v2115
        %2680 = vmatpush.bf16.msra.mxu0 %v2083
        %2681 = vmatpush.bf16.msra.mxu0 %v2051
        %2682 = vmatpush.bf16.msra.mxu0 %v2019
        %2683 = vmatmul.bf16.gmra.mxu0 %v982
        %v2684 = vpop.f32.mrf.mxu0
        %v2685 = vadd.f32 0.0, %v2684
        %v2686 = vpop.f32.mrf.mxu0
        %2687 = vdwg.mxu0
        %2688 = vmatpush.bf16.msra.mxu0 %v2244
        %2689 = vmatpush.bf16.msra.mxu0 %v2212
        %2690 = vmatpush.bf16.msra.mxu0 %v2180
        %2691 = vmatpush.bf16.msra.mxu0 %v2148
        %2692 = vmatpush.bf16.msra.mxu0 %v2116
        %2693 = vmatpush.bf16.msra.mxu0 %v2084
        %2694 = vmatpush.bf16.msra.mxu0 %v2052
        %2695 = vmatpush.bf16.msra.mxu0 %v2020
        %2696 = vmatmul.bf16.gmra.mxu0 %v982
        %v2697 = vpop.f32.mrf.mxu0
        %v2698 = vadd.f32 0.0, %v2697
        %v2699 = vpop.f32.mrf.mxu0
        %2700 = vdwg.mxu0
        %2701 = vmatpush.bf16.msra.mxu0 %v2245
        %2702 = vmatpush.bf16.msra.mxu0 %v2213
        %2703 = vmatpush.bf16.msra.mxu0 %v2181
        %2704 = vmatpush.bf16.msra.mxu0 %v2149
        %2705 = vmatpush.bf16.msra.mxu0 %v2117
        %2706 = vmatpush.bf16.msra.mxu0 %v2085
        %2707 = vmatpush.bf16.msra.mxu0 %v2053
        %2708 = vmatpush.bf16.msra.mxu0 %v2021
        %2709 = vmatmul.bf16.gmra.mxu0 %v982
        %v2710 = vpop.f32.mrf.mxu0
        %v2711 = vadd.f32 0.0, %v2710
        %v2712 = vpop.f32.mrf.mxu0
        %2713 = vdwg.mxu0
        %2714 = vmatpush.bf16.msra.mxu0 %v2246
        %2715 = vmatpush.bf16.msra.mxu0 %v2214
        %2716 = vmatpush.bf16.msra.mxu0 %v2182
        %2717 = vmatpush.bf16.msra.mxu0 %v2150
        %2718 = vmatpush.bf16.msra.mxu0 %v2118
        %2719 = vmatpush.bf16.msra.mxu0 %v2086
        %2720 = vmatpush.bf16.msra.mxu0 %v2054
        %2721 = vmatpush.bf16.msra.mxu0 %v2022
        %2722 = vmatmul.bf16.gmra.mxu0 %v982
        %v2723 = vpop.f32.mrf.mxu0
        %v2724 = vadd.f32 0.0, %v2723
        %v2725 = vpop.f32.mrf.mxu0
        %2726 = vdwg.mxu0
        %2727 = vmatpush.bf16.msra.mxu0 %v2247
        %2728 = vmatpush.bf16.msra.mxu0 %v2215
        %2729 = vmatpush.bf16.msra.mxu0 %v2183
        %2730 = vmatpush.bf16.msra.mxu0 %v2151
        %2731 = vmatpush.bf16.msra.mxu0 %v2119
        %2732 = vmatpush.bf16.msra.mxu0 %v2087
        %2733 = vmatpush.bf16.msra.mxu0 %v2055
        %2734 = vmatpush.bf16.msra.mxu0 %v2023
        %2735 = vmatmul.bf16.gmra.mxu0 %v982
        %v2736 = vpop.f32.mrf.mxu0
        %v2737 = vadd.f32 0.0, %v2736
        %v2738 = vpop.f32.mrf.mxu0
        %2739 = vdwg.mxu0
        %2740 = vmatpush.bf16.msra.mxu0 %v2248
        %2741 = vmatpush.bf16.msra.mxu0 %v2216
        %2742 = vmatpush.bf16.msra.mxu0 %v2184
        %2743 = vmatpush.bf16.msra.mxu0 %v2152
        %2744 = vmatpush.bf16.msra.mxu0 %v2120
        %2745 = vmatpush.bf16.msra.mxu0 %v2088
        %2746 = vmatpush.bf16.msra.mxu0 %v2056
        %2747 = vmatpush.bf16.msra.mxu0 %v2024
        %2748 = vmatmul.bf16.gmra.mxu0 %v982
        %v2749 = vpop.f32.mrf.mxu0
        %v2750 = vadd.f32 0.0, %v2749
        %v2751 = vpop.f32.mrf.mxu0
        %2752 = vdwg.mxu0
        %2753 = vmatpush.bf16.msra.mxu0 %v2249
        %2754 = vmatpush.bf16.msra.mxu0 %v2217
        %2755 = vmatpush.bf16.msra.mxu0 %v2185
        %2756 = vmatpush.bf16.msra.mxu0 %v2153
        %2757 = vmatpush.bf16.msra.mxu0 %v2121
        %2758 = vmatpush.bf16.msra.mxu0 %v2089
        %2759 = vmatpush.bf16.msra.mxu0 %v2057
        %2760 = vmatpush.bf16.msra.mxu0 %v2025
        %2761 = vmatmul.bf16.gmra.mxu0 %v982
        %v2762 = vpop.f32.mrf.mxu0
        %v2763 = vadd.f32 0.0, %v2762
        %v2764 = vpop.f32.mrf.mxu0
        %2765 = vdwg.mxu0
        %2766 = vmatpush.bf16.msra.mxu0 %v2250
        %2767 = vmatpush.bf16.msra.mxu0 %v2218
        %2768 = vmatpush.bf16.msra.mxu0 %v2186
        %2769 = vmatpush.bf16.msra.mxu0 %v2154
        %2770 = vmatpush.bf16.msra.mxu0 %v2122
        %2771 = vmatpush.bf16.msra.mxu0 %v2090
        %2772 = vmatpush.bf16.msra.mxu0 %v2058
        %2773 = vmatpush.bf16.msra.mxu0 %v2026
        %2774 = vmatmul.bf16.gmra.mxu0 %v982
        %v2775 = vpop.f32.mrf.mxu0
        %v2776 = vadd.f32 0.0, %v2775
        %v2777 = vpop.f32.mrf.mxu0
        %2778 = vdwg.mxu0
        %2779 = vmatpush.bf16.msra.mxu0 %v2251
        %2780 = vmatpush.bf16.msra.mxu0 %v2219
        %2781 = vmatpush.bf16.msra.mxu0 %v2187
        %2782 = vmatpush.bf16.msra.mxu0 %v2155
        %2783 = vmatpush.bf16.msra.mxu0 %v2123
        %2784 = vmatpush.bf16.msra.mxu0 %v2091
        %2785 = vmatpush.bf16.msra.mxu0 %v2059
        %2786 = vmatpush.bf16.msra.mxu0 %v2027
        %2787 = vmatmul.bf16.gmra.mxu0 %v982
        %v2788 = vpop.f32.mrf.mxu0
        %v2789 = vadd.f32 0.0, %v2788
        %v2790 = vpop.f32.mrf.mxu0
        %2791 = vdwg.mxu0
        %2792 = vmatpush.bf16.msra.mxu0 %v2252
        %2793 = vmatpush.bf16.msra.mxu0 %v2220
        %2794 = vmatpush.bf16.msra.mxu0 %v2188
        %2795 = vmatpush.bf16.msra.mxu0 %v2156
        %2796 = vmatpush.bf16.msra.mxu0 %v2124
        %2797 = vmatpush.bf16.msra.mxu0 %v2092
        %2798 = vmatpush.bf16.msra.mxu0 %v2060
        %2799 = vmatpush.bf16.msra.mxu0 %v2028
        %2800 = vmatmul.bf16.gmra.mxu0 %v982
        %v2801 = vpop.f32.mrf.mxu0
        %v2802 = vadd.f32 0.0, %v2801
        %v2803 = vpop.f32.mrf.mxu0
        %2804 = vdwg.mxu0
        %2805 = vmatpush.bf16.msra.mxu0 %v2253
        %2806 = vmatpush.bf16.msra.mxu0 %v2221
        %2807 = vmatpush.bf16.msra.mxu0 %v2189
        %2808 = vmatpush.bf16.msra.mxu0 %v2157
        %2809 = vmatpush.bf16.msra.mxu0 %v2125
        %2810 = vmatpush.bf16.msra.mxu0 %v2093
        %2811 = vmatpush.bf16.msra.mxu0 %v2061
        %2812 = vmatpush.bf16.msra.mxu0 %v2029
        %2813 = vmatmul.bf16.gmra.mxu0 %v982
        %v2814 = vpop.f32.mrf.mxu0
        %v2815 = vadd.f32 0.0, %v2814
        %v2816 = vpop.f32.mrf.mxu0
        %2817 = vdwg.mxu0
        %2818 = vmatpush.bf16.msra.mxu0 %v2254
        %2819 = vmatpush.bf16.msra.mxu0 %v2222
        %2820 = vmatpush.bf16.msra.mxu0 %v2190
        %2821 = vmatpush.bf16.msra.mxu0 %v2158
        %2822 = vmatpush.bf16.msra.mxu0 %v2126
        %2823 = vmatpush.bf16.msra.mxu0 %v2094
        %2824 = vmatpush.bf16.msra.mxu0 %v2062
        %2825 = vmatpush.bf16.msra.mxu0 %v2030
        %2826 = vmatmul.bf16.gmra.mxu0 %v982
        %v2827 = vpop.f32.mrf.mxu0
        %v2828 = vadd.f32 0.0, %v2827
        %v2829 = vpop.f32.mrf.mxu0
        %2830 = vdwg.mxu0
        %2831 = vmatpush.bf16.msra.mxu0 %v2255
        %2832 = vmatpush.bf16.msra.mxu0 %v2223
        %2833 = vmatpush.bf16.msra.mxu0 %v2191
        %2834 = vmatpush.bf16.msra.mxu0 %v2159
        %2835 = vmatpush.bf16.msra.mxu0 %v2127
        %2836 = vmatpush.bf16.msra.mxu0 %v2095
        %2837 = vmatpush.bf16.msra.mxu0 %v2063
        %2838 = vmatpush.bf16.msra.mxu0 %v2031
        %2839 = vmatmul.bf16.gmra.mxu0 %v982
        %v2840 = vpop.f32.mrf.mxu0
        %v2841 = vadd.f32 0.0, %v2840
        %v2842 = vpop.f32.mrf.mxu0
        %2843 = vdwg.mxu0
        %2844 = vmatpush.bf16.msra.mxu0 %v2256
        %2845 = vmatpush.bf16.msra.mxu0 %v2224
        %2846 = vmatpush.bf16.msra.mxu0 %v2192
        %2847 = vmatpush.bf16.msra.mxu0 %v2160
        %2848 = vmatpush.bf16.msra.mxu0 %v2128
        %2849 = vmatpush.bf16.msra.mxu0 %v2096
        %2850 = vmatpush.bf16.msra.mxu0 %v2064
        %2851 = vmatpush.bf16.msra.mxu0 %v2032
        %2852 = vmatmul.bf16.gmra.mxu0 %v982
        %v2853 = vpop.f32.mrf.mxu0
        %v2854 = vadd.f32 0.0, %v2853
        %v2855 = vpop.f32.mrf.mxu0
        %2856 = vdwg.mxu0
        %2857 = vmatpush.bf16.msra.mxu0 %v2257
        %2858 = vmatpush.bf16.msra.mxu0 %v2225
        %2859 = vmatpush.bf16.msra.mxu0 %v2193
        %2860 = vmatpush.bf16.msra.mxu0 %v2161
        %2861 = vmatpush.bf16.msra.mxu0 %v2129
        %2862 = vmatpush.bf16.msra.mxu0 %v2097
        %2863 = vmatpush.bf16.msra.mxu0 %v2065
        %2864 = vmatpush.bf16.msra.mxu0 %v2033
        %2865 = vmatmul.bf16.gmra.mxu0 %v982
        %v2866 = vpop.f32.mrf.mxu0
        %v2867 = vadd.f32 0.0, %v2866
        %v2868 = vpop.f32.mrf.mxu0
        %2869 = vdwg.mxu0
        %2870 = vmatpush.bf16.msra.mxu0 %v2258
        %2871 = vmatpush.bf16.msra.mxu0 %v2226
        %2872 = vmatpush.bf16.msra.mxu0 %v2194
        %2873 = vmatpush.bf16.msra.mxu0 %v2162
        %2874 = vmatpush.bf16.msra.mxu0 %v2130
        %2875 = vmatpush.bf16.msra.mxu0 %v2098
        %2876 = vmatpush.bf16.msra.mxu0 %v2066
        %2877 = vmatpush.bf16.msra.mxu0 %v2034
        %2878 = vmatmul.bf16.gmra.mxu0 %v982
        %v2879 = vpop.f32.mrf.mxu0
        %v2880 = vadd.f32 0.0, %v2879
        %v2881 = vpop.f32.mrf.mxu0
        %2882 = vdwg.mxu0
        %2883 = vmatpush.bf16.msra.mxu0 %v2259
        %2884 = vmatpush.bf16.msra.mxu0 %v2227
        %2885 = vmatpush.bf16.msra.mxu0 %v2195
        %2886 = vmatpush.bf16.msra.mxu0 %v2163
        %2887 = vmatpush.bf16.msra.mxu0 %v2131
        %2888 = vmatpush.bf16.msra.mxu0 %v2099
        %2889 = vmatpush.bf16.msra.mxu0 %v2067
        %2890 = vmatpush.bf16.msra.mxu0 %v2035
        %2891 = vmatmul.bf16.gmra.mxu0 %v982
        %v2892 = vpop.f32.mrf.mxu0
        %v2893 = vadd.f32 0.0, %v2892
        %v2894 = vpop.f32.mrf.mxu0
        %2895 = vdwg.mxu0
        %2896 = vmatpush.bf16.msra.mxu0 %v2260
        %2897 = vmatpush.bf16.msra.mxu0 %v2228
        %2898 = vmatpush.bf16.msra.mxu0 %v2196
        %2899 = vmatpush.bf16.msra.mxu0 %v2164
        %2900 = vmatpush.bf16.msra.mxu0 %v2132
        %2901 = vmatpush.bf16.msra.mxu0 %v2100
        %2902 = vmatpush.bf16.msra.mxu0 %v2068
        %2903 = vmatpush.bf16.msra.mxu0 %v2036
        %2904 = vmatmul.bf16.gmra.mxu0 %v982
        %v2905 = vpop.f32.mrf.mxu0
        %v2906 = vadd.f32 0.0, %v2905
        %v2907 = vpop.f32.mrf.mxu0
        %2908 = vdwg.mxu0
        %2909 = vmatpush.bf16.msra.mxu0 %v2261
        %2910 = vmatpush.bf16.msra.mxu0 %v2229
        %2911 = vmatpush.bf16.msra.mxu0 %v2197
        %2912 = vmatpush.bf16.msra.mxu0 %v2165
        %2913 = vmatpush.bf16.msra.mxu0 %v2133
        %2914 = vmatpush.bf16.msra.mxu0 %v2101
        %2915 = vmatpush.bf16.msra.mxu0 %v2069
        %2916 = vmatpush.bf16.msra.mxu0 %v2037
        %2917 = vmatmul.bf16.gmra.mxu0 %v982
        %v2918 = vpop.f32.mrf.mxu0
        %v2919 = vadd.f32 0.0, %v2918
        %v2920 = vpop.f32.mrf.mxu0
        %2921 = vdwg.mxu0
        %2922 = vmatpush.bf16.msra.mxu0 %v2262
        %2923 = vmatpush.bf16.msra.mxu0 %v2230
        %2924 = vmatpush.bf16.msra.mxu0 %v2198
        %2925 = vmatpush.bf16.msra.mxu0 %v2166
        %2926 = vmatpush.bf16.msra.mxu0 %v2134
        %2927 = vmatpush.bf16.msra.mxu0 %v2102
        %2928 = vmatpush.bf16.msra.mxu0 %v2070
        %2929 = vmatpush.bf16.msra.mxu0 %v2038
        %2930 = vmatmul.bf16.gmra.mxu0 %v982
        %v2931 = vpop.f32.mrf.mxu0
        %v2932 = vadd.f32 0.0, %v2931
        %v2933 = vpop.f32.mrf.mxu0
        %2934 = vdwg.mxu0
        %2935 = vst [vmem:[%s510] sm:$0xff] %v2529
        %2936 = vst [vmem:[%s510 + $0x8] sm:$0xff] %v2542
        %2937 = vst [vmem:[%s510 + $0x10] sm:$0xff] %v2555
        %2938 = vst [vmem:[%s510 + $0x18] sm:$0xff] %v2568
        %2939 = vst [vmem:[%s510 + $0x20] sm:$0xff] %v2581
        %2940 = vst [vmem:[%s510 + $0x28] sm:$0xff] %v2594
        %2941 = vst [vmem:[%s510 + $0x30] sm:$0xff] %v2607
        %2942 = vst [vmem:[%s510 + $0x38] sm:$0xff] %v2620
        %2943 = vst [vmem:[%s510 + $0x40] sm:$0xff] %v2633
        %2944 = vst [vmem:[%s510 + $0x48] sm:$0xff] %v2646
        %2945 = vst [vmem:[%s510 + $0x50] sm:$0xff] %v2659
        %2946 = vst [vmem:[%s510 + $0x58] sm:$0xff] %v2672
        %2947 = vst [vmem:[%s510 + $0x60] sm:$0xff] %v2685
        %2948 = vst [vmem:[%s510 + $0x68] sm:$0xff] %v2698
        %2949 = vst [vmem:[%s510 + $0x70] sm:$0xff] %v2711
        %2950 = vst [vmem:[%s510 + $0x78] sm:$0xff] %v2724
        %2951 = vst [vmem:[%s510 + $0x80] sm:$0xff] %v2737
        %2952 = vst [vmem:[%s510 + $0x88] sm:$0xff] %v2750
        %2953 = vst [vmem:[%s510 + $0x90] sm:$0xff] %v2763
        %2954 = vst [vmem:[%s510 + $0x98] sm:$0xff] %v2776
        %2955 = vst [vmem:[%s510 + $0xa0] sm:$0xff] %v2789
        %2956 = vst [vmem:[%s510 + $0xa8] sm:$0xff] %v2802
        %2957 = vst [vmem:[%s510 + $0xb0] sm:$0xff] %v2815
        %2958 = vst [vmem:[%s510 + $0xb8] sm:$0xff] %v2828
        %2959 = vst [vmem:[%s510 + $0xc0] sm:$0xff] %v2841
        %2960 = vst [vmem:[%s510 + $0xc8] sm:$0xff] %v2854
        %2961 = vst [vmem:[%s510 + $0xd0] sm:$0xff] %v2867
        %2962 = vst [vmem:[%s510 + $0xd8] sm:$0xff] %v2880
        %2963 = vst [vmem:[%s510 + $0xe0] sm:$0xff] %v2893
        %2964 = vst [vmem:[%s510 + $0xe8] sm:$0xff] %v2906
        %2965 = vst [vmem:[%s510 + $0xf0] sm:$0xff] %v2919
        %2966 = vst [vmem:[%s510 + $0xf8] sm:$0xff] %v2932
        %s2967 = sand.u32 %s279, 1
        %s2968 = scalar_lea.sflag [#allocation22], %s2967
        %s2969 = sand.u32 %s279, 1
        %s2970 = smul.addr %s2969, 256
        %s2971 = scalar_lea.vmem [#allocation21], %s2970
        // Predicated region
        $region89: #{tpu_custom_call.1} parent=51 // pred_check
          %p2972 = pneg %p221
        $region90: #{tpu_custom_call.1} parent=51 // pred_check_branch
          %2974 = sbr.rel (%p2972) target = $region92
        $region91: #{tpu_custom_call.1} parent=51 // pred_region
          %2976 = vsyncadd [#allocation5], 0
          %s2978 = sshll.u32 [#allocation17], 4
          %s2979 = int_to_ptr.vmem [resolvable:$true] %s2978
          %s2980 = sshll.u32 %s8, 4
          %s2981 = int_to_ptr.hbm [resolvable:$true] %s2980
          %2983 = dma.vmem_to_hbm [thread:$0]  %s2979, 128, %s2981, [#allocation5]
        $region92: #{tpu_custom_call.1} parent=51 // pred_fallthru
          _
        // Predicated region
        $region93: #{tpu_custom_call.1} parent=51 // pred_check
          %p2984 = pneg %p242
        $region94: #{tpu_custom_call.1} parent=51 // pred_check_branch
          %2986 = sbr.rel (%p2984) target = $region96
        $region95: #{tpu_custom_call.1} parent=51 // pred_region
          %2988 = vsyncadd [#allocation19], 0
          %s2990 = sshll.u32 [#allocation18], 4
          %s2991 = int_to_ptr.vmem [resolvable:$true] %s2990
          %s2992 = sshll.u32 %s9, 4
          %s2993 = int_to_ptr.hbm [resolvable:$true] %s2992
          %2995 = dma.vmem_to_hbm [thread:$0]  %s2991, 128, %s2993, [#allocation19]
        $region96: #{tpu_custom_call.1} parent=51 // pred_fallthru
          _
        // Predicated region
        $region97: #{tpu_custom_call.1} parent=51 // pred_check
          %p2996 = pneg %p263
        $region98: #{tpu_custom_call.1} parent=51 // pred_check_branch
          %2998 = sbr.rel (%p2996) target = $region100
        $region99: #{tpu_custom_call.1} parent=51 // pred_region
          %3000 = vsyncadd [#allocation19], 0
          %s3002 = sshll.u32 [#allocation20], 4
          %s3003 = int_to_ptr.vmem [resolvable:$true] %s3002
          %s3004 = sshll.u32 %s10, 4
          %s3005 = int_to_ptr.hbm [resolvable:$true] %s3004
          %3007 = dma.vmem_to_hbm [thread:$0]  %s3003, 128, %s3005, [#allocation19]
        $region100: #{tpu_custom_call.1} parent=51 // pred_fallthru
          _
        // Predicated region
        $region101: #{tpu_custom_call.1} parent=51 // pred_check
          %p3008 = pneg %p289
        $region102: #{tpu_custom_call.1} parent=51 // pred_check_branch
          %3010 = sbr.rel (%p3008) target = $region104
        $region103: #{tpu_custom_call.1} parent=51 // pred_region
          %s3011 = smul.u32 32, %s35
          %3013 = vsyncadd %s2968, 0
          %s3014 = smul.addr %s3011, 8
          %s3015 = scalar_lea.hbm %s11, %s3014
          %s3017 = sshll.u32 %s2971, 4
          %s3018 = int_to_ptr.vmem [resolvable:$true] %s3017
          %s3019 = sshll.u32 %s3015, 4
          %s3020 = int_to_ptr.hbm [resolvable:$true] %s3019
          %3022 = dma.vmem_to_hbm [thread:$0]  %s3018, 4096, %s3020, %s2968
        $region104: #{tpu_custom_call.1} parent=51 // pred_fallthru
          _
        // Predicated region
        $region105: #{tpu_custom_call.1} parent=51 // pred_check
          %p3023 = pneg %p221
        $region106: #{tpu_custom_call.1} parent=51 // pred_check_branch
          %3025 = sbr.rel (%p3023) target = $region108
        $region107: #{tpu_custom_call.1} parent=51 // pred_region
          %3027 = dma.done [#allocation5], 128
        $region108: #{tpu_custom_call.1} parent=51 // pred_fallthru
          _
        // Predicated region
        $region109: #{tpu_custom_call.1} parent=51 // pred_check
          %p3028 = pneg %p242
        $region110: #{tpu_custom_call.1} parent=51 // pred_check_branch
          %3030 = sbr.rel (%p3028) target = $region112
        $region111: #{tpu_custom_call.1} parent=51 // pred_region
          %3032 = dma.done [#allocation19], 128
        $region112: #{tpu_custom_call.1} parent=51 // pred_fallthru
          _
        // Predicated region
        $region113: #{tpu_custom_call.1} parent=51 // pred_check
          %p3033 = pneg %p263
        $region114: #{tpu_custom_call.1} parent=51 // pred_check_branch
          %3035 = sbr.rel (%p3033) target = $region116
        $region115: #{tpu_custom_call.1} parent=51 // pred_region
          %3037 = dma.done [#allocation19], 128
        $region116: #{tpu_custom_call.1} parent=51 // pred_fallthru
          _
      $region52: #{tpu_custom_call.1} parent=5 // pred_fallthru
        _
      %p3038 = scmp.le.s32.totalorder 2, %s30
      // Predicated region
      $region117: #{tpu_custom_call.1} parent=5 // pred_check
        %p3039 = pneg %p3038
      $region118: #{tpu_custom_call.1} parent=5 // pred_check_branch
        %3041 = sbr.rel (%p3039) target = $region120
      $region119: #{tpu_custom_call.1} parent=5 // pred_region
        %s3042 = ssub.s32 %s30, 2
        // Predicated region
        $region121: #{tpu_custom_call.1} parent=119 // pred_check
          %p3043 = pneg %p295
        $region122: #{tpu_custom_call.1} parent=119 // pred_check_branch
          %3045 = sbr.rel (%p3043) target = $region124
        $region123: #{tpu_custom_call.1} parent=119 // pred_region
          %s3046 = sand.u32 %s280, 1
          %s3047 = scalar_lea.sflag [#allocation22], %s3046
          %s3048 = sand.u32 %s280, 1
          %s3049 = smul.addr %s3048, 256
          %s3050 = scalar_lea.vmem [#allocation21], %s3049
          %3052 = dma.done %s3047, 4096
        $region124: #{tpu_custom_call.1} parent=119 // pred_fallthru
          _
      $region120: #{tpu_custom_call.1} parent=5 // pred_fallthru
        _
    $region6: #{tpu_custom_call.1} parent=1 // loop_footer
      %s34 = sadd.s32 1, %s30
    $region7: #{tpu_custom_call.1} parent=1 // loop_footer_branch
      %29 = sbr.rel target = $region3
    $region8: #{tpu_custom_call.1} parent=1 // loop_exit
      _
    %3053 = vsyncpa [#allocation4], 1
    %s3054 = scalar_lea.sflag [#allocation4], 1
    %3055 = vsyncpa %s3054, 1
    %3056 = vsyncpa [#allocation7], 1
    %3057 = vsyncpa [#allocation10], 1
    %3058 = vsyncpa [#allocation13], 1
    %3059 = vsyncpa [#allocation16], 1
    %s3060 = scalar_lea.sflag [#allocation16], 1
    %3061 = vsyncpa %s3060, 1
    %3062 = vsyncpa [#allocation5], 1
    %s3063 = scalar_lea.sflag [#allocation5], 1
    %3064 = vsyncpa %s3063, 1
    %3065 = vsyncpa [#allocation19], 1
    %3066 = vsyncpa [#allocation22], 1
    %s3067 = scalar_lea.sflag [#allocation22], 1
    %3068 = vsyncpa %s3067, 1

// kernel: tpu_custom_call.1
$region0: #{tpu_custom_call.1}
  #allocation0 [shape = 'u32[]', space=smem, size = 0x4, offset = 0x4, fixed_abs, tag = 'smem constant byte address 0x4 - core index']
  #allocation1 [shape = 'u32[72,128]{1,0:T(1,128)}', space=vmem, size = 0x9000, scoped, tag = 'internal scratch']
  #allocation2 [shape = 'bf16[8,128]{1,0:T(8,128)(2,1)}', space=vmem, size = 0x800, scoped, tag = 'scratch operand']
  %s0 = inlined_call_operand.hbm [shape: f32[8,8,128], index: 0, kind: input, shape index: {}]
  %s1 = inlined_call_operand.hbm [shape: bf16[128,256], index: 1, kind: input, shape index: {}]
  %s2 = inlined_call_operand.hbm [shape: f32[1,256], index: 2, kind: input, shape index: {}]
  %s3 = inlined_call_operand.hbm [shape: bf16[128,128], index: 3, kind: input, shape index: {}]
  %s4 = inlined_call_operand.hbm [shape: f32[1,128], index: 4, kind: input, shape index: {}]
  %s5 = inlined_call_operand.hbm [shape: bf16[128,128], index: 5, kind: input, shape index: {}]
  %s6 = inlined_call_operand.hbm [shape: f32[1,128], index: 6, kind: input, shape index: {}]
  %s7 = inlined_call_operand.hbm [shape: bf16[128,8192], index: 7, kind: input, shape index: {}]
  %s8 = inlined_call_operand.hbm [shape: f32[8,128], index: 8, kind: output, shape index: {0}]
  %s9 = inlined_call_operand.hbm [shape: f32[8,128], index: 9, kind: output, shape index: {1}]
  %s10 = inlined_call_operand.hbm [shape: f32[8,128], index: 10, kind: output, shape index: {2}]
  %s11 = inlined_call_operand.hbm [shape: f32[8,8192], index: 11, kind: output, shape index: {3}]
  %12 = xla_tuple %s8, %s9, %s10, %s11
  %s13 = sld [smem:[#allocation0]]
  $region125: #{tpu_custom_call.1} parent=0
    _
  %s15 = ssub.s32 1, %s13
  %s16 = scalar_select 0, %s15, %s13
  $region1: #{tpu_custom_call.1} parent=0
    #allocation3 [shape = 'u8[32768]{0}', space=vmem, size = 0x8000, scoped, tag = 'input window, operand 0, single buffered']
    #allocation4 [shape = 's32[2]{0}', space=sflag, size = 0x8, scoped, tag = 'scoped memory for tpu_custom_call.1']
    #allocation5 [shape = 's32[2]{0}', space=sflag, size = 0x8, scoped, tag = 'scoped memory for tpu_custom_call.1']
    #allocation6 [shape = 'u8[65536]{0}', space=vmem, size = 0x10000, scoped, tag = 'input window, operand 1, single buffered']
    #allocation7 [shape = 's32[1]{0}', space=sflag, size = 0x4, scoped, tag = 'scoped memory for tpu_custom_call.1']
    #allocation8 [shape = 'u8[1024]{0}', space=vmem, size = 0x400, scoped, tag = 'input window, operand 2, single buffered']
    #allocation9 [shape = 'u8[32768]{0}', space=vmem, size = 0x8000, scoped, tag = 'input window, operand 3, single buffered']
    #allocation10 [shape = 's32[1]{0}', space=sflag, size = 0x4, scoped, tag = 'scoped memory for tpu_custom_call.1']
    #allocation11 [shape = 'u8[512]{0}', space=vmem, size = 0x400, scoped, tag = 'input window, operand 4, single buffered']
    #allocation12 [shape = 'u8[32768]{0}', space=vmem, size = 0x8000, scoped, tag = 'input window, operand 5, single buffered']
    #allocation13 [shape = 's32[1]{0}', space=sflag, size = 0x4, scoped, tag = 'scoped memory for tpu_custom_call.1']
    #allocation14 [shape = 'u8[512]{0}', space=vmem, size = 0x400, scoped, tag = 'input window, operand 6, single buffered']
    #allocation15 [shape = 'u8[2097152]{0}', space=vmem, size = 0x200000, scoped, tag = 'input window, operand 7']
    #allocation16 [shape = 's32[2]{0}', space=sflag, size = 0x8, scoped, tag = 'scoped memory for tpu_custom_call.1']
    #allocation17 [shape = 'u8[4096]{0}', space=vmem, size = 0x1000, scoped, tag = 'output window, operand 0, single buffered']
    #allocation18 [shape = 'u8[4096]{0}', space=vmem, size = 0x1000, scoped, tag = 'output window, operand 1, single buffered']
    #allocation19 [shape = 's32[1]{0}', space=sflag, size = 0x4, scoped, tag = 'scoped memory for tpu_custom_call.1']
    #allocation20 [shape = 'u8[4096]{0}', space=vmem, size = 0x1000, scoped, tag = 'output window, operand 2, single buffered']
    #allocation21 [shape = 'u8[262144]{0}', space=vmem, size = 0x40000, scoped, tag = 'output window, operand 3']
    #allocation22 [shape = 's32[2]{0}', space=sflag, size = 0x8, scoped, tag = 'scoped memory for tpu_custom_call.1']
    %17 = vsyncpa [#allocation4], 0
    %18 = vsyncpa [#allocation7], 0
    %19 = vsyncpa [#allocation10], 0
    %20 = vsyncpa [#allocation13], 0
    %21 = vsyncpa [#allocation16], 0
    %s22 = scalar_lea.sflag [#allocation16], 1
    %23 = vsyncpa %s22, 0
    %24 = vsyncpa [#allocation5], 0
    %25 = vsyncpa [#allocation19], 0
    %26 = vsyncpa [#allocation22], 0
    %s27 = scalar_lea.sflag [#allocation22], 1
    %28 = vsyncpa %s27, 0
    loop: start=0, step=1, limit=4
    $region2: #{tpu_custom_call.1} parent=1 // loop_pre_header
      _
    $region3: #{tpu_custom_call.1} parent=1 // loop_header
      %s30 = sphi 0, %s34
      %p31 = scmp.ge.s32.totalorder %s30, 4
      %s38 = sphi 0, %s38
      %s40 = sphi 0, %s38
      %s41 = sphi 0, %s40
      %s55 = sphi 0, %s41
      %s59 = sphi 0, %s59
      %s61 = sphi 0, %s59
      %s62 = sphi 0, %s61
      %s76 = sphi 0, %s62
      %s80 = sphi 0, %s80
      %s82 = sphi 0, %s80
      %s83 = sphi 0, %s82
      %s97 = sphi 0, %s83
      %s101 = sphi 0, %s101
      %s103 = sphi 0, %s101
      %s104 = sphi 0, %s103
      %s118 = sphi 0, %s104
      %s122 = sphi 0, %s122
      %s124 = sphi 0, %s122
      %s125 = sphi 0, %s124
      %s139 = sphi 0, %s125
      %s143 = sphi 0, %s143
      %s145 = sphi 0, %s143
      %s146 = sphi 0, %s145
      %s160 = sphi 0, %s146
      %s164 = sphi 0, %s164
      %s166 = sphi 0, %s164
      %s167 = sphi 0, %s166
      %s181 = sphi 0, %s167
      %s187 = sphi 0, %s189
      %s190 = sphi 0, %s187
      %s191 = sphi 0, %s190
      %s207 = sphi 0, %s191
      %s211 = sphi 0, %s211
      %s213 = sphi 0, %s211
      %s214 = sphi 0, %s213
      %s228 = sphi 0, %s214
      %s232 = sphi 0, %s232
      %s234 = sphi 0, %s232
      %s235 = sphi 0, %s234
      %s249 = sphi 0, %s235
      %s253 = sphi 0, %s253
      %s255 = sphi 0, %s253
      %s256 = sphi 0, %s255
      %s270 = sphi 0, %s256
      %s276 = sphi 0, %s278
      %s279 = sphi 0, %s276
      %s280 = sphi 0, %s279
      %s296 = sphi 0, %s280
    $region4: #{tpu_custom_call.1} parent=1 // loop_header_branch
      %33 = sbr.rel (%p31) target = $region8
    $region5: #{tpu_custom_call.1} parent=1 // loop_body
      %s35 = ssub.s32 %s30, 1
      %s36 = ssub.s32 %s30, 2
      %s37 = sadd.s32 %s30, 1
      %s39 = sadd.s32 %s38, 1
      %p42 = scmp.eq.s32.totalorder %s30, 1
      %p43 = scmp.ne.s32.totalorder %s38, %s40
      %p44 = scmp.eq.s32.totalorder %s30, 0
      %p45 = por %p43, %p44
      %p46 = scmp.ne.s32.totalorder %s38, %s40
      %p47 = scmp.eq.s32.totalorder %s35, 1
      %p48 = por %p46, %p47
      %p49 = scmp.ne.s32.totalorder %s40, %s41
      %p50 = scmp.eq.s32.totalorder %s35, 0
      %p51 = por %p49, %p50
      %p52 = scmp.ne.s32.totalorder %s40, %s41
      %p53 = scmp.eq.s32.totalorder %s36, 1
      %p54 = por %p52, %p53
      %p56 = scmp.ne.s32.totalorder %s41, %s55
      %p57 = scmp.eq.s32.totalorder %s36, 0
      %p58 = por %p56, %p57
      %s60 = sadd.s32 %s59, 1
      %p63 = scmp.eq.s32.totalorder %s30, 1
      %p64 = scmp.ne.s32.totalorder %s59, %s61
      %p65 = scmp.eq.s32.totalorder %s30, 0
      %p66 = por %p64, %p65
      %p67 = scmp.ne.s32.totalorder %s59, %s61
      %p68 = scmp.eq.s32.totalorder %s35, 1
      %p69 = por %p67, %p68
      %p70 = scmp.ne.s32.totalorder %s61, %s62
      %p71 = scmp.eq.s32.totalorder %s35, 0
      %p72 = por %p70, %p71
      %p73 = scmp.ne.s32.totalorder %s61, %s62
      %p74 = scmp.eq.s32.totalorder %s36, 1
      %p75 = por %p73, %p74
      %p77 = scmp.ne.s32.totalorder %s62, %s76
      %p78 = scmp.eq.s32.totalorder %s36, 0
      %p79 = por %p77, %p78
      %s81 = sadd.s32 %s80, 1
      %p84 = scmp.eq.s32.totalorder %s30, 1
      %p85 = scmp.ne.s32.totalorder %s80, %s82
      %p86 = scmp.eq.s32.totalorder %s30, 0
      %p87 = por %p85, %p86
      %p88 = scmp.ne.s32.totalorder %s80, %s82
      %p89 = scmp.eq.s32.totalorder %s35, 1
      %p90 = por %p88, %p89
      %p91 = scmp.ne.s32.totalorder %s82, %s83
      %p92 = scmp.eq.s32.totalorder %s35, 0
      %p93 = por %p91, %p92
      %p94 = scmp.ne.s32.totalorder %s82, %s83
      %p95 = scmp.eq.s32.totalorder %s36, 1
      %p96 = por %p94, %p95
      %p98 = scmp.ne.s32.totalorder %s83, %s97
      %p99 = scmp.eq.s32.totalorder %s36, 0
      %p100 = por %p98, %p99
      %s102 = sadd.s32 %s101, 1
      %p105 = scmp.eq.s32.totalorder %s30, 1
      %p106 = scmp.ne.s32.totalorder %s101, %s103
      %p107 = scmp.eq.s32.totalorder %s30, 0
      %p108 = por %p106, %p107
      %p109 = scmp.ne.s32.totalorder %s101, %s103
      %p110 = scmp.eq.s32.totalorder %s35, 1
      %p111 = por %p109, %p110
      %p112 = scmp.ne.s32.totalorder %s103, %s104
      %p113 = scmp.eq.s32.totalorder %s35, 0
      %p114 = por %p112, %p113
      %p115 = scmp.ne.s32.totalorder %s103, %s104
      %p116 = scmp.eq.s32.totalorder %s36, 1
      %p117 = por %p115, %p116
      %p119 = scmp.ne.s32.totalorder %s104, %s118
      %p120 = scmp.eq.s32.totalorder %s36, 0
      %p121 = por %p119, %p120
      %s123 = sadd.s32 %s122, 1
      %p126 = scmp.eq.s32.totalorder %s30, 1
      %p127 = scmp.ne.s32.totalorder %s122, %s124
      %p128 = scmp.eq.s32.totalorder %s30, 0
      %p129 = por %p127, %p128
      %p130 = scmp.ne.s32.totalorder %s122, %s124
      %p131 = scmp.eq.s32.totalorder %s35, 1
      %p132 = por %p130, %p131
      %p133 = scmp.ne.s32.totalorder %s124, %s125
      %p134 = scmp.eq.s32.totalorder %s35, 0
      %p135 = por %p133, %p134
      %p136 = scmp.ne.s32.totalorder %s124, %s125
      %p137 = scmp.eq.s32.totalorder %s36, 1
      %p138 = por %p136, %p137
      %p140 = scmp.ne.s32.totalorder %s125, %s139
      %p141 = scmp.eq.s32.totalorder %s36, 0
      %p142 = por %p140, %p141
      %s144 = sadd.s32 %s143, 1
      %p147 = scmp.eq.s32.totalorder %s30, 1
      %p148 = scmp.ne.s32.totalorder %s143, %s145
      %p149 = scmp.eq.s32.totalorder %s30, 0
      %p150 = por %p148, %p149
      %p151 = scmp.ne.s32.totalorder %s143, %s145
      %p152 = scmp.eq.s32.totalorder %s35, 1
      %p153 = por %p151, %p152
      %p154 = scmp.ne.s32.totalorder %s145, %s146
      %p155 = scmp.eq.s32.totalorder %s35, 0
      %p156 = por %p154, %p155
      %p157 = scmp.ne.s32.totalorder %s145, %s146
      %p158 = scmp.eq.s32.totalorder %s36, 1
      %p159 = por %p157, %p158
      %p161 = scmp.ne.s32.totalorder %s146, %s160
      %p162 = scmp.eq.s32.totalorder %s36, 0
      %p163 = por %p161, %p162
      %s165 = sadd.s32 %s164, 1
      %p168 = scmp.eq.s32.totalorder %s30, 1
      %p169 = scmp.ne.s32.totalorder %s164, %s166
      %p170 = scmp.eq.s32.totalorder %s30, 0
      %p171 = por %p169, %p170
      %p172 = scmp.ne.s32.totalorder %s164, %s166
      %p173 = scmp.eq.s32.totalorder %s35, 1
      %p174 = por %p172, %p173
      %p175 = scmp.ne.s32.totalorder %s166, %s167
      %p176 = scmp.eq.s32.totalorder %s35, 0
      %p177 = por %p175, %p176
      %p178 = scmp.ne.s32.totalorder %s166, %s167
      %p179 = scmp.eq.s32.totalorder %s36, 1
      %p180 = por %p178, %p179
      %p182 = scmp.ne.s32.totalorder %s167, %s181
      %p183 = scmp.eq.s32.totalorder %s36, 0
      %p184 = por %p182, %p183
      %s185 = ssub.s32 %s30, %s37
      %p186 = scmp.eq.s32.totalorder %s185, 0
      %s188 = sadd.s32 %s187, 1
      %s189 = scalar_select %p186, %s187, %s188
      %p192 = pneg %p186
      %p193 = scmp.eq.s32.totalorder %s30, 1
      %p194 = por %p192, %p193
      %p195 = scmp.ne.s32.totalorder %s187, %s190
      %p196 = scmp.eq.s32.totalorder %s30, 0
      %p197 = por %p195, %p196
      %p198 = scmp.ne.s32.totalorder %s187, %s190
      %p199 = scmp.eq.s32.totalorder %s35, 1
      %p200 = por %p198, %p199
      %p201 = scmp.ne.s32.totalorder %s190, %s191
      %p202 = scmp.eq.s32.totalorder %s35, 0
      %p203 = por %p201, %p202
      %p204 = scmp.ne.s32.totalorder %s190, %s191
      %p205 = scmp.eq.s32.totalorder %s36, 1
      %p206 = por %p204, %p205
      %p208 = scmp.ne.s32.totalorder %s191, %s207
      %p209 = scmp.eq.s32.totalorder %s36, 0
      %p210 = por %p208, %p209
      %s212 = sadd.s32 %s211, 1
      %p215 = scmp.eq.s32.totalorder %s30, 1
      %p216 = scmp.ne.s32.totalorder %s211, %s213
      %p217 = scmp.eq.s32.totalorder %s30, 0
      %p218 = por %p216, %p217
      %p219 = scmp.ne.s32.totalorder %s211, %s213
      %p220 = scmp.eq.s32.totalorder %s35, 1
      %p221 = por %p219, %p220
      %p222 = scmp.ne.s32.totalorder %s213, %s214
      %p223 = scmp.eq.s32.totalorder %s35, 0
      %p224 = por %p222, %p223
      %p225 = scmp.ne.s32.totalorder %s213, %s214
      %p226 = scmp.eq.s32.totalorder %s36, 1
      %p227 = por %p225, %p226
      %p229 = scmp.ne.s32.totalorder %s214, %s228
      %p230 = scmp.eq.s32.totalorder %s36, 0
      %p231 = por %p229, %p230
      %s233 = sadd.s32 %s232, 1
      %p236 = scmp.eq.s32.totalorder %s30, 1
      %p237 = scmp.ne.s32.totalorder %s232, %s234
      %p238 = scmp.eq.s32.totalorder %s30, 0
      %p239 = por %p237, %p238
      %p240 = scmp.ne.s32.totalorder %s232, %s234
      %p241 = scmp.eq.s32.totalorder %s35, 1
      %p242 = por %p240, %p241
      %p243 = scmp.ne.s32.totalorder %s234, %s235
      %p244 = scmp.eq.s32.totalorder %s35, 0
      %p245 = por %p243, %p244
      %p246 = scmp.ne.s32.totalorder %s234, %s235
      %p247 = scmp.eq.s32.totalorder %s36, 1
      %p248 = por %p246, %p247
      %p250 = scmp.ne.s32.totalorder %s235, %s249
      %p251 = scmp.eq.s32.totalorder %s36, 0
      %p252 = por %p250, %p251
      %s254 = sadd.s32 %s253, 1
      %p257 = scmp.eq.s32.totalorder %s30, 1
      %p258 = scmp.ne.s32.totalorder %s253, %s255
      %p259 = scmp.eq.s32.totalorder %s30, 0
      %p260 = por %p258, %p259
      %p261 = scmp.ne.s32.totalorder %s253, %s255
      %p262 = scmp.eq.s32.totalorder %s35, 1
      %p263 = por %p261, %p262
      %p264 = scmp.ne.s32.totalorder %s255, %s256
      %p265 = scmp.eq.s32.totalorder %s35, 0
      %p266 = por %p264, %p265
      %p267 = scmp.ne.s32.totalorder %s255, %s256
      %p268 = scmp.eq.s32.totalorder %s36, 1
      %p269 = por %p267, %p268
      %p271 = scmp.ne.s32.totalorder %s256, %s270
      %p272 = scmp.eq.s32.totalorder %s36, 0
      %p273 = por %p271, %p272
      %s274 = ssub.s32 %s30, %s37
      %p275 = scmp.eq.s32.totalorder %s274, 0
      %s277 = sadd.s32 %s276, 1
      %s278 = scalar_select %p275, %s276, %s277
      %p281 = pneg %p275
      %p282 = scmp.eq.s32.totalorder %s30, 1
      %p283 = por %p281, %p282
      %p284 = scmp.ne.s32.totalorder %s276, %s279
      %p285 = scmp.eq.s32.totalorder %s30, 0
      %p286 = por %p284, %p285
      %p287 = scmp.ne.s32.totalorder %s276, %s279
      %p288 = scmp.eq.s32.totalorder %s35, 1
      %p289 = por %p287, %p288
      %p290 = scmp.ne.s32.totalorder %s279, %s280
      %p291 = scmp.eq.s32.totalorder %s35, 0
      %p292 = por %p290, %p291
      %p293 = scmp.ne.s32.totalorder %s279, %s280
      %p294 = scmp.eq.s32.totalorder %s36, 1
      %p295 = por %p293, %p294
      %p297 = scmp.ne.s32.totalorder %s280, %s296
      %p298 = scmp.eq.s32.totalorder %s36, 0
      %p299 = por %p297, %p298
      %p300 = scmp.le.s32.totalorder 1, %s30
      %p301 = scmp.lt.s32.totalorder %s30, 3
      %p302 = pnand %p300, %p301
      %p303 = pneg %p302
      // Predicated region
      $region9: #{tpu_custom_call.1} parent=5 // pred_check
        _
      $region10: #{tpu_custom_call.1} parent=5 // pred_check_branch
        %305 = sbr.rel (%p302) target = $region12
      $region11: #{tpu_custom_call.1} parent=5 // pred_region
        %s306 = ssub.s32 %s30, 1
        // Predicated region
        $region13: #{tpu_custom_call.1} parent=11 // pred_check
          %p307 = pneg %p51
        $region14: #{tpu_custom_call.1} parent=11 // pred_check_branch
          %309 = sbr.rel (%p307) target = $region16
        $region15: #{tpu_custom_call.1} parent=11 // pred_region
          %311 = vsyncadd [#allocation4], 0
          %s312 = sshll.u32 %s0, 4
          %s313 = int_to_ptr.hbm [resolvable:$true] %s312
          %s314 = sshll.u32 [#allocation3], 4
          %s315 = int_to_ptr.vmem [resolvable:$true] %s314
          %320 = dma.hbm_to_vmem [thread:$0]  %s313, 1024, %s315, [#allocation4], 128, 128, 8
        $region16: #{tpu_custom_call.1} parent=11 // pred_fallthru
          _
        // Predicated region
        $region17: #{tpu_custom_call.1} parent=11 // pred_check
          %p321 = pneg %p72
        $region18: #{tpu_custom_call.1} parent=11 // pred_check_branch
          %323 = sbr.rel (%p321) target = $region20
        $region19: #{tpu_custom_call.1} parent=11 // pred_region
          %325 = vsyncadd [#allocation7], 0
          %s326 = sshll.u32 %s1, 4
          %s327 = int_to_ptr.hbm [resolvable:$true] %s326
          %s328 = sshll.u32 [#allocation6], 4
          %s329 = int_to_ptr.vmem [resolvable:$true] %s328
          %334 = dma.hbm_to_vmem [thread:$0]  %s327, 2048, %s329, [#allocation7], 128, 128, 8
        $region20: #{tpu_custom_call.1} parent=11 // pred_fallthru
          _
        // Predicated region
        $region21: #{tpu_custom_call.1} parent=11 // pred_check
          %p335 = pneg %p93
        $region22: #{tpu_custom_call.1} parent=11 // pred_check_branch
          %337 = sbr.rel (%p335) target = $region24
        $region23: #{tpu_custom_call.1} parent=11 // pred_region
          %339 = vsyncadd [#allocation7], 0
          %s341 = sshll.u32 %s2, 4
          %s342 = int_to_ptr.hbm [resolvable:$true] %s341
          %s343 = sshll.u32 [#allocation8], 4
          %s344 = int_to_ptr.vmem [resolvable:$true] %s343
          %346 = dma.hbm_to_vmem [thread:$0]  %s342, 32, %s344, [#allocation7]
        $region24: #{tpu_custom_call.1} parent=11 // pred_fallthru
          _
        // Predicated region
        $region25: #{tpu_custom_call.1} parent=11 // pred_check
          %p347 = pneg %p114
        $region26: #{tpu_custom_call.1} parent=11 // pred_check_branch
          %349 = sbr.rel (%p347) target = $region28
        $region27: #{tpu_custom_call.1} parent=11 // pred_region
          %351 = vsyncadd [#allocation10], 0
          %s352 = sshll.u32 %s3, 4
          %s353 = int_to_ptr.hbm [resolvable:$true] %s352
          %s354 = sshll.u32 [#allocation9], 4
          %s355 = int_to_ptr.vmem [resolvable:$true] %s354
          %360 = dma.hbm_to_vmem [thread:$0]  %s353, 1024, %s355, [#allocation10], 64, 64, 4
        $region28: #{tpu_custom_call.1} parent=11 // pred_fallthru
          _
        // Predicated region
        $region29: #{tpu_custom_call.1} parent=11 // pred_check
          %p361 = pneg %p135
        $region30: #{tpu_custom_call.1} parent=11 // pred_check_branch
          %363 = sbr.rel (%p361) target = $region32
        $region31: #{tpu_custom_call.1} parent=11 // pred_region
          %365 = vsyncadd [#allocation10], 0
          %s367 = sshll.u32 %s4, 4
          %s368 = int_to_ptr.hbm [resolvable:$true] %s367
          %s369 = sshll.u32 [#allocation11], 4
          %s370 = int_to_ptr.vmem [resolvable:$true] %s369
          %372 = dma.hbm_to_vmem [thread:$0]  %s368, 16, %s370, [#allocation10]
        $region32: #{tpu_custom_call.1} parent=11 // pred_fallthru
          _
        // Predicated region
        $region33: #{tpu_custom_call.1} parent=11 // pred_check
          %p373 = pneg %p156
        $region34: #{tpu_custom_call.1} parent=11 // pred_check_branch
          %375 = sbr.rel (%p373) target = $region36
        $region35: #{tpu_custom_call.1} parent=11 // pred_region
          %377 = vsyncadd [#allocation13], 0
          %s378 = sshll.u32 %s5, 4
          %s379 = int_to_ptr.hbm [resolvable:$true] %s378
          %s380 = sshll.u32 [#allocation12], 4
          %s381 = int_to_ptr.vmem [resolvable:$true] %s380
          %386 = dma.hbm_to_vmem [thread:$0]  %s379, 1024, %s381, [#allocation13], 64, 64, 4
        $region36: #{tpu_custom_call.1} parent=11 // pred_fallthru
          _
        // Predicated region
        $region37: #{tpu_custom_call.1} parent=11 // pred_check
          %p387 = pneg %p177
        $region38: #{tpu_custom_call.1} parent=11 // pred_check_branch
          %389 = sbr.rel (%p387) target = $region40
        $region39: #{tpu_custom_call.1} parent=11 // pred_region
          %391 = vsyncadd [#allocation13], 0
          %s393 = sshll.u32 %s6, 4
          %s394 = int_to_ptr.hbm [resolvable:$true] %s393
          %s395 = sshll.u32 [#allocation14], 4
          %s396 = int_to_ptr.vmem [resolvable:$true] %s395
          %398 = dma.hbm_to_vmem [thread:$0]  %s394, 16, %s396, [#allocation13]
        $region40: #{tpu_custom_call.1} parent=11 // pred_fallthru
          _
      $region12: #{tpu_custom_call.1} parent=5 // pred_fallthru
        _
      %p399 = scmp.lt.s32.totalorder %s30, 2
      // Predicated region
      $region41: #{tpu_custom_call.1} parent=5 // pred_check
        %p400 = pneg %p399
      $region42: #{tpu_custom_call.1} parent=5 // pred_check_branch
        %402 = sbr.rel (%p400) target = $region44
      $region43: #{tpu_custom_call.1} parent=5 // pred_region
        // Predicated region
        $region45: #{tpu_custom_call.1} parent=43 // pred_check
          %p403 = pneg %p197
        $region46: #{tpu_custom_call.1} parent=43 // pred_check_branch
          %405 = sbr.rel (%p403) target = $region48
        $region47: #{tpu_custom_call.1} parent=43 // pred_region
          %s406 = sand.u32 %s187, 1
          %s407 = scalar_lea.sflag [#allocation16], %s406
          %s408 = sand.u32 %s187, 1
          %s409 = smul.addr %s408, 2048
          %s410 = scalar_lea.vmem [#allocation15], %s409
          %s411 = smul.u32 32, %s30
          %413 = vsyncadd %s407, 0
          %s414 = smul.addr %s411, 4
          %s415 = scalar_lea.hbm %s7, %s414
          %s416 = sshll.u32 %s415, 4
          %s417 = int_to_ptr.hbm [resolvable:$true] %s416
          %s418 = sshll.u32 %s410, 4
          %s419 = int_to_ptr.vmem [resolvable:$true] %s418
          %424 = dma.hbm_to_vmem [thread:$0]  %s417, 32768, %s419, %s407, 4096, 2048, 128
        $region48: #{tpu_custom_call.1} parent=43 // pred_fallthru
          _
      $region44: #{tpu_custom_call.1} parent=5 // pred_fallthru
        _
      %p425 = scmp.le.s32.totalorder 1, %s30
      %p426 = scmp.lt.s32.totalorder %s30, 3
      %p427 = pnand %p425, %p426
      %p428 = pneg %p427
      // Predicated region
      $region49: #{tpu_custom_call.1} parent=5 // pred_check
        _
      $region50: #{tpu_custom_call.1} parent=5 // pred_check_branch
        %430 = sbr.rel (%p427) target = $region52
      $region51: #{tpu_custom_call.1} parent=5 // pred_region
        %s431 = ssub.s32 %s30, 1
        // Predicated region
        $region53: #{tpu_custom_call.1} parent=51 // pred_check
          %p432 = pneg %p51
        $region54: #{tpu_custom_call.1} parent=51 // pred_check_branch
          %434 = sbr.rel (%p432) target = $region56
        $region55: #{tpu_custom_call.1} parent=51 // pred_region
          %436 = dma.done [#allocation4], 1024
        $region56: #{tpu_custom_call.1} parent=51 // pred_fallthru
          _
        // Predicated region
        $region57: #{tpu_custom_call.1} parent=51 // pred_check
          %p437 = pneg %p72
        $region58: #{tpu_custom_call.1} parent=51 // pred_check_branch
          %439 = sbr.rel (%p437) target = $region60
        $region59: #{tpu_custom_call.1} parent=51 // pred_region
          %441 = dma.done [#allocation7], 2048
        $region60: #{tpu_custom_call.1} parent=51 // pred_fallthru
          _
        // Predicated region
        $region61: #{tpu_custom_call.1} parent=51 // pred_check
          %p442 = pneg %p93
        $region62: #{tpu_custom_call.1} parent=51 // pred_check_branch
          %444 = sbr.rel (%p442) target = $region64
        $region63: #{tpu_custom_call.1} parent=51 // pred_region
          %446 = dma.done [#allocation7], 32
        $region64: #{tpu_custom_call.1} parent=51 // pred_fallthru
          _
        // Predicated region
        $region65: #{tpu_custom_call.1} parent=51 // pred_check
          %p447 = pneg %p114
        $region66: #{tpu_custom_call.1} parent=51 // pred_check_branch
          %449 = sbr.rel (%p447) target = $region68
        $region67: #{tpu_custom_call.1} parent=51 // pred_region
          %451 = dma.done [#allocation10], 1024
        $region68: #{tpu_custom_call.1} parent=51 // pred_fallthru
          _
        // Predicated region
        $region69: #{tpu_custom_call.1} parent=51 // pred_check
          %p452 = pneg %p135
        $region70: #{tpu_custom_call.1} parent=51 // pred_check_branch
          %454 = sbr.rel (%p452) target = $region72
        $region71: #{tpu_custom_call.1} parent=51 // pred_region
          %456 = dma.done [#allocation10], 16
        $region72: #{tpu_custom_call.1} parent=51 // pred_fallthru
          _
        // Predicated region
        $region73: #{tpu_custom_call.1} parent=51 // pred_check
          %p457 = pneg %p156
        $region74: #{tpu_custom_call.1} parent=51 // pred_check_branch
          %459 = sbr.rel (%p457) target = $region76
        $region75: #{tpu_custom_call.1} parent=51 // pred_region
          %461 = dma.done [#allocation13], 1024
        $region76: #{tpu_custom_call.1} parent=51 // pred_fallthru
          _
        // Predicated region
        $region77: #{tpu_custom_call.1} parent=51 // pred_check
          %p462 = pneg %p177
        $region78: #{tpu_custom_call.1} parent=51 // pred_check_branch
          %464 = sbr.rel (%p462) target = $region80
        $region79: #{tpu_custom_call.1} parent=51 // pred_region
          %466 = dma.done [#allocation13], 16
        $region80: #{tpu_custom_call.1} parent=51 // pred_fallthru
          _
        %s467 = sand.u32 %s190, 1
        %s468 = scalar_lea.sflag [#allocation16], %s467
        %s469 = sand.u32 %s190, 1
        %s470 = smul.addr %s469, 2048
        %s471 = scalar_lea.vmem [#allocation15], %s470
        // Predicated region
        $region81: #{tpu_custom_call.1} parent=51 // pred_check
          %p472 = pneg %p203
        $region82: #{tpu_custom_call.1} parent=51 // pred_check_branch
          %474 = sbr.rel (%p472) target = $region84
        $region83: #{tpu_custom_call.1} parent=51 // pred_region
          %476 = dma.done %s468, 32768
        $region84: #{tpu_custom_call.1} parent=51 // pred_fallthru
          _
        %p477 = pneg %p51
        %p478 = pneg %p48
        %p479 = pneg %p72
        %p480 = pneg %p69
        %p481 = pneg %p93
        %p482 = pneg %p90
        %p483 = pneg %p114
        %p484 = pneg %p111
        %p485 = pneg %p135
        %p486 = pneg %p132
        %p487 = pneg %p156
        %p488 = pneg %p153
        %p489 = pneg %p177
        %p490 = pneg %p174
        %s491 = sand.u32 %s190, 1
        %s492 = scalar_lea.sflag [#allocation16], %s491
        %s493 = sand.u32 %s190, 1
        %s494 = smul.addr %s493, 2048
        %s495 = scalar_lea.vmem [#allocation15], %s494
        %p496 = pneg %p203
        %p497 = pneg %p200
        %p498 = pneg %p224
        %p499 = pneg %p221
        %p500 = pneg %p245
        %p501 = pneg %p242
        %p502 = pneg %p266
        %p503 = pneg %p263
        %p504 = pneg %p292
        %p505 = pneg %p289
        %s506 = sand.u32 %s279, 1
        %s507 = scalar_lea.sflag [#allocation22], %s506
        %s508 = sand.u32 %s279, 1
        %s509 = smul.addr %s508, 256
        %s510 = scalar_lea.vmem [#allocation21], %s509
        %s511 = smul.u32 32, %s35
        %s512 = smul.u32 32, %s35
        %p513 = scmp.eq.s32.totalorder %s35, 0
        // Predicated region
        $region85: #{tpu_custom_call.1} parent=51 // pred_check
          %p514 = pneg %p513
        $region86: #{tpu_custom_call.1} parent=51 // pred_check_branch
          %516 = sbr.rel (%p514) target = $region88
        $region87: #{tpu_custom_call.1} parent=51 // pred_region
          %v517 = vld [vmem:[#allocation3] sm:$0xff]
          %v518 = vld [vmem:[#allocation3 + $0x8] sm:$0xff]
          %v519 = vld [vmem:[#allocation3 + $0x10] sm:$0xff]
          %v520 = vld [vmem:[#allocation3 + $0x18] sm:$0xff]
          %v521 = vld [vmem:[#allocation3 + $0x20] sm:$0xff]
          %v522 = vld [vmem:[#allocation3 + $0x28] sm:$0xff]
          %v523 = vld [vmem:[#allocation3 + $0x30] sm:$0xff]
          %v524 = vld [vmem:[#allocation3 + $0x38] sm:$0xff]
          %v525 = vrot.slane %v517, 4
          %v526 = vadd.f32 %v517, %v525
          %v527 = vrot.slane %v526, 2
          %v528 = vadd.f32 %v526, %v527
          %v529 = vrot.slane %v528, 1
          %v530 = vadd.f32 %v528, %v529
          %v531 = vrot.slane %v518, 4
          %v532 = vadd.f32 %v518, %v531
          %v533 = vrot.slane %v532, 2
          %v534 = vadd.f32 %v532, %v533
          %v535 = vrot.slane %v534, 1
          %v536 = vadd.f32 %v534, %v535
          %v537 = vrot.slane %v519, 4
          %v538 = vadd.f32 %v519, %v537
          %v539 = vrot.slane %v538, 2
          %v540 = vadd.f32 %v538, %v539
          %v541 = vrot.slane %v540, 1
          %v542 = vadd.f32 %v540, %v541
          %v543 = vrot.slane %v520, 4
          %v544 = vadd.f32 %v520, %v543
          %v545 = vrot.slane %v544, 2
          %v546 = vadd.f32 %v544, %v545
          %v547 = vrot.slane %v546, 1
          %v548 = vadd.f32 %v546, %v547
          %v549 = vrot.slane %v521, 4
          %v550 = vadd.f32 %v521, %v549
          %v551 = vrot.slane %v550, 2
          %v552 = vadd.f32 %v550, %v551
          %v553 = vrot.slane %v552, 1
          %v554 = vadd.f32 %v552, %v553
          %v555 = vrot.slane %v522, 4
          %v556 = vadd.f32 %v522, %v555
          %v557 = vrot.slane %v556, 2
          %v558 = vadd.f32 %v556, %v557
          %v559 = vrot.slane %v558, 1
          %v560 = vadd.f32 %v558, %v559
          %v561 = vrot.slane %v523, 4
          %v562 = vadd.f32 %v523, %v561
          %v563 = vrot.slane %v562, 2
          %v564 = vadd.f32 %v562, %v563
          %v565 = vrot.slane %v564, 1
          %v566 = vadd.f32 %v564, %v565
          %v567 = vrot.slane %v524, 4
          %v568 = vadd.f32 %v524, %v567
          %v569 = vrot.slane %v568, 2
          %v570 = vadd.f32 %v568, %v569
          %v571 = vrot.slane %v570, 1
          %v572 = vadd.f32 %v570, %v571
          %v573 = vmul.f32 %v530, 0.125
          %v574 = vmul.f32 %v536, 0.125
          %v575 = vmul.f32 %v542, 0.125
          %v576 = vmul.f32 %v548, 0.125
          %v577 = vmul.f32 %v554, 0.125
          %v578 = vmul.f32 %v560, 0.125
          %v579 = vmul.f32 %v566, 0.125
          %v580 = vmul.f32 %v572, 0.125
          %vm589 = vcmask 1041409
          %v590 = vsel %vm589, %v574, %v573
          %vm591 = vcmask 1042434
          %v592 = vsel %vm591, %v575, %v590
          %vm593 = vcmask 1043459
          %v594 = vsel %vm593, %v576, %v592
          %vm595 = vcmask 1044484
          %v596 = vsel %vm595, %v577, %v594
          %vm597 = vcmask 1045509
          %v598 = vsel %vm597, %v578, %v596
          %vm599 = vcmask 1046534
          %v600 = vsel %vm599, %v579, %v598
          %vm601 = vcmask 1047559
          %v602 = vsel %vm601, %v580, %v600
          %604 = vst [vmem:[#allocation18] sm:$0xff] %v602
          %v605 = vpack.c.bf16 %v573, %v573
          %v606 = vpack.c.bf16 %v574, %v574
          %v607 = vpack.c.bf16 %v575, %v575
          %v608 = vpack.c.bf16 %v576, %v576
          %v609 = vpack.c.bf16 %v577, %v577
          %v610 = vpack.c.bf16 %v578, %v578
          %v611 = vpack.c.bf16 %v579, %v579
          %v612 = vpack.c.bf16 %v580, %v580
          %v613 = vld [vmem:[#allocation6] sm:$0xff]
          %v614 = vld [vmem:[#allocation6 + $0x8] sm:$0xff]
          %v615 = vld [vmem:[#allocation6 + $0x10] sm:$0xff]
          %v616 = vld [vmem:[#allocation6 + $0x18] sm:$0xff]
          %v617 = vld [vmem:[#allocation6 + $0x20] sm:$0xff]
          %v618 = vld [vmem:[#allocation6 + $0x28] sm:$0xff]
          %v619 = vld [vmem:[#allocation6 + $0x30] sm:$0xff]
          %v620 = vld [vmem:[#allocation6 + $0x38] sm:$0xff]
          %v621 = vld [vmem:[#allocation6 + $0x40] sm:$0xff]
          %v622 = vld [vmem:[#allocation6 + $0x48] sm:$0xff]
          %v623 = vld [vmem:[#allocation6 + $0x50] sm:$0xff]
          %v624 = vld [vmem:[#allocation6 + $0x58] sm:$0xff]
          %v625 = vld [vmem:[#allocation6 + $0x60] sm:$0xff]
          %v626 = vld [vmem:[#allocation6 + $0x68] sm:$0xff]
          %v627 = vld [vmem:[#allocation6 + $0x70] sm:$0xff]
          %v628 = vld [vmem:[#allocation6 + $0x78] sm:$0xff]
          %v629 = vld [vmem:[#allocation8] sm:$0x3]
          %v631 = vperm.slane %v629, 0
          %v632 = vperm.slane %v629, 1
          %v643 = vunpack.c.l.b16 %v605
          %v644 = vunpack.c.l.b16 %v606
          %v645 = vunpack.c.l.b16 %v607
          %v646 = vunpack.c.l.b16 %v608
          %v647 = vunpack.c.l.b16 %v609
          %v648 = vunpack.c.l.b16 %v610
          %v649 = vunpack.c.l.b16 %v611
          %v650 = vunpack.c.l.b16 %v612
          %v651 = vsel %vm589, %v644, %v643
          %v652 = vsel %vm591, %v645, %v651
          %v653 = vsel %vm593, %v646, %v652
          %v654 = vsel %vm595, %v647, %v653
          %v655 = vsel %vm597, %v648, %v654
          %v656 = vsel %vm599, %v649, %v655
          %v657 = vsel %vm601, %v650, %v656
          %v658 = vpack.c.b16 %v657, %v657
          %v676 = vunpack.c.l.b16 %v613
          %v677 = vunpack.c.h.b16 %v613
          %v678 = vunpack.c.l.b16 %v614
          %v679 = vunpack.c.h.b16 %v614
          %v680 = vunpack.c.l.b16 %v615
          %v681 = vunpack.c.h.b16 %v615
          %v682 = vunpack.c.l.b16 %v616
          %v683 = vunpack.c.h.b16 %v616
          %v684 = vunpack.c.l.b16 %v617
          %v685 = vunpack.c.h.b16 %v617
          %v686 = vunpack.c.l.b16 %v618
          %v687 = vunpack.c.h.b16 %v618
          %v688 = vunpack.c.l.b16 %v619
          %v689 = vunpack.c.h.b16 %v619
          %v690 = vunpack.c.l.b16 %v620
          %v691 = vunpack.c.h.b16 %v620
          %v692 = vunpack.c.l.b16 %v621
          %v693 = vunpack.c.h.b16 %v621
          %v694 = vunpack.c.l.b16 %v622
          %v695 = vunpack.c.h.b16 %v622
          %v696 = vunpack.c.l.b16 %v623
          %v697 = vunpack.c.h.b16 %v623
          %v698 = vunpack.c.l.b16 %v624
          %v699 = vunpack.c.h.b16 %v624
          %v700 = vunpack.c.l.b16 %v625
          %v701 = vunpack.c.h.b16 %v625
          %v702 = vunpack.c.l.b16 %v626
          %v703 = vunpack.c.h.b16 %v626
          %v704 = vunpack.c.l.b16 %v627
          %v705 = vunpack.c.h.b16 %v627
          %v706 = vunpack.c.l.b16 %v628
          %v707 = vunpack.c.h.b16 %v628
          %v708 = vpack.c.b16 %v678, %v676
          %v709 = vpack.c.b16 %v679, %v677
          %v710 = vpack.c.b16 %v682, %v680
          %v711 = vpack.c.b16 %v683, %v681
          %v712 = vpack.c.b16 %v686, %v684
          %v713 = vpack.c.b16 %v687, %v685
          %v714 = vpack.c.b16 %v690, %v688
          %v715 = vpack.c.b16 %v691, %v689
          %v716 = vpack.c.b16 %v694, %v692
          %v717 = vpack.c.b16 %v695, %v693
          %v718 = vpack.c.b16 %v698, %v696
          %v719 = vpack.c.b16 %v699, %v697
          %v720 = vpack.c.b16 %v702, %v700
          %v721 = vpack.c.b16 %v703, %v701
          %v722 = vpack.c.b16 %v706, %v704
          %v723 = vpack.c.b16 %v707, %v705
          %740 = vmatpush.bf16.msra.mxu0 %v722
          %741 = vmatpush.bf16.msra.mxu0 %v720
          %742 = vmatpush.bf16.msra.mxu0 %v718
          %743 = vmatpush.bf16.msra.mxu0 %v716
          %744 = vmatpush.bf16.msra.mxu0 %v714
          %745 = vmatpush.bf16.msra.mxu0 %v712
          %746 = vmatpush.bf16.msra.mxu0 %v710
          %747 = vmatpush.bf16.msra.mxu0 %v708
          %748 = vmatmul.bf16.gmra.mxu0 %v658
          %v749 = vpop.f32.mrf.mxu0
          %v750 = vadd.f32 %v631, %v749
          %v751 = vpop.f32.mrf.mxu0
          %752 = vdwg.mxu0
          %753 = vmatpush.bf16.msra.mxu0 %v723
          %754 = vmatpush.bf16.msra.mxu0 %v721
          %755 = vmatpush.bf16.msra.mxu0 %v719
          %756 = vmatpush.bf16.msra.mxu0 %v717
          %757 = vmatpush.bf16.msra.mxu0 %v715
          %758 = vmatpush.bf16.msra.mxu0 %v713
          %759 = vmatpush.bf16.msra.mxu0 %v711
          %760 = vmatpush.bf16.msra.mxu0 %v709
          %761 = vmatmul.bf16.gmra.mxu0 %v658
          %v762 = vpop.f32.mrf.mxu0
          %v763 = vadd.f32 %v632, %v762
          %v764 = vpop.f32.mrf.mxu0
          %765 = vdwg.mxu0
          %v766 = vtanh.pop %v750
          %v767 = vtanh.pop %v763
          %v768 = vpack.c.bf16 %v766, %v766
          %v769 = vld [vmem:[#allocation9] sm:$0xf]
          %v770 = vld [vmem:[#allocation9 + $0x4] sm:$0xf]
          %v771 = vld [vmem:[#allocation9 + $0x8] sm:$0xf]
          %v772 = vld [vmem:[#allocation9 + $0xc] sm:$0xf]
          %v773 = vld [vmem:[#allocation9 + $0x10] sm:$0xf]
          %v774 = vld [vmem:[#allocation9 + $0x14] sm:$0xf]
          %v775 = vld [vmem:[#allocation9 + $0x18] sm:$0xf]
          %v776 = vld [vmem:[#allocation9 + $0x1c] sm:$0xf]
          %v777 = vld [vmem:[#allocation9 + $0x20] sm:$0xf]
          %v778 = vld [vmem:[#allocation9 + $0x24] sm:$0xf]
          %v779 = vld [vmem:[#allocation9 + $0x28] sm:$0xf]
          %v780 = vld [vmem:[#allocation9 + $0x2c] sm:$0xf]
          %v781 = vld [vmem:[#allocation9 + $0x30] sm:$0xf]
          %v782 = vld [vmem:[#allocation9 + $0x34] sm:$0xf]
          %v783 = vld [vmem:[#allocation9 + $0x38] sm:$0xf]
          %v784 = vld [vmem:[#allocation9 + $0x3c] sm:$0xf]
          %v785 = vld [vmem:[#allocation11] sm:$0x1]
          %v787 = vperm.slane %v785, 0
          %v805 = vunpack.c.l.b16 %v769
          %v806 = vunpack.c.l.b16 %v770
          %v807 = vunpack.c.l.b16 %v771
          %v808 = vunpack.c.l.b16 %v772
          %v809 = vunpack.c.l.b16 %v773
          %v810 = vunpack.c.l.b16 %v774
          %v811 = vunpack.c.l.b16 %v775
          %v812 = vunpack.c.l.b16 %v776
          %v813 = vunpack.c.l.b16 %v777
          %v814 = vunpack.c.l.b16 %v778
          %v815 = vunpack.c.l.b16 %v779
          %v816 = vunpack.c.l.b16 %v780
          %v817 = vunpack.c.l.b16 %v781
          %v818 = vunpack.c.l.b16 %v782
          %v819 = vunpack.c.l.b16 %v783
          %v820 = vunpack.c.l.b16 %v784
          %v821 = vpack.c.b16 %v806, %v805
          %v822 = vpack.c.b16 %v808, %v807
          %v823 = vpack.c.b16 %v810, %v809
          %v824 = vpack.c.b16 %v812, %v811
          %v825 = vpack.c.b16 %v814, %v813
          %v826 = vpack.c.b16 %v816, %v815
          %v827 = vpack.c.b16 %v818, %v817
          %v828 = vpack.c.b16 %v820, %v819
          %837 = vmatpush.bf16.msra.mxu0 %v828
          %838 = vmatpush.bf16.msra.mxu0 %v827
          %839 = vmatpush.bf16.msra.mxu0 %v826
          %840 = vmatpush.bf16.msra.mxu0 %v825
          %841 = vmatpush.bf16.msra.mxu0 %v824
          %842 = vmatpush.bf16.msra.mxu0 %v823
          %843 = vmatpush.bf16.msra.mxu0 %v822
          %844 = vmatpush.bf16.msra.mxu0 %v821
          %845 = vmatmul.bf16.gmra.mxu0 %v768
          %v846 = vpop.f32.mrf.mxu0
          %v847 = vadd.f32 %v787, %v846
          %v848 = vpop.f32.mrf.mxu0
          %849 = vdwg.mxu0
          %v850 = vlaneseq
          %v851 = vand.u32 %v850, 127
          %vm852 = vcmp.lt.s32.totalorder %v851, 4
          %v853 = vsel %vm852, %v847, -inf
          %854 = vmax.xlane.f32.xlu0 %v853
          %v855 = vpop.xlane.xlu0 %854
          %v856 = vsub.f32 %v853, %v855
          %v857 = vmul.f32 %v856, 1.442695
          %v858 = vpow.pop %v857
          %859 = vadd.xlane.f32.xlu0 %v858
          %v860 = vpop.xlane.xlu0 %859
          %v861 = vrcp.pop %v860
          %v862 = vmul.f32 %v860, %v861
          %v863 = vsub.f32 1.0, %v862
          %v864 = vmul.f32 %v861, %v863
          %v865 = vadd.f32 %v861, %v864
          %vm866 = vweird.f32 %v860
          %vm867 = vweird.f32 %v861
          %vm868 = vmor %vm866, %vm867
          %v869 = vsel %vm868, %v861, %v865
          %v870 = vand.u32 2147483647, %v860
          %vm871 = vcmp.eq.f32.partialorder %v870, 8.507059e+37
          %v872 = vand.u32 %v860, 2147483648
          %v873 = vor.u32 1.1754944e-38, %v872
          %v874 = vsel %vm871, %v873, %v869
          %v875 = vmul.f32 %v858, %v874
          %876 = vst [vmem:[#allocation17] sm:$0xff] %v875
          %v877 = vpack.c.bf16 %v767, %v767
          %v878 = vld [vmem:[#allocation12] sm:$0xf]
          %v879 = vld [vmem:[#allocation12 + $0x4] sm:$0xf]
          %v880 = vld [vmem:[#allocation12 + $0x8] sm:$0xf]
          %v881 = vld [vmem:[#allocation12 + $0xc] sm:$0xf]
          %v882 = vld [vmem:[#allocation12 + $0x10] sm:$0xf]
          %v883 = vld [vmem:[#allocation12 + $0x14] sm:$0xf]
          %v884 = vld [vmem:[#allocation12 + $0x18] sm:$0xf]
          %v885 = vld [vmem:[#allocation12 + $0x1c] sm:$0xf]
          %v886 = vld [vmem:[#allocation12 + $0x20] sm:$0xf]
          %v887 = vld [vmem:[#allocation12 + $0x24] sm:$0xf]
          %v888 = vld [vmem:[#allocation12 + $0x28] sm:$0xf]
          %v889 = vld [vmem:[#allocation12 + $0x2c] sm:$0xf]
          %v890 = vld [vmem:[#allocation12 + $0x30] sm:$0xf]
          %v891 = vld [vmem:[#allocation12 + $0x34] sm:$0xf]
          %v892 = vld [vmem:[#allocation12 + $0x38] sm:$0xf]
          %v893 = vld [vmem:[#allocation12 + $0x3c] sm:$0xf]
          %v894 = vld [vmem:[#allocation14] sm:$0x1]
          %v896 = vperm.slane %v894, 0
          %v914 = vunpack.c.l.b16 %v878
          %v915 = vunpack.c.l.b16 %v879
          %v916 = vunpack.c.l.b16 %v880
          %v917 = vunpack.c.l.b16 %v881
          %v918 = vunpack.c.l.b16 %v882
          %v919 = vunpack.c.l.b16 %v883
          %v920 = vunpack.c.l.b16 %v884
          %v921 = vunpack.c.l.b16 %v885
          %v922 = vunpack.c.l.b16 %v886
          %v923 = vunpack.c.l.b16 %v887
          %v924 = vunpack.c.l.b16 %v888
          %v925 = vunpack.c.l.b16 %v889
          %v926 = vunpack.c.l.b16 %v890
          %v927 = vunpack.c.l.b16 %v891
          %v928 = vunpack.c.l.b16 %v892
          %v929 = vunpack.c.l.b16 %v893
          %v930 = vpack.c.b16 %v915, %v914
          %v931 = vpack.c.b16 %v917, %v916
          %v932 = vpack.c.b16 %v919, %v918
          %v933 = vpack.c.b16 %v921, %v920
          %v934 = vpack.c.b16 %v923, %v922
          %v935 = vpack.c.b16 %v925, %v924
          %v936 = vpack.c.b16 %v927, %v926
          %v937 = vpack.c.b16 %v929, %v928
          %946 = vmatpush.bf16.msra.mxu0 %v937
          %947 = vmatpush.bf16.msra.mxu0 %v936
          %948 = vmatpush.bf16.msra.mxu0 %v935
          %949 = vmatpush.bf16.msra.mxu0 %v934
          %950 = vmatpush.bf16.msra.mxu0 %v933
          %951 = vmatpush.bf16.msra.mxu0 %v932
          %952 = vmatpush.bf16.msra.mxu0 %v931
          %953 = vmatpush.bf16.msra.mxu0 %v930
          %954 = vmatmul.bf16.gmra.mxu0 %v877
          %v955 = vpop.f32.mrf.mxu0
          %v956 = vadd.f32 %v896, %v955
          %v957 = vpop.f32.mrf.mxu0
          %958 = vdwg.mxu0
          %v959 = vmul.f32 %v956, %v956
          %960 = vadd.xlane.f32.xlu0 %v959
          %v961 = vpop.xlane.xlu0 %960
          %v962 = vlaneseq
          %v963 = vshrl.u32 %v962, 7
          %vm964 = vcmp.lt.s32.totalorder %v963, 2
          %v965 = vrsqrt.pop %v961
          %v966 = vmul.f32 %v965, %v961
          %v967 = vmul.f32 %v966, %v965
          %v968 = vmul.f32 0.5, %v967
          %v969 = vsub.f32 1.5, %v968
          %v970 = vmul.f32 %v965, %v969
          %vm971 = vweird.f32 %v961
          %vm972 = vweird.f32 %v965
          %vm973 = vmor %vm971, %vm972
          %v974 = vsel %vm973, %v965, %v970
          %v975 = vmul.f32 %v956, %v974
          %v976 = vsel %vm964, 1, 0
          %vm977 = vcmp.eq.s32.totalorder %v976, 1
          %v978 = vsel %vm977, %v975, 0.0
          %979 = vst [vmem:[#allocation20] sm:$0xff] %v978
          %v980 = vpack.c.bf16 %v978, %v978
          %981 = vst [vmem:[#allocation2] sm:$0xf] %v980
        $region88: #{tpu_custom_call.1} parent=51 // pred_fallthru
          _
        %v982 = vld [vmem:[#allocation2] sm:$0xf]
        %v983 = vld [vmem:[%s471] sm:$0xff]
        %v984 = vld [vmem:[%s471 + $0x8] sm:$0xff]
        %v985 = vld [vmem:[%s471 + $0x10] sm:$0xff]
        %v986 = vld [vmem:[%s471 + $0x18] sm:$0xff]
        %v987 = vld [vmem:[%s471 + $0x20] sm:$0xff]
        %v988 = vld [vmem:[%s471 + $0x28] sm:$0xff]
        %v989 = vld [vmem:[%s471 + $0x30] sm:$0xff]
        %v990 = vld [vmem:[%s471 + $0x38] sm:$0xff]
        %v991 = vld [vmem:[%s471 + $0x40] sm:$0xff]
        %v992 = vld [vmem:[%s471 + $0x48] sm:$0xff]
        %v993 = vld [vmem:[%s471 + $0x50] sm:$0xff]
        %v994 = vld [vmem:[%s471 + $0x58] sm:$0xff]
        %v995 = vld [vmem:[%s471 + $0x60] sm:$0xff]
        %v996 = vld [vmem:[%s471 + $0x68] sm:$0xff]
        %v997 = vld [vmem:[%s471 + $0x70] sm:$0xff]
        %v998 = vld [vmem:[%s471 + $0x78] sm:$0xff]
        %v999 = vld [vmem:[%s471 + $0x80] sm:$0xff]
        %v1000 = vld [vmem:[%s471 + $0x88] sm:$0xff]
        %v1001 = vld [vmem:[%s471 + $0x90] sm:$0xff]
        %v1002 = vld [vmem:[%s471 + $0x98] sm:$0xff]
        %v1003 = vld [vmem:[%s471 + $0xa0] sm:$0xff]
        %v1004 = vld [vmem:[%s471 + $0xa8] sm:$0xff]
        %v1005 = vld [vmem:[%s471 + $0xb0] sm:$0xff]
        %v1006 = vld [vmem:[%s471 + $0xb8] sm:$0xff]
        %v1007 = vld [vmem:[%s471 + $0xc0] sm:$0xff]
        %v1008 = vld [vmem:[%s471 + $0xc8] sm:$0xff]
        %v1009 = vld [vmem:[%s471 + $0xd0] sm:$0xff]
        %v1010 = vld [vmem:[%s471 + $0xd8] sm:$0xff]
        %v1011 = vld [vmem:[%s471 + $0xe0] sm:$0xff]
        %v1012 = vld [vmem:[%s471 + $0xe8] sm:$0xff]
        %v1013 = vld [vmem:[%s471 + $0xf0] sm:$0xff]
        %v1014 = vld [vmem:[%s471 + $0xf8] sm:$0xff]
        %v1015 = vld [vmem:[%s471 + $0x100] sm:$0xff]
        %v1016 = vld [vmem:[%s471 + $0x108] sm:$0xff]
        %v1017 = vld [vmem:[%s471 + $0x110] sm:$0xff]
        %v1018 = vld [vmem:[%s471 + $0x118] sm:$0xff]
        %v1019 = vld [vmem:[%s471 + $0x120] sm:$0xff]
        %v1020 = vld [vmem:[%s471 + $0x128] sm:$0xff]
        %v1021 = vld [vmem:[%s471 + $0x130] sm:$0xff]
        %v1022 = vld [vmem:[%s471 + $0x138] sm:$0xff]
        %v1023 = vld [vmem:[%s471 + $0x140] sm:$0xff]
        %v1024 = vld [vmem:[%s471 + $0x148] sm:$0xff]
        %v1025 = vld [vmem:[%s471 + $0x150] sm:$0xff]
        %v1026 = vld [vmem:[%s471 + $0x158] sm:$0xff]
        %v1027 = vld [vmem:[%s471 + $0x160] sm:$0xff]
        %v1028 = vld [vmem:[%s471 + $0x168] sm:$0xff]
        %v1029 = vld [vmem:[%s471 + $0x170] sm:$0xff]
        %v1030 = vld [vmem:[%s471 + $0x178] sm:$0xff]
        %v1031 = vld [vmem:[%s471 + $0x180] sm:$0xff]
        %v1032 = vld [vmem:[%s471 + $0x188] sm:$0xff]
        %v1033 = vld [vmem:[%s471 + $0x190] sm:$0xff]
        %v1034 = vld [vmem:[%s471 + $0x198] sm:$0xff]
        %v1035 = vld [vmem:[%s471 + $0x1a0] sm:$0xff]
        %v1036 = vld [vmem:[%s471 + $0x1a8] sm:$0xff]
        %v1037 = vld [vmem:[%s471 + $0x1b0] sm:$0xff]
        %v1038 = vld [vmem:[%s471 + $0x1b8] sm:$0xff]
        %v1039 = vld [vmem:[%s471 + $0x1c0] sm:$0xff]
        %v1040 = vld [vmem:[%s471 + $0x1c8] sm:$0xff]
        %v1041 = vld [vmem:[%s471 + $0x1d0] sm:$0xff]
        %v1042 = vld [vmem:[%s471 + $0x1d8] sm:$0xff]
        %v1043 = vld [vmem:[%s471 + $0x1e0] sm:$0xff]
        %v1044 = vld [vmem:[%s471 + $0x1e8] sm:$0xff]
        %v1045 = vld [vmem:[%s471 + $0x1f0] sm:$0xff]
        %v1046 = vld [vmem:[%s471 + $0x1f8] sm:$0xff]
        %v1047 = vld [vmem:[%s471 + $0x200] sm:$0xff]
        %v1048 = vld [vmem:[%s471 + $0x208] sm:$0xff]
        %v1049 = vld [vmem:[%s471 + $0x210] sm:$0xff]
        %v1050 = vld [vmem:[%s471 + $0x218] sm:$0xff]
        %v1051 = vld [vmem:[%s471 + $0x220] sm:$0xff]
        %v1052 = vld [vmem:[%s471 + $0x228] sm:$0xff]
        %v1053 = vld [vmem:[%s471 + $0x230] sm:$0xff]
        %v1054 = vld [vmem:[%s471 + $0x238] sm:$0xff]
        %v1055 = vld [vmem:[%s471 + $0x240] sm:$0xff]
        %v1056 = vld [vmem:[%s471 + $0x248] sm:$0xff]
        %v1057 = vld [vmem:[%s471 + $0x250] sm:$0xff]
        %v1058 = vld [vmem:[%s471 + $0x258] sm:$0xff]
        %v1059 = vld [vmem:[%s471 + $0x260] sm:$0xff]
        %v1060 = vld [vmem:[%s471 + $0x268] sm:$0xff]
        %v1061 = vld [vmem:[%s471 + $0x270] sm:$0xff]
        %v1062 = vld [vmem:[%s471 + $0x278] sm:$0xff]
        %v1063 = vld [vmem:[%s471 + $0x280] sm:$0xff]
        %v1064 = vld [vmem:[%s471 + $0x288] sm:$0xff]
        %v1065 = vld [vmem:[%s471 + $0x290] sm:$0xff]
        %v1066 = vld [vmem:[%s471 + $0x298] sm:$0xff]
        %v1067 = vld [vmem:[%s471 + $0x2a0] sm:$0xff]
        %v1068 = vld [vmem:[%s471 + $0x2a8] sm:$0xff]
        %v1069 = vld [vmem:[%s471 + $0x2b0] sm:$0xff]
        %v1070 = vld [vmem:[%s471 + $0x2b8] sm:$0xff]
        %v1071 = vld [vmem:[%s471 + $0x2c0] sm:$0xff]
        %v1072 = vld [vmem:[%s471 + $0x2c8] sm:$0xff]
        %v1073 = vld [vmem:[%s471 + $0x2d0] sm:$0xff]
        %v1074 = vld [vmem:[%s471 + $0x2d8] sm:$0xff]
        %v1075 = vld [vmem:[%s471 + $0x2e0] sm:$0xff]
        %v1076 = vld [vmem:[%s471 + $0x2e8] sm:$0xff]
        %v1077 = vld [vmem:[%s471 + $0x2f0] sm:$0xff]
        %v1078 = vld [vmem:[%s471 + $0x2f8] sm:$0xff]
        %v1079 = vld [vmem:[%s471 + $0x300] sm:$0xff]
        %v1080 = vld [vmem:[%s471 + $0x308] sm:$0xff]
        %v1081 = vld [vmem:[%s471 + $0x310] sm:$0xff]
        %v1082 = vld [vmem:[%s471 + $0x318] sm:$0xff]
        %v1083 = vld [vmem:[%s471 + $0x320] sm:$0xff]
        %v1084 = vld [vmem:[%s471 + $0x328] sm:$0xff]
        %v1085 = vld [vmem:[%s471 + $0x330] sm:$0xff]
        %v1086 = vld [vmem:[%s471 + $0x338] sm:$0xff]
        %v1087 = vld [vmem:[%s471 + $0x340] sm:$0xff]
        %v1088 = vld [vmem:[%s471 + $0x348] sm:$0xff]
        %v1089 = vld [vmem:[%s471 + $0x350] sm:$0xff]
        %v1090 = vld [vmem:[%s471 + $0x358] sm:$0xff]
        %v1091 = vld [vmem:[%s471 + $0x360] sm:$0xff]
        %v1092 = vld [vmem:[%s471 + $0x368] sm:$0xff]
        %v1093 = vld [vmem:[%s471 + $0x370] sm:$0xff]
        %v1094 = vld [vmem:[%s471 + $0x378] sm:$0xff]
        %v1095 = vld [vmem:[%s471 + $0x380] sm:$0xff]
        %v1096 = vld [vmem:[%s471 + $0x388] sm:$0xff]
        %v1097 = vld [vmem:[%s471 + $0x390] sm:$0xff]
        %v1098 = vld [vmem:[%s471 + $0x398] sm:$0xff]
        %v1099 = vld [vmem:[%s471 + $0x3a0] sm:$0xff]
        %v1100 = vld [vmem:[%s471 + $0x3a8] sm:$0xff]
        %v1101 = vld [vmem:[%s471 + $0x3b0] sm:$0xff]
        %v1102 = vld [vmem:[%s471 + $0x3b8] sm:$0xff]
        %v1103 = vld [vmem:[%s471 + $0x3c0] sm:$0xff]
        %v1104 = vld [vmem:[%s471 + $0x3c8] sm:$0xff]
        %v1105 = vld [vmem:[%s471 + $0x3d0] sm:$0xff]
        %v1106 = vld [vmem:[%s471 + $0x3d8] sm:$0xff]
        %v1107 = vld [vmem:[%s471 + $0x3e0] sm:$0xff]
        %v1108 = vld [vmem:[%s471 + $0x3e8] sm:$0xff]
        %v1109 = vld [vmem:[%s471 + $0x3f0] sm:$0xff]
        %v1110 = vld [vmem:[%s471 + $0x3f8] sm:$0xff]
        %v1111 = vld [vmem:[%s471 + $0x400] sm:$0xff]
        %v1112 = vld [vmem:[%s471 + $0x408] sm:$0xff]
        %v1113 = vld [vmem:[%s471 + $0x410] sm:$0xff]
        %v1114 = vld [vmem:[%s471 + $0x418] sm:$0xff]
        %v1115 = vld [vmem:[%s471 + $0x420] sm:$0xff]
        %v1116 = vld [vmem:[%s471 + $0x428] sm:$0xff]
        %v1117 = vld [vmem:[%s471 + $0x430] sm:$0xff]
        %v1118 = vld [vmem:[%s471 + $0x438] sm:$0xff]
        %v1119 = vld [vmem:[%s471 + $0x440] sm:$0xff]
        %v1120 = vld [vmem:[%s471 + $0x448] sm:$0xff]
        %v1121 = vld [vmem:[%s471 + $0x450] sm:$0xff]
        %v1122 = vld [vmem:[%s471 + $0x458] sm:$0xff]
        %v1123 = vld [vmem:[%s471 + $0x460] sm:$0xff]
        %v1124 = vld [vmem:[%s471 + $0x468] sm:$0xff]
        %v1125 = vld [vmem:[%s471 + $0x470] sm:$0xff]
        %v1126 = vld [vmem:[%s471 + $0x478] sm:$0xff]
        %v1127 = vld [vmem:[%s471 + $0x480] sm:$0xff]
        %v1128 = vld [vmem:[%s471 + $0x488] sm:$0xff]
        %v1129 = vld [vmem:[%s471 + $0x490] sm:$0xff]
        %v1130 = vld [vmem:[%s471 + $0x498] sm:$0xff]
        %v1131 = vld [vmem:[%s471 + $0x4a0] sm:$0xff]
        %v1132 = vld [vmem:[%s471 + $0x4a8] sm:$0xff]
        %v1133 = vld [vmem:[%s471 + $0x4b0] sm:$0xff]
        %v1134 = vld [vmem:[%s471 + $0x4b8] sm:$0xff]
        %v1135 = vld [vmem:[%s471 + $0x4c0] sm:$0xff]
        %v1136 = vld [vmem:[%s471 + $0x4c8] sm:$0xff]
        %v1137 = vld [vmem:[%s471 + $0x4d0] sm:$0xff]
        %v1138 = vld [vmem:[%s471 + $0x4d8] sm:$0xff]
        %v1139 = vld [vmem:[%s471 + $0x4e0] sm:$0xff]
        %v1140 = vld [vmem:[%s471 + $0x4e8] sm:$0xff]
        %v1141 = vld [vmem:[%s471 + $0x4f0] sm:$0xff]
        %v1142 = vld [vmem:[%s471 + $0x4f8] sm:$0xff]
        %v1143 = vld [vmem:[%s471 + $0x500] sm:$0xff]
        %v1144 = vld [vmem:[%s471 + $0x508] sm:$0xff]
        %v1145 = vld [vmem:[%s471 + $0x510] sm:$0xff]
        %v1146 = vld [vmem:[%s471 + $0x518] sm:$0xff]
        %v1147 = vld [vmem:[%s471 + $0x520] sm:$0xff]
        %v1148 = vld [vmem:[%s471 + $0x528] sm:$0xff]
        %v1149 = vld [vmem:[%s471 + $0x530] sm:$0xff]
        %v1150 = vld [vmem:[%s471 + $0x538] sm:$0xff]
        %v1151 = vld [vmem:[%s471 + $0x540] sm:$0xff]
        %v1152 = vld [vmem:[%s471 + $0x548] sm:$0xff]
        %v1153 = vld [vmem:[%s471 + $0x550] sm:$0xff]
        %v1154 = vld [vmem:[%s471 + $0x558] sm:$0xff]
        %v1155 = vld [vmem:[%s471 + $0x560] sm:$0xff]
        %v1156 = vld [vmem:[%s471 + $0x568] sm:$0xff]
        %v1157 = vld [vmem:[%s471 + $0x570] sm:$0xff]
        %v1158 = vld [vmem:[%s471 + $0x578] sm:$0xff]
        %v1159 = vld [vmem:[%s471 + $0x580] sm:$0xff]
        %v1160 = vld [vmem:[%s471 + $0x588] sm:$0xff]
        %v1161 = vld [vmem:[%s471 + $0x590] sm:$0xff]
        %v1162 = vld [vmem:[%s471 + $0x598] sm:$0xff]
        %v1163 = vld [vmem:[%s471 + $0x5a0] sm:$0xff]
        %v1164 = vld [vmem:[%s471 + $0x5a8] sm:$0xff]
        %v1165 = vld [vmem:[%s471 + $0x5b0] sm:$0xff]
        %v1166 = vld [vmem:[%s471 + $0x5b8] sm:$0xff]
        %v1167 = vld [vmem:[%s471 + $0x5c0] sm:$0xff]
        %v1168 = vld [vmem:[%s471 + $0x5c8] sm:$0xff]
        %v1169 = vld [vmem:[%s471 + $0x5d0] sm:$0xff]
        %v1170 = vld [vmem:[%s471 + $0x5d8] sm:$0xff]
        %v1171 = vld [vmem:[%s471 + $0x5e0] sm:$0xff]
        %v1172 = vld [vmem:[%s471 + $0x5e8] sm:$0xff]
        %v1173 = vld [vmem:[%s471 + $0x5f0] sm:$0xff]
        %v1174 = vld [vmem:[%s471 + $0x5f8] sm:$0xff]
        %v1175 = vld [vmem:[%s471 + $0x600] sm:$0xff]
        %v1176 = vld [vmem:[%s471 + $0x608] sm:$0xff]
        %v1177 = vld [vmem:[%s471 + $0x610] sm:$0xff]
        %v1178 = vld [vmem:[%s471 + $0x618] sm:$0xff]
        %v1179 = vld [vmem:[%s471 + $0x620] sm:$0xff]
        %v1180 = vld [vmem:[%s471 + $0x628] sm:$0xff]
        %v1181 = vld [vmem:[%s471 + $0x630] sm:$0xff]
        %v1182 = vld [vmem:[%s471 + $0x638] sm:$0xff]
        %v1183 = vld [vmem:[%s471 + $0x640] sm:$0xff]
        %v1184 = vld [vmem:[%s471 + $0x648] sm:$0xff]
        %v1185 = vld [vmem:[%s471 + $0x650] sm:$0xff]
        %v1186 = vld [vmem:[%s471 + $0x658] sm:$0xff]
        %v1187 = vld [vmem:[%s471 + $0x660] sm:$0xff]
        %v1188 = vld [vmem:[%s471 + $0x668] sm:$0xff]
        %v1189 = vld [vmem:[%s471 + $0x670] sm:$0xff]
        %v1190 = vld [vmem:[%s471 + $0x678] sm:$0xff]
        %v1191 = vld [vmem:[%s471 + $0x680] sm:$0xff]
        %v1192 = vld [vmem:[%s471 + $0x688] sm:$0xff]
        %v1193 = vld [vmem:[%s471 + $0x690] sm:$0xff]
        %v1194 = vld [vmem:[%s471 + $0x698] sm:$0xff]
        %v1195 = vld [vmem:[%s471 + $0x6a0] sm:$0xff]
        %v1196 = vld [vmem:[%s471 + $0x6a8] sm:$0xff]
        %v1197 = vld [vmem:[%s471 + $0x6b0] sm:$0xff]
        %v1198 = vld [vmem:[%s471 + $0x6b8] sm:$0xff]
        %v1199 = vld [vmem:[%s471 + $0x6c0] sm:$0xff]
        %v1200 = vld [vmem:[%s471 + $0x6c8] sm:$0xff]
        %v1201 = vld [vmem:[%s471 + $0x6d0] sm:$0xff]
        %v1202 = vld [vmem:[%s471 + $0x6d8] sm:$0xff]
        %v1203 = vld [vmem:[%s471 + $0x6e0] sm:$0xff]
        %v1204 = vld [vmem:[%s471 + $0x6e8] sm:$0xff]
        %v1205 = vld [vmem:[%s471 + $0x6f0] sm:$0xff]
        %v1206 = vld [vmem:[%s471 + $0x6f8] sm:$0xff]
        %v1207 = vld [vmem:[%s471 + $0x700] sm:$0xff]
        %v1208 = vld [vmem:[%s471 + $0x708] sm:$0xff]
        %v1209 = vld [vmem:[%s471 + $0x710] sm:$0xff]
        %v1210 = vld [vmem:[%s471 + $0x718] sm:$0xff]
        %v1211 = vld [vmem:[%s471 + $0x720] sm:$0xff]
        %v1212 = vld [vmem:[%s471 + $0x728] sm:$0xff]
        %v1213 = vld [vmem:[%s471 + $0x730] sm:$0xff]
        %v1214 = vld [vmem:[%s471 + $0x738] sm:$0xff]
        %v1215 = vld [vmem:[%s471 + $0x740] sm:$0xff]
        %v1216 = vld [vmem:[%s471 + $0x748] sm:$0xff]
        %v1217 = vld [vmem:[%s471 + $0x750] sm:$0xff]
        %v1218 = vld [vmem:[%s471 + $0x758] sm:$0xff]
        %v1219 = vld [vmem:[%s471 + $0x760] sm:$0xff]
        %v1220 = vld [vmem:[%s471 + $0x768] sm:$0xff]
        %v1221 = vld [vmem:[%s471 + $0x770] sm:$0xff]
        %v1222 = vld [vmem:[%s471 + $0x778] sm:$0xff]
        %v1223 = vld [vmem:[%s471 + $0x780] sm:$0xff]
        %v1224 = vld [vmem:[%s471 + $0x788] sm:$0xff]
        %v1225 = vld [vmem:[%s471 + $0x790] sm:$0xff]
        %v1226 = vld [vmem:[%s471 + $0x798] sm:$0xff]
        %v1227 = vld [vmem:[%s471 + $0x7a0] sm:$0xff]
        %v1228 = vld [vmem:[%s471 + $0x7a8] sm:$0xff]
        %v1229 = vld [vmem:[%s471 + $0x7b0] sm:$0xff]
        %v1230 = vld [vmem:[%s471 + $0x7b8] sm:$0xff]
        %v1231 = vld [vmem:[%s471 + $0x7c0] sm:$0xff]
        %v1232 = vld [vmem:[%s471 + $0x7c8] sm:$0xff]
        %v1233 = vld [vmem:[%s471 + $0x7d0] sm:$0xff]
        %v1234 = vld [vmem:[%s471 + $0x7d8] sm:$0xff]
        %v1235 = vld [vmem:[%s471 + $0x7e0] sm:$0xff]
        %v1236 = vld [vmem:[%s471 + $0x7e8] sm:$0xff]
        %v1237 = vld [vmem:[%s471 + $0x7f0] sm:$0xff]
        %v1238 = vld [vmem:[%s471 + $0x7f8] sm:$0xff]
        %v1495 = vunpack.c.l.b16 %v983
        %v1496 = vunpack.c.h.b16 %v983
        %v1497 = vunpack.c.l.b16 %v984
        %v1498 = vunpack.c.h.b16 %v984
        %v1499 = vunpack.c.l.b16 %v985
        %v1500 = vunpack.c.h.b16 %v985
        %v1501 = vunpack.c.l.b16 %v986
        %v1502 = vunpack.c.h.b16 %v986
        %v1503 = vunpack.c.l.b16 %v987
        %v1504 = vunpack.c.h.b16 %v987
        %v1505 = vunpack.c.l.b16 %v988
        %v1506 = vunpack.c.h.b16 %v988
        %v1507 = vunpack.c.l.b16 %v989
        %v1508 = vunpack.c.h.b16 %v989
        %v1509 = vunpack.c.l.b16 %v990
        %v1510 = vunpack.c.h.b16 %v990
        %v1511 = vunpack.c.l.b16 %v991
        %v1512 = vunpack.c.h.b16 %v991
        %v1513 = vunpack.c.l.b16 %v992
        %v1514 = vunpack.c.h.b16 %v992
        %v1515 = vunpack.c.l.b16 %v993
        %v1516 = vunpack.c.h.b16 %v993
        %v1517 = vunpack.c.l.b16 %v994
        %v1518 = vunpack.c.h.b16 %v994
        %v1519 = vunpack.c.l.b16 %v995
        %v1520 = vunpack.c.h.b16 %v995
        %v1521 = vunpack.c.l.b16 %v996
        %v1522 = vunpack.c.h.b16 %v996
        %v1523 = vunpack.c.l.b16 %v997
        %v1524 = vunpack.c.h.b16 %v997
        %v1525 = vunpack.c.l.b16 %v998
        %v1526 = vunpack.c.h.b16 %v998
        %v1527 = vunpack.c.l.b16 %v999
        %v1528 = vunpack.c.h.b16 %v999
        %v1529 = vunpack.c.l.b16 %v1000
        %v1530 = vunpack.c.h.b16 %v1000
        %v1531 = vunpack.c.l.b16 %v1001
        %v1532 = vunpack.c.h.b16 %v1001
        %v1533 = vunpack.c.l.b16 %v1002
        %v1534 = vunpack.c.h.b16 %v1002
        %v1535 = vunpack.c.l.b16 %v1003
        %v1536 = vunpack.c.h.b16 %v1003
        %v1537 = vunpack.c.l.b16 %v1004
        %v1538 = vunpack.c.h.b16 %v1004
        %v1539 = vunpack.c.l.b16 %v1005
        %v1540 = vunpack.c.h.b16 %v1005
        %v1541 = vunpack.c.l.b16 %v1006
        %v1542 = vunpack.c.h.b16 %v1006
        %v1543 = vunpack.c.l.b16 %v1007
        %v1544 = vunpack.c.h.b16 %v1007
        %v1545 = vunpack.c.l.b16 %v1008
        %v1546 = vunpack.c.h.b16 %v1008
        %v1547 = vunpack.c.l.b16 %v1009
        %v1548 = vunpack.c.h.b16 %v1009
        %v1549 = vunpack.c.l.b16 %v1010
        %v1550 = vunpack.c.h.b16 %v1010
        %v1551 = vunpack.c.l.b16 %v1011
        %v1552 = vunpack.c.h.b16 %v1011
        %v1553 = vunpack.c.l.b16 %v1012
        %v1554 = vunpack.c.h.b16 %v1012
        %v1555 = vunpack.c.l.b16 %v1013
        %v1556 = vunpack.c.h.b16 %v1013
        %v1557 = vunpack.c.l.b16 %v1014
        %v1558 = vunpack.c.h.b16 %v1014
        %v1559 = vunpack.c.l.b16 %v1015
        %v1560 = vunpack.c.h.b16 %v1015
        %v1561 = vunpack.c.l.b16 %v1016
        %v1562 = vunpack.c.h.b16 %v1016
        %v1563 = vunpack.c.l.b16 %v1017
        %v1564 = vunpack.c.h.b16 %v1017
        %v1565 = vunpack.c.l.b16 %v1018
        %v1566 = vunpack.c.h.b16 %v1018
        %v1567 = vunpack.c.l.b16 %v1019
        %v1568 = vunpack.c.h.b16 %v1019
        %v1569 = vunpack.c.l.b16 %v1020
        %v1570 = vunpack.c.h.b16 %v1020
        %v1571 = vunpack.c.l.b16 %v1021
        %v1572 = vunpack.c.h.b16 %v1021
        %v1573 = vunpack.c.l.b16 %v1022
        %v1574 = vunpack.c.h.b16 %v1022
        %v1575 = vunpack.c.l.b16 %v1023
        %v1576 = vunpack.c.h.b16 %v1023
        %v1577 = vunpack.c.l.b16 %v1024
        %v1578 = vunpack.c.h.b16 %v1024
        %v1579 = vunpack.c.l.b16 %v1025
        %v1580 = vunpack.c.h.b16 %v1025
        %v1581 = vunpack.c.l.b16 %v1026
        %v1582 = vunpack.c.h.b16 %v1026
        %v1583 = vunpack.c.l.b16 %v1027
        %v1584 = vunpack.c.h.b16 %v1027
        %v1585 = vunpack.c.l.b16 %v1028
        %v1586 = vunpack.c.h.b16 %v1028
        %v1587 = vunpack.c.l.b16 %v1029
        %v1588 = vunpack.c.h.b16 %v1029
        %v1589 = vunpack.c.l.b16 %v1030
        %v1590 = vunpack.c.h.b16 %v1030
        %v1591 = vunpack.c.l.b16 %v1031
        %v1592 = vunpack.c.h.b16 %v1031
        %v1593 = vunpack.c.l.b16 %v1032
        %v1594 = vunpack.c.h.b16 %v1032
        %v1595 = vunpack.c.l.b16 %v1033
        %v1596 = vunpack.c.h.b16 %v1033
        %v1597 = vunpack.c.l.b16 %v1034
        %v1598 = vunpack.c.h.b16 %v1034
        %v1599 = vunpack.c.l.b16 %v1035
        %v1600 = vunpack.c.h.b16 %v1035
        %v1601 = vunpack.c.l.b16 %v1036
        %v1602 = vunpack.c.h.b16 %v1036
        %v1603 = vunpack.c.l.b16 %v1037
        %v1604 = vunpack.c.h.b16 %v1037
        %v1605 = vunpack.c.l.b16 %v1038
        %v1606 = vunpack.c.h.b16 %v1038
        %v1607 = vunpack.c.l.b16 %v1039
        %v1608 = vunpack.c.h.b16 %v1039
        %v1609 = vunpack.c.l.b16 %v1040
        %v1610 = vunpack.c.h.b16 %v1040
        %v1611 = vunpack.c.l.b16 %v1041
        %v1612 = vunpack.c.h.b16 %v1041
        %v1613 = vunpack.c.l.b16 %v1042
        %v1614 = vunpack.c.h.b16 %v1042
        %v1615 = vunpack.c.l.b16 %v1043
        %v1616 = vunpack.c.h.b16 %v1043
        %v1617 = vunpack.c.l.b16 %v1044
        %v1618 = vunpack.c.h.b16 %v1044
        %v1619 = vunpack.c.l.b16 %v1045
        %v1620 = vunpack.c.h.b16 %v1045
        %v1621 = vunpack.c.l.b16 %v1046
        %v1622 = vunpack.c.h.b16 %v1046
        %v1623 = vunpack.c.l.b16 %v1047
        %v1624 = vunpack.c.h.b16 %v1047
        %v1625 = vunpack.c.l.b16 %v1048
        %v1626 = vunpack.c.h.b16 %v1048
        %v1627 = vunpack.c.l.b16 %v1049
        %v1628 = vunpack.c.h.b16 %v1049
        %v1629 = vunpack.c.l.b16 %v1050
        %v1630 = vunpack.c.h.b16 %v1050
        %v1631 = vunpack.c.l.b16 %v1051
        %v1632 = vunpack.c.h.b16 %v1051
        %v1633 = vunpack.c.l.b16 %v1052
        %v1634 = vunpack.c.h.b16 %v1052
        %v1635 = vunpack.c.l.b16 %v1053
        %v1636 = vunpack.c.h.b16 %v1053
        %v1637 = vunpack.c.l.b16 %v1054
        %v1638 = vunpack.c.h.b16 %v1054
        %v1639 = vunpack.c.l.b16 %v1055
        %v1640 = vunpack.c.h.b16 %v1055
        %v1641 = vunpack.c.l.b16 %v1056
        %v1642 = vunpack.c.h.b16 %v1056
        %v1643 = vunpack.c.l.b16 %v1057
        %v1644 = vunpack.c.h.b16 %v1057
        %v1645 = vunpack.c.l.b16 %v1058
        %v1646 = vunpack.c.h.b16 %v1058
        %v1647 = vunpack.c.l.b16 %v1059
        %v1648 = vunpack.c.h.b16 %v1059
        %v1649 = vunpack.c.l.b16 %v1060
        %v1650 = vunpack.c.h.b16 %v1060
        %v1651 = vunpack.c.l.b16 %v1061
        %v1652 = vunpack.c.h.b16 %v1061
        %v1653 = vunpack.c.l.b16 %v1062
        %v1654 = vunpack.c.h.b16 %v1062
        %v1655 = vunpack.c.l.b16 %v1063
        %v1656 = vunpack.c.h.b16 %v1063
        %v1657 = vunpack.c.l.b16 %v1064
        %v1658 = vunpack.c.h.b16 %v1064
        %v1659 = vunpack.c.l.b16 %v1065
        %v1660 = vunpack.c.h.b16 %v1065
        %v1661 = vunpack.c.l.b16 %v1066
        %v1662 = vunpack.c.h.b16 %v1066
        %v1663 = vunpack.c.l.b16 %v1067
        %v1664 = vunpack.c.h.b16 %v1067
        %v1665 = vunpack.c.l.b16 %v1068
        %v1666 = vunpack.c.h.b16 %v1068
        %v1667 = vunpack.c.l.b16 %v1069
        %v1668 = vunpack.c.h.b16 %v1069
        %v1669 = vunpack.c.l.b16 %v1070
        %v1670 = vunpack.c.h.b16 %v1070
        %v1671 = vunpack.c.l.b16 %v1071
        %v1672 = vunpack.c.h.b16 %v1071
        %v1673 = vunpack.c.l.b16 %v1072
        %v1674 = vunpack.c.h.b16 %v1072
        %v1675 = vunpack.c.l.b16 %v1073
        %v1676 = vunpack.c.h.b16 %v1073
        %v1677 = vunpack.c.l.b16 %v1074
        %v1678 = vunpack.c.h.b16 %v1074
        %v1679 = vunpack.c.l.b16 %v1075
        %v1680 = vunpack.c.h.b16 %v1075
        %v1681 = vunpack.c.l.b16 %v1076
        %v1682 = vunpack.c.h.b16 %v1076
        %v1683 = vunpack.c.l.b16 %v1077
        %v1684 = vunpack.c.h.b16 %v1077
        %v1685 = vunpack.c.l.b16 %v1078
        %v1686 = vunpack.c.h.b16 %v1078
        %v1687 = vunpack.c.l.b16 %v1079
        %v1688 = vunpack.c.h.b16 %v1079
        %v1689 = vunpack.c.l.b16 %v1080
        %v1690 = vunpack.c.h.b16 %v1080
        %v1691 = vunpack.c.l.b16 %v1081
        %v1692 = vunpack.c.h.b16 %v1081
        %v1693 = vunpack.c.l.b16 %v1082
        %v1694 = vunpack.c.h.b16 %v1082
        %v1695 = vunpack.c.l.b16 %v1083
        %v1696 = vunpack.c.h.b16 %v1083
        %v1697 = vunpack.c.l.b16 %v1084
        %v1698 = vunpack.c.h.b16 %v1084
        %v1699 = vunpack.c.l.b16 %v1085
        %v1700 = vunpack.c.h.b16 %v1085
        %v1701 = vunpack.c.l.b16 %v1086
        %v1702 = vunpack.c.h.b16 %v1086
        %v1703 = vunpack.c.l.b16 %v1087
        %v1704 = vunpack.c.h.b16 %v1087
        %v1705 = vunpack.c.l.b16 %v1088
        %v1706 = vunpack.c.h.b16 %v1088
        %v1707 = vunpack.c.l.b16 %v1089
        %v1708 = vunpack.c.h.b16 %v1089
        %v1709 = vunpack.c.l.b16 %v1090
        %v1710 = vunpack.c.h.b16 %v1090
        %v1711 = vunpack.c.l.b16 %v1091
        %v1712 = vunpack.c.h.b16 %v1091
        %v1713 = vunpack.c.l.b16 %v1092
        %v1714 = vunpack.c.h.b16 %v1092
        %v1715 = vunpack.c.l.b16 %v1093
        %v1716 = vunpack.c.h.b16 %v1093
        %v1717 = vunpack.c.l.b16 %v1094
        %v1718 = vunpack.c.h.b16 %v1094
        %v1719 = vunpack.c.l.b16 %v1095
        %v1720 = vunpack.c.h.b16 %v1095
        %v1721 = vunpack.c.l.b16 %v1096
        %v1722 = vunpack.c.h.b16 %v1096
        %v1723 = vunpack.c.l.b16 %v1097
        %v1724 = vunpack.c.h.b16 %v1097
        %v1725 = vunpack.c.l.b16 %v1098
        %v1726 = vunpack.c.h.b16 %v1098
        %v1727 = vunpack.c.l.b16 %v1099
        %v1728 = vunpack.c.h.b16 %v1099
        %v1729 = vunpack.c.l.b16 %v1100
        %v1730 = vunpack.c.h.b16 %v1100
        %v1731 = vunpack.c.l.b16 %v1101
        %v1732 = vunpack.c.h.b16 %v1101
        %v1733 = vunpack.c.l.b16 %v1102
        %v1734 = vunpack.c.h.b16 %v1102
        %v1735 = vunpack.c.l.b16 %v1103
        %v1736 = vunpack.c.h.b16 %v1103
        %v1737 = vunpack.c.l.b16 %v1104
        %v1738 = vunpack.c.h.b16 %v1104
        %v1739 = vunpack.c.l.b16 %v1105
        %v1740 = vunpack.c.h.b16 %v1105
        %v1741 = vunpack.c.l.b16 %v1106
        %v1742 = vunpack.c.h.b16 %v1106
        %v1743 = vunpack.c.l.b16 %v1107
        %v1744 = vunpack.c.h.b16 %v1107
        %v1745 = vunpack.c.l.b16 %v1108
        %v1746 = vunpack.c.h.b16 %v1108
        %v1747 = vunpack.c.l.b16 %v1109
        %v1748 = vunpack.c.h.b16 %v1109
        %v1749 = vunpack.c.l.b16 %v1110
        %v1750 = vunpack.c.h.b16 %v1110
        %v1751 = vunpack.c.l.b16 %v1111
        %v1752 = vunpack.c.h.b16 %v1111
        %v1753 = vunpack.c.l.b16 %v1112
        %v1754 = vunpack.c.h.b16 %v1112
        %v1755 = vunpack.c.l.b16 %v1113
        %v1756 = vunpack.c.h.b16 %v1113
        %v1757 = vunpack.c.l.b16 %v1114
        %v1758 = vunpack.c.h.b16 %v1114
        %v1759 = vunpack.c.l.b16 %v1115
        %v1760 = vunpack.c.h.b16 %v1115
        %v1761 = vunpack.c.l.b16 %v1116
        %v1762 = vunpack.c.h.b16 %v1116
        %v1763 = vunpack.c.l.b16 %v1117
        %v1764 = vunpack.c.h.b16 %v1117
        %v1765 = vunpack.c.l.b16 %v1118
        %v1766 = vunpack.c.h.b16 %v1118
        %v1767 = vunpack.c.l.b16 %v1119
        %v1768 = vunpack.c.h.b16 %v1119
        %v1769 = vunpack.c.l.b16 %v1120
        %v1770 = vunpack.c.h.b16 %v1120
        %v1771 = vunpack.c.l.b16 %v1121
        %v1772 = vunpack.c.h.b16 %v1121
        %v1773 = vunpack.c.l.b16 %v1122
        %v1774 = vunpack.c.h.b16 %v1122
        %v1775 = vunpack.c.l.b16 %v1123
        %v1776 = vunpack.c.h.b16 %v1123
        %v1777 = vunpack.c.l.b16 %v1124
        %v1778 = vunpack.c.h.b16 %v1124
        %v1779 = vunpack.c.l.b16 %v1125
        %v1780 = vunpack.c.h.b16 %v1125
        %v1781 = vunpack.c.l.b16 %v1126
        %v1782 = vunpack.c.h.b16 %v1126
        %v1783 = vunpack.c.l.b16 %v1127
        %v1784 = vunpack.c.h.b16 %v1127
        %v1785 = vunpack.c.l.b16 %v1128
        %v1786 = vunpack.c.h.b16 %v1128
        %v1787 = vunpack.c.l.b16 %v1129
        %v1788 = vunpack.c.h.b16 %v1129
        %v1789 = vunpack.c.l.b16 %v1130
        %v1790 = vunpack.c.h.b16 %v1130
        %v1791 = vunpack.c.l.b16 %v1131
        %v1792 = vunpack.c.h.b16 %v1131
        %v1793 = vunpack.c.l.b16 %v1132
        %v1794 = vunpack.c.h.b16 %v1132
        %v1795 = vunpack.c.l.b16 %v1133
        %v1796 = vunpack.c.h.b16 %v1133
        %v1797 = vunpack.c.l.b16 %v1134
        %v1798 = vunpack.c.h.b16 %v1134
        %v1799 = vunpack.c.l.b16 %v1135
        %v1800 = vunpack.c.h.b16 %v1135
        %v1801 = vunpack.c.l.b16 %v1136
        %v1802 = vunpack.c.h.b16 %v1136
        %v1803 = vunpack.c.l.b16 %v1137
        %v1804 = vunpack.c.h.b16 %v1137
        %v1805 = vunpack.c.l.b16 %v1138
        %v1806 = vunpack.c.h.b16 %v1138
        %v1807 = vunpack.c.l.b16 %v1139
        %v1808 = vunpack.c.h.b16 %v1139
        %v1809 = vunpack.c.l.b16 %v1140
        %v1810 = vunpack.c.h.b16 %v1140
        %v1811 = vunpack.c.l.b16 %v1141
        %v1812 = vunpack.c.h.b16 %v1141
        %v1813 = vunpack.c.l.b16 %v1142
        %v1814 = vunpack.c.h.b16 %v1142
        %v1815 = vunpack.c.l.b16 %v1143
        %v1816 = vunpack.c.h.b16 %v1143
        %v1817 = vunpack.c.l.b16 %v1144
        %v1818 = vunpack.c.h.b16 %v1144
        %v1819 = vunpack.c.l.b16 %v1145
        %v1820 = vunpack.c.h.b16 %v1145
        %v1821 = vunpack.c.l.b16 %v1146
        %v1822 = vunpack.c.h.b16 %v1146
        %v1823 = vunpack.c.l.b16 %v1147
        %v1824 = vunpack.c.h.b16 %v1147
        %v1825 = vunpack.c.l.b16 %v1148
        %v1826 = vunpack.c.h.b16 %v1148
        %v1827 = vunpack.c.l.b16 %v1149
        %v1828 = vunpack.c.h.b16 %v1149
        %v1829 = vunpack.c.l.b16 %v1150
        %v1830 = vunpack.c.h.b16 %v1150
        %v1831 = vunpack.c.l.b16 %v1151
        %v1832 = vunpack.c.h.b16 %v1151
        %v1833 = vunpack.c.l.b16 %v1152
        %v1834 = vunpack.c.h.b16 %v1152
        %v1835 = vunpack.c.l.b16 %v1153
        %v1836 = vunpack.c.h.b16 %v1153
        %v1837 = vunpack.c.l.b16 %v1154
        %v1838 = vunpack.c.h.b16 %v1154
        %v1839 = vunpack.c.l.b16 %v1155
        %v1840 = vunpack.c.h.b16 %v1155
        %v1841 = vunpack.c.l.b16 %v1156
        %v1842 = vunpack.c.h.b16 %v1156
        %v1843 = vunpack.c.l.b16 %v1157
        %v1844 = vunpack.c.h.b16 %v1157
        %v1845 = vunpack.c.l.b16 %v1158
        %v1846 = vunpack.c.h.b16 %v1158
        %v1847 = vunpack.c.l.b16 %v1159
        %v1848 = vunpack.c.h.b16 %v1159
        %v1849 = vunpack.c.l.b16 %v1160
        %v1850 = vunpack.c.h.b16 %v1160
        %v1851 = vunpack.c.l.b16 %v1161
        %v1852 = vunpack.c.h.b16 %v1161
        %v1853 = vunpack.c.l.b16 %v1162
        %v1854 = vunpack.c.h.b16 %v1162
        %v1855 = vunpack.c.l.b16 %v1163
        %v1856 = vunpack.c.h.b16 %v1163
        %v1857 = vunpack.c.l.b16 %v1164
        %v1858 = vunpack.c.h.b16 %v1164
        %v1859 = vunpack.c.l.b16 %v1165
        %v1860 = vunpack.c.h.b16 %v1165
        %v1861 = vunpack.c.l.b16 %v1166
        %v1862 = vunpack.c.h.b16 %v1166
        %v1863 = vunpack.c.l.b16 %v1167
        %v1864 = vunpack.c.h.b16 %v1167
        %v1865 = vunpack.c.l.b16 %v1168
        %v1866 = vunpack.c.h.b16 %v1168
        %v1867 = vunpack.c.l.b16 %v1169
        %v1868 = vunpack.c.h.b16 %v1169
        %v1869 = vunpack.c.l.b16 %v1170
        %v1870 = vunpack.c.h.b16 %v1170
        %v1871 = vunpack.c.l.b16 %v1171
        %v1872 = vunpack.c.h.b16 %v1171
        %v1873 = vunpack.c.l.b16 %v1172
        %v1874 = vunpack.c.h.b16 %v1172
        %v1875 = vunpack.c.l.b16 %v1173
        %v1876 = vunpack.c.h.b16 %v1173
        %v1877 = vunpack.c.l.b16 %v1174
        %v1878 = vunpack.c.h.b16 %v1174
        %v1879 = vunpack.c.l.b16 %v1175
        %v1880 = vunpack.c.h.b16 %v1175
        %v1881 = vunpack.c.l.b16 %v1176
        %v1882 = vunpack.c.h.b16 %v1176
        %v1883 = vunpack.c.l.b16 %v1177
        %v1884 = vunpack.c.h.b16 %v1177
        %v1885 = vunpack.c.l.b16 %v1178
        %v1886 = vunpack.c.h.b16 %v1178
        %v1887 = vunpack.c.l.b16 %v1179
        %v1888 = vunpack.c.h.b16 %v1179
        %v1889 = vunpack.c.l.b16 %v1180
        %v1890 = vunpack.c.h.b16 %v1180
        %v1891 = vunpack.c.l.b16 %v1181
        %v1892 = vunpack.c.h.b16 %v1181
        %v1893 = vunpack.c.l.b16 %v1182
        %v1894 = vunpack.c.h.b16 %v1182
        %v1895 = vunpack.c.l.b16 %v1183
        %v1896 = vunpack.c.h.b16 %v1183
        %v1897 = vunpack.c.l.b16 %v1184
        %v1898 = vunpack.c.h.b16 %v1184
        %v1899 = vunpack.c.l.b16 %v1185
        %v1900 = vunpack.c.h.b16 %v1185
        %v1901 = vunpack.c.l.b16 %v1186
        %v1902 = vunpack.c.h.b16 %v1186
        %v1903 = vunpack.c.l.b16 %v1187
        %v1904 = vunpack.c.h.b16 %v1187
        %v1905 = vunpack.c.l.b16 %v1188
        %v1906 = vunpack.c.h.b16 %v1188
        %v1907 = vunpack.c.l.b16 %v1189
        %v1908 = vunpack.c.h.b16 %v1189
        %v1909 = vunpack.c.l.b16 %v1190
        %v1910 = vunpack.c.h.b16 %v1190
        %v1911 = vunpack.c.l.b16 %v1191
        %v1912 = vunpack.c.h.b16 %v1191
        %v1913 = vunpack.c.l.b16 %v1192
        %v1914 = vunpack.c.h.b16 %v1192
        %v1915 = vunpack.c.l.b16 %v1193
        %v1916 = vunpack.c.h.b16 %v1193
        %v1917 = vunpack.c.l.b16 %v1194
        %v1918 = vunpack.c.h.b16 %v1194
        %v1919 = vunpack.c.l.b16 %v1195
        %v1920 = vunpack.c.h.b16 %v1195
        %v1921 = vunpack.c.l.b16 %v1196
        %v1922 = vunpack.c.h.b16 %v1196
        %v1923 = vunpack.c.l.b16 %v1197
        %v1924 = vunpack.c.h.b16 %v1197
        %v1925 = vunpack.c.l.b16 %v1198
        %v1926 = vunpack.c.h.b16 %v1198
        %v1927 = vunpack.c.l.b16 %v1199
        %v1928 = vunpack.c.h.b16 %v1199
        %v1929 = vunpack.c.l.b16 %v1200
        %v1930 = vunpack.c.h.b16 %v1200
        %v1931 = vunpack.c.l.b16 %v1201
        %v1932 = vunpack.c.h.b16 %v1201
        %v1933 = vunpack.c.l.b16 %v1202
        %v1934 = vunpack.c.h.b16 %v1202
        %v1935 = vunpack.c.l.b16 %v1203
        %v1936 = vunpack.c.h.b16 %v1203
        %v1937 = vunpack.c.l.b16 %v1204
        %v1938 = vunpack.c.h.b16 %v1204
        %v1939 = vunpack.c.l.b16 %v1205
        %v1940 = vunpack.c.h.b16 %v1205
        %v1941 = vunpack.c.l.b16 %v1206
        %v1942 = vunpack.c.h.b16 %v1206
        %v1943 = vunpack.c.l.b16 %v1207
        %v1944 = vunpack.c.h.b16 %v1207
        %v1945 = vunpack.c.l.b16 %v1208
        %v1946 = vunpack.c.h.b16 %v1208
        %v1947 = vunpack.c.l.b16 %v1209
        %v1948 = vunpack.c.h.b16 %v1209
        %v1949 = vunpack.c.l.b16 %v1210
        %v1950 = vunpack.c.h.b16 %v1210
        %v1951 = vunpack.c.l.b16 %v1211
        %v1952 = vunpack.c.h.b16 %v1211
        %v1953 = vunpack.c.l.b16 %v1212
        %v1954 = vunpack.c.h.b16 %v1212
        %v1955 = vunpack.c.l.b16 %v1213
        %v1956 = vunpack.c.h.b16 %v1213
        %v1957 = vunpack.c.l.b16 %v1214
        %v1958 = vunpack.c.h.b16 %v1214
        %v1959 = vunpack.c.l.b16 %v1215
        %v1960 = vunpack.c.h.b16 %v1215
        %v1961 = vunpack.c.l.b16 %v1216
        %v1962 = vunpack.c.h.b16 %v1216
        %v1963 = vunpack.c.l.b16 %v1217
        %v1964 = vunpack.c.h.b16 %v1217
        %v1965 = vunpack.c.l.b16 %v1218
        %v1966 = vunpack.c.h.b16 %v1218
        %v1967 = vunpack.c.l.b16 %v1219
        %v1968 = vunpack.c.h.b16 %v1219
        %v1969 = vunpack.c.l.b16 %v1220
        %v1970 = vunpack.c.h.b16 %v1220
        %v1971 = vunpack.c.l.b16 %v1221
        %v1972 = vunpack.c.h.b16 %v1221
        %v1973 = vunpack.c.l.b16 %v1222
        %v1974 = vunpack.c.h.b16 %v1222
        %v1975 = vunpack.c.l.b16 %v1223
        %v1976 = vunpack.c.h.b16 %v1223
        %v1977 = vunpack.c.l.b16 %v1224
        %v1978 = vunpack.c.h.b16 %v1224
        %v1979 = vunpack.c.l.b16 %v1225
        %v1980 = vunpack.c.h.b16 %v1225
        %v1981 = vunpack.c.l.b16 %v1226
        %v1982 = vunpack.c.h.b16 %v1226
        %v1983 = vunpack.c.l.b16 %v1227
        %v1984 = vunpack.c.h.b16 %v1227
        %v1985 = vunpack.c.l.b16 %v1228
        %v1986 = vunpack.c.h.b16 %v1228
        %v1987 = vunpack.c.l.b16 %v1229
        %v1988 = vunpack.c.h.b16 %v1229
        %v1989 = vunpack.c.l.b16 %v1230
        %v1990 = vunpack.c.h.b16 %v1230
        %v1991 = vunpack.c.l.b16 %v1231
        %v1992 = vunpack.c.h.b16 %v1231
        %v1993 = vunpack.c.l.b16 %v1232
        %v1994 = vunpack.c.h.b16 %v1232
        %v1995 = vunpack.c.l.b16 %v1233
        %v1996 = vunpack.c.h.b16 %v1233
        %v1997 = vunpack.c.l.b16 %v1234
        %v1998 = vunpack.c.h.b16 %v1234
        %v1999 = vunpack.c.l.b16 %v1235
        %v2000 = vunpack.c.h.b16 %v1235
        %v2001 = vunpack.c.l.b16 %v1236
        %v2002 = vunpack.c.h.b16 %v1236
        %v2003 = vunpack.c.l.b16 %v1237
        %v2004 = vunpack.c.h.b16 %v1237
        %v2005 = vunpack.c.l.b16 %v1238
        %v2006 = vunpack.c.h.b16 %v1238
        %v2007 = vpack.c.b16 %v1527, %v1495
        %v2008 = vpack.c.b16 %v1528, %v1496
        %v2009 = vpack.c.b16 %v1529, %v1497
        %v2010 = vpack.c.b16 %v1530, %v1498
        %v2011 = vpack.c.b16 %v1531, %v1499
        %v2012 = vpack.c.b16 %v1532, %v1500
        %v2013 = vpack.c.b16 %v1533, %v1501
        %v2014 = vpack.c.b16 %v1534, %v1502
        %v2015 = vpack.c.b16 %v1535, %v1503
        %v2016 = vpack.c.b16 %v1536, %v1504
        %v2017 = vpack.c.b16 %v1537, %v1505
        %v2018 = vpack.c.b16 %v1538, %v1506
        %v2019 = vpack.c.b16 %v1539, %v1507
        %v2020 = vpack.c.b16 %v1540, %v1508
        %v2021 = vpack.c.b16 %v1541, %v1509
        %v2022 = vpack.c.b16 %v1542, %v1510
        %v2023 = vpack.c.b16 %v1543, %v1511
        %v2024 = vpack.c.b16 %v1544, %v1512
        %v2025 = vpack.c.b16 %v1545, %v1513
        %v2026 = vpack.c.b16 %v1546, %v1514
        %v2027 = vpack.c.b16 %v1547, %v1515
        %v2028 = vpack.c.b16 %v1548, %v1516
        %v2029 = vpack.c.b16 %v1549, %v1517
        %v2030 = vpack.c.b16 %v1550, %v1518
        %v2031 = vpack.c.b16 %v1551, %v1519
        %v2032 = vpack.c.b16 %v1552, %v1520
        %v2033 = vpack.c.b16 %v1553, %v1521
        %v2034 = vpack.c.b16 %v1554, %v1522
        %v2035 = vpack.c.b16 %v1555, %v1523
        %v2036 = vpack.c.b16 %v1556, %v1524
        %v2037 = vpack.c.b16 %v1557, %v1525
        %v2038 = vpack.c.b16 %v1558, %v1526
        %v2039 = vpack.c.b16 %v1591, %v1559
        %v2040 = vpack.c.b16 %v1592, %v1560
        %v2041 = vpack.c.b16 %v1593, %v1561
        %v2042 = vpack.c.b16 %v1594, %v1562
        %v2043 = vpack.c.b16 %v1595, %v1563
        %v2044 = vpack.c.b16 %v1596, %v1564
        %v2045 = vpack.c.b16 %v1597, %v1565
        %v2046 = vpack.c.b16 %v1598, %v1566
        %v2047 = vpack.c.b16 %v1599, %v1567
        %v2048 = vpack.c.b16 %v1600, %v1568
        %v2049 = vpack.c.b16 %v1601, %v1569
        %v2050 = vpack.c.b16 %v1602, %v1570
        %v2051 = vpack.c.b16 %v1603, %v1571
        %v2052 = vpack.c.b16 %v1604, %v1572
        %v2053 = vpack.c.b16 %v1605, %v1573
        %v2054 = vpack.c.b16 %v1606, %v1574
        %v2055 = vpack.c.b16 %v1607, %v1575
        %v2056 = vpack.c.b16 %v1608, %v1576
        %v2057 = vpack.c.b16 %v1609, %v1577
        %v2058 = vpack.c.b16 %v1610, %v1578
        %v2059 = vpack.c.b16 %v1611, %v1579
        %v2060 = vpack.c.b16 %v1612, %v1580
        %v2061 = vpack.c.b16 %v1613, %v1581
        %v2062 = vpack.c.b16 %v1614, %v1582
        %v2063 = vpack.c.b16 %v1615, %v1583
        %v2064 = vpack.c.b16 %v1616, %v1584
        %v2065 = vpack.c.b16 %v1617, %v1585
        %v2066 = vpack.c.b16 %v1618, %v1586
        %v2067 = vpack.c.b16 %v1619, %v1587
        %v2068 = vpack.c.b16 %v1620, %v1588
        %v2069 = vpack.c.b16 %v1621, %v1589
        %v2070 = vpack.c.b16 %v1622, %v1590
        %v2071 = vpack.c.b16 %v1655, %v1623
        %v2072 = vpack.c.b16 %v1656, %v1624
        %v2073 = vpack.c.b16 %v1657, %v1625
        %v2074 = vpack.c.b16 %v1658, %v1626
        %v2075 = vpack.c.b16 %v1659, %v1627
        %v2076 = vpack.c.b16 %v1660, %v1628
        %v2077 = vpack.c.b16 %v1661, %v1629
        %v2078 = vpack.c.b16 %v1662, %v1630
        %v2079 = vpack.c.b16 %v1663, %v1631
        %v2080 = vpack.c.b16 %v1664, %v1632
        %v2081 = vpack.c.b16 %v1665, %v1633
        %v2082 = vpack.c.b16 %v1666, %v1634
        %v2083 = vpack.c.b16 %v1667, %v1635
        %v2084 = vpack.c.b16 %v1668, %v1636
        %v2085 = vpack.c.b16 %v1669, %v1637
        %v2086 = vpack.c.b16 %v1670, %v1638
        %v2087 = vpack.c.b16 %v1671, %v1639
        %v2088 = vpack.c.b16 %v1672, %v1640
        %v2089 = vpack.c.b16 %v1673, %v1641
        %v2090 = vpack.c.b16 %v1674, %v1642
        %v2091 = vpack.c.b16 %v1675, %v1643
        %v2092 = vpack.c.b16 %v1676, %v1644
        %v2093 = vpack.c.b16 %v1677, %v1645
        %v2094 = vpack.c.b16 %v1678, %v1646
        %v2095 = vpack.c.b16 %v1679, %v1647
        %v2096 = vpack.c.b16 %v1680, %v1648
        %v2097 = vpack.c.b16 %v1681, %v1649
        %v2098 = vpack.c.b16 %v1682, %v1650
        %v2099 = vpack.c.b16 %v1683, %v1651
        %v2100 = vpack.c.b16 %v1684, %v1652
        %v2101 = vpack.c.b16 %v1685, %v1653
        %v2102 = vpack.c.b16 %v1686, %v1654
        %v2103 = vpack.c.b16 %v1719, %v1687
        %v2104 = vpack.c.b16 %v1720, %v1688
        %v2105 = vpack.c.b16 %v1721, %v1689
        %v2106 = vpack.c.b16 %v1722, %v1690
        %v2107 = vpack.c.b16 %v1723, %v1691
        %v2108 = vpack.c.b16 %v1724, %v1692
        %v2109 = vpack.c.b16 %v1725, %v1693
        %v2110 = vpack.c.b16 %v1726, %v1694
        %v2111 = vpack.c.b16 %v1727, %v1695
        %v2112 = vpack.c.b16 %v1728, %v1696
        %v2113 = vpack.c.b16 %v1729, %v1697
        %v2114 = vpack.c.b16 %v1730, %v1698
        %v2115 = vpack.c.b16 %v1731, %v1699
        %v2116 = vpack.c.b16 %v1732, %v1700
        %v2117 = vpack.c.b16 %v1733, %v1701
        %v2118 = vpack.c.b16 %v1734, %v1702
        %v2119 = vpack.c.b16 %v1735, %v1703
        %v2120 = vpack.c.b16 %v1736, %v1704
        %v2121 = vpack.c.b16 %v1737, %v1705
        %v2122 = vpack.c.b16 %v1738, %v1706
        %v2123 = vpack.c.b16 %v1739, %v1707
        %v2124 = vpack.c.b16 %v1740, %v1708
        %v2125 = vpack.c.b16 %v1741, %v1709
        %v2126 = vpack.c.b16 %v1742, %v1710
        %v2127 = vpack.c.b16 %v1743, %v1711
        %v2128 = vpack.c.b16 %v1744, %v1712
        %v2129 = vpack.c.b16 %v1745, %v1713
        %v2130 = vpack.c.b16 %v1746, %v1714
        %v2131 = vpack.c.b16 %v1747, %v1715
        %v2132 = vpack.c.b16 %v1748, %v1716
        %v2133 = vpack.c.b16 %v1749, %v1717
        %v2134 = vpack.c.b16 %v1750, %v1718
        %v2135 = vpack.c.b16 %v1783, %v1751
        %v2136 = vpack.c.b16 %v1784, %v1752
        %v2137 = vpack.c.b16 %v1785, %v1753
        %v2138 = vpack.c.b16 %v1786, %v1754
        %v2139 = vpack.c.b16 %v1787, %v1755
        %v2140 = vpack.c.b16 %v1788, %v1756
        %v2141 = vpack.c.b16 %v1789, %v1757
        %v2142 = vpack.c.b16 %v1790, %v1758
        %v2143 = vpack.c.b16 %v1791, %v1759
        %v2144 = vpack.c.b16 %v1792, %v1760
        %v2145 = vpack.c.b16 %v1793, %v1761
        %v2146 = vpack.c.b16 %v1794, %v1762
        %v2147 = vpack.c.b16 %v1795, %v1763
        %v2148 = vpack.c.b16 %v1796, %v1764
        %v2149 = vpack.c.b16 %v1797, %v1765
        %v2150 = vpack.c.b16 %v1798, %v1766
        %v2151 = vpack.c.b16 %v1799, %v1767
        %v2152 = vpack.c.b16 %v1800, %v1768
        %v2153 = vpack.c.b16 %v1801, %v1769
        %v2154 = vpack.c.b16 %v1802, %v1770
        %v2155 = vpack.c.b16 %v1803, %v1771
        %v2156 = vpack.c.b16 %v1804, %v1772
        %v2157 = vpack.c.b16 %v1805, %v1773
        %v2158 = vpack.c.b16 %v1806, %v1774
        %v2159 = vpack.c.b16 %v1807, %v1775
        %v2160 = vpack.c.b16 %v1808, %v1776
        %v2161 = vpack.c.b16 %v1809, %v1777
        %v2162 = vpack.c.b16 %v1810, %v1778
        %v2163 = vpack.c.b16 %v1811, %v1779
        %v2164 = vpack.c.b16 %v1812, %v1780
        %v2165 = vpack.c.b16 %v1813, %v1781
        %v2166 = vpack.c.b16 %v1814, %v1782
        %v2167 = vpack.c.b16 %v1847, %v1815
        %v2168 = vpack.c.b16 %v1848, %v1816
        %v2169 = vpack.c.b16 %v1849, %v1817
        %v2170 = vpack.c.b16 %v1850, %v1818
        %v2171 = vpack.c.b16 %v1851, %v1819
        %v2172 = vpack.c.b16 %v1852, %v1820
        %v2173 = vpack.c.b16 %v1853, %v1821
        %v2174 = vpack.c.b16 %v1854, %v1822
        %v2175 = vpack.c.b16 %v1855, %v1823
        %v2176 = vpack.c.b16 %v1856, %v1824
        %v2177 = vpack.c.b16 %v1857, %v1825
        %v2178 = vpack.c.b16 %v1858, %v1826
        %v2179 = vpack.c.b16 %v1859, %v1827
        %v2180 = vpack.c.b16 %v1860, %v1828
        %v2181 = vpack.c.b16 %v1861, %v1829
        %v2182 = vpack.c.b16 %v1862, %v1830
        %v2183 = vpack.c.b16 %v1863, %v1831
        %v2184 = vpack.c.b16 %v1864, %v1832
        %v2185 = vpack.c.b16 %v1865, %v1833
        %v2186 = vpack.c.b16 %v1866, %v1834
        %v2187 = vpack.c.b16 %v1867, %v1835
        %v2188 = vpack.c.b16 %v1868, %v1836
        %v2189 = vpack.c.b16 %v1869, %v1837
        %v2190 = vpack.c.b16 %v1870, %v1838
        %v2191 = vpack.c.b16 %v1871, %v1839
        %v2192 = vpack.c.b16 %v1872, %v1840
        %v2193 = vpack.c.b16 %v1873, %v1841
        %v2194 = vpack.c.b16 %v1874, %v1842
        %v2195 = vpack.c.b16 %v1875, %v1843
        %v2196 = vpack.c.b16 %v1876, %v1844
        %v2197 = vpack.c.b16 %v1877, %v1845
        %v2198 = vpack.c.b16 %v1878, %v1846
        %v2199 = vpack.c.b16 %v1911, %v1879
        %v2200 = vpack.c.b16 %v1912, %v1880
        %v2201 = vpack.c.b16 %v1913, %v1881
        %v2202 = vpack.c.b16 %v1914, %v1882
        %v2203 = vpack.c.b16 %v1915, %v1883
        %v2204 = vpack.c.b16 %v1916, %v1884
        %v2205 = vpack.c.b16 %v1917, %v1885
        %v2206 = vpack.c.b16 %v1918, %v1886
        %v2207 = vpack.c.b16 %v1919, %v1887
        %v2208 = vpack.c.b16 %v1920, %v1888
        %v2209 = vpack.c.b16 %v1921, %v1889
        %v2210 = vpack.c.b16 %v1922, %v1890
        %v2211 = vpack.c.b16 %v1923, %v1891
        %v2212 = vpack.c.b16 %v1924, %v1892
        %v2213 = vpack.c.b16 %v1925, %v1893
        %v2214 = vpack.c.b16 %v1926, %v1894
        %v2215 = vpack.c.b16 %v1927, %v1895
        %v2216 = vpack.c.b16 %v1928, %v1896
        %v2217 = vpack.c.b16 %v1929, %v1897
        %v2218 = vpack.c.b16 %v1930, %v1898
        %v2219 = vpack.c.b16 %v1931, %v1899
        %v2220 = vpack.c.b16 %v1932, %v1900
        %v2221 = vpack.c.b16 %v1933, %v1901
        %v2222 = vpack.c.b16 %v1934, %v1902
        %v2223 = vpack.c.b16 %v1935, %v1903
        %v2224 = vpack.c.b16 %v1936, %v1904
        %v2225 = vpack.c.b16 %v1937, %v1905
        %v2226 = vpack.c.b16 %v1938, %v1906
        %v2227 = vpack.c.b16 %v1939, %v1907
        %v2228 = vpack.c.b16 %v1940, %v1908
        %v2229 = vpack.c.b16 %v1941, %v1909
        %v2230 = vpack.c.b16 %v1942, %v1910
        %v2231 = vpack.c.b16 %v1975, %v1943
        %v2232 = vpack.c.b16 %v1976, %v1944
        %v2233 = vpack.c.b16 %v1977, %v1945
        %v2234 = vpack.c.b16 %v1978, %v1946
        %v2235 = vpack.c.b16 %v1979, %v1947
        %v2236 = vpack.c.b16 %v1980, %v1948
        %v2237 = vpack.c.b16 %v1981, %v1949
        %v2238 = vpack.c.b16 %v1982, %v1950
        %v2239 = vpack.c.b16 %v1983, %v1951
        %v2240 = vpack.c.b16 %v1984, %v1952
        %v2241 = vpack.c.b16 %v1985, %v1953
        %v2242 = vpack.c.b16 %v1986, %v1954
        %v2243 = vpack.c.b16 %v1987, %v1955
        %v2244 = vpack.c.b16 %v1988, %v1956
        %v2245 = vpack.c.b16 %v1989, %v1957
        %v2246 = vpack.c.b16 %v1990, %v1958
        %v2247 = vpack.c.b16 %v1991, %v1959
        %v2248 = vpack.c.b16 %v1992, %v1960
        %v2249 = vpack.c.b16 %v1993, %v1961
        %v2250 = vpack.c.b16 %v1994, %v1962
        %v2251 = vpack.c.b16 %v1995, %v1963
        %v2252 = vpack.c.b16 %v1996, %v1964
        %v2253 = vpack.c.b16 %v1997, %v1965
        %v2254 = vpack.c.b16 %v1998, %v1966
        %v2255 = vpack.c.b16 %v1999, %v1967
        %v2256 = vpack.c.b16 %v2000, %v1968
        %v2257 = vpack.c.b16 %v2001, %v1969
        %v2258 = vpack.c.b16 %v2002, %v1970
        %v2259 = vpack.c.b16 %v2003, %v1971
        %v2260 = vpack.c.b16 %v2004, %v1972
        %v2261 = vpack.c.b16 %v2005, %v1973
        %v2262 = vpack.c.b16 %v2006, %v1974
        %2519 = vmatpush.bf16.msra.mxu0 %v2231
        %2520 = vmatpush.bf16.msra.mxu0 %v2199
        %2521 = vmatpush.bf16.msra.mxu0 %v2167
        %2522 = vmatpush.bf16.msra.mxu0 %v2135
        %2523 = vmatpush.bf16.msra.mxu0 %v2103
        %2524 = vmatpush.bf16.msra.mxu0 %v2071
        %2525 = vmatpush.bf16.msra.mxu0 %v2039
        %2526 = vmatpush.bf16.msra.mxu0 %v2007
        %2527 = vmatmul.bf16.gmra.mxu0 %v982
        %v2528 = vpop.f32.mrf.mxu0
        %v2529 = vadd.f32 0.0, %v2528
        %v2530 = vpop.f32.mrf.mxu0
        %2531 = vdwg.mxu0
        %2532 = vmatpush.bf16.msra.mxu0 %v2232
        %2533 = vmatpush.bf16.msra.mxu0 %v2200
        %2534 = vmatpush.bf16.msra.mxu0 %v2168
        %2535 = vmatpush.bf16.msra.mxu0 %v2136
        %2536 = vmatpush.bf16.msra.mxu0 %v2104
        %2537 = vmatpush.bf16.msra.mxu0 %v2072
        %2538 = vmatpush.bf16.msra.mxu0 %v2040
        %2539 = vmatpush.bf16.msra.mxu0 %v2008
        %2540 = vmatmul.bf16.gmra.mxu0 %v982
        %v2541 = vpop.f32.mrf.mxu0
        %v2542 = vadd.f32 0.0, %v2541
        %v2543 = vpop.f32.mrf.mxu0
        %2544 = vdwg.mxu0
        %2545 = vmatpush.bf16.msra.mxu0 %v2233
        %2546 = vmatpush.bf16.msra.mxu0 %v2201
        %2547 = vmatpush.bf16.msra.mxu0 %v2169
        %2548 = vmatpush.bf16.msra.mxu0 %v2137
        %2549 = vmatpush.bf16.msra.mxu0 %v2105
        %2550 = vmatpush.bf16.msra.mxu0 %v2073
        %2551 = vmatpush.bf16.msra.mxu0 %v2041
        %2552 = vmatpush.bf16.msra.mxu0 %v2009
        %2553 = vmatmul.bf16.gmra.mxu0 %v982
        %v2554 = vpop.f32.mrf.mxu0
        %v2555 = vadd.f32 0.0, %v2554
        %v2556 = vpop.f32.mrf.mxu0
        %2557 = vdwg.mxu0
        %2558 = vmatpush.bf16.msra.mxu0 %v2234
        %2559 = vmatpush.bf16.msra.mxu0 %v2202
        %2560 = vmatpush.bf16.msra.mxu0 %v2170
        %2561 = vmatpush.bf16.msra.mxu0 %v2138
        %2562 = vmatpush.bf16.msra.mxu0 %v2106
        %2563 = vmatpush.bf16.msra.mxu0 %v2074
        %2564 = vmatpush.bf16.msra.mxu0 %v2042
        %2565 = vmatpush.bf16.msra.mxu0 %v2010
        %2566 = vmatmul.bf16.gmra.mxu0 %v982
        %v2567 = vpop.f32.mrf.mxu0
        %v2568 = vadd.f32 0.0, %v2567
        %v2569 = vpop.f32.mrf.mxu0
        %2570 = vdwg.mxu0
        %2571 = vmatpush.bf16.msra.mxu0 %v2235
        %2572 = vmatpush.bf16.msra.mxu0 %v2203
        %2573 = vmatpush.bf16.msra.mxu0 %v2171
        %2574 = vmatpush.bf16.msra.mxu0 %v2139
        %2575 = vmatpush.bf16.msra.mxu0 %v2107
        %2576 = vmatpush.bf16.msra.mxu0 %v2075
        %2577 = vmatpush.bf16.msra.mxu0 %v2043
        %2578 = vmatpush.bf16.msra.mxu0 %v2011
        %2579 = vmatmul.bf16.gmra.mxu0 %v982
        %v2580 = vpop.f32.mrf.mxu0
        %v2581 = vadd.f32 0.0, %v2580
        %v2582 = vpop.f32.mrf.mxu0
        %2583 = vdwg.mxu0
        %2584 = vmatpush.bf16.msra.mxu0 %v2236
        %2585 = vmatpush.bf16.msra.mxu0 %v2204
        %2586 = vmatpush.bf16.msra.mxu0 %v2172
        %2587 = vmatpush.bf16.msra.mxu0 %v2140
        %2588 = vmatpush.bf16.msra.mxu0 %v2108
        %2589 = vmatpush.bf16.msra.mxu0 %v2076
        %2590 = vmatpush.bf16.msra.mxu0 %v2044
        %2591 = vmatpush.bf16.msra.mxu0 %v2012
        %2592 = vmatmul.bf16.gmra.mxu0 %v982
        %v2593 = vpop.f32.mrf.mxu0
        %v2594 = vadd.f32 0.0, %v2593
        %v2595 = vpop.f32.mrf.mxu0
        %2596 = vdwg.mxu0
        %2597 = vmatpush.bf16.msra.mxu0 %v2237
        %2598 = vmatpush.bf16.msra.mxu0 %v2205
        %2599 = vmatpush.bf16.msra.mxu0 %v2173
        %2600 = vmatpush.bf16.msra.mxu0 %v2141
        %2601 = vmatpush.bf16.msra.mxu0 %v2109
        %2602 = vmatpush.bf16.msra.mxu0 %v2077
        %2603 = vmatpush.bf16.msra.mxu0 %v2045
        %2604 = vmatpush.bf16.msra.mxu0 %v2013
        %2605 = vmatmul.bf16.gmra.mxu0 %v982
        %v2606 = vpop.f32.mrf.mxu0
        %v2607 = vadd.f32 0.0, %v2606
        %v2608 = vpop.f32.mrf.mxu0
        %2609 = vdwg.mxu0
        %2610 = vmatpush.bf16.msra.mxu0 %v2238
        %2611 = vmatpush.bf16.msra.mxu0 %v2206
        %2612 = vmatpush.bf16.msra.mxu0 %v2174
        %2613 = vmatpush.bf16.msra.mxu0 %v2142
        %2614 = vmatpush.bf16.msra.mxu0 %v2110
        %2615 = vmatpush.bf16.msra.mxu0 %v2078
        %2616 = vmatpush.bf16.msra.mxu0 %v2046
        %2617 = vmatpush.bf16.msra.mxu0 %v2014
        %2618 = vmatmul.bf16.gmra.mxu0 %v982
        %v2619 = vpop.f32.mrf.mxu0
        %v2620 = vadd.f32 0.0, %v2619
        %v2621 = vpop.f32.mrf.mxu0
        %2622 = vdwg.mxu0
        %2623 = vmatpush.bf16.msra.mxu0 %v2239
        %2624 = vmatpush.bf16.msra.mxu0 %v2207
        %2625 = vmatpush.bf16.msra.mxu0 %v2175
        %2626 = vmatpush.bf16.msra.mxu0 %v2143
        %2627 = vmatpush.bf16.msra.mxu0 %v2111
        %2628 = vmatpush.bf16.msra.mxu0 %v2079
        %2629 = vmatpush.bf16.msra.mxu0 %v2047
        %2630 = vmatpush.bf16.msra.mxu0 %v2015
        %2631 = vmatmul.bf16.gmra.mxu0 %v982
        %v2632 = vpop.f32.mrf.mxu0
        %v2633 = vadd.f32 0.0, %v2632
        %v2634 = vpop.f32.mrf.mxu0
        %2635 = vdwg.mxu0
        %2636 = vmatpush.bf16.msra.mxu0 %v2240
        %2637 = vmatpush.bf16.msra.mxu0 %v2208
        %2638 = vmatpush.bf16.msra.mxu0 %v2176
        %2639 = vmatpush.bf16.msra.mxu0 %v2144
        %2640 = vmatpush.bf16.msra.mxu0 %v2112
        %2641 = vmatpush.bf16.msra.mxu0 %v2080
        %2642 = vmatpush.bf16.msra.mxu0 %v2048
        %2643 = vmatpush.bf16.msra.mxu0 %v2016
        %2644 = vmatmul.bf16.gmra.mxu0 %v982
        %v2645 = vpop.f32.mrf.mxu0
        %v2646 = vadd.f32 0.0, %v2645
        %v2647 = vpop.f32.mrf.mxu0
        %2648 = vdwg.mxu0
        %2649 = vmatpush.bf16.msra.mxu0 %v2241
        %2650 = vmatpush.bf16.msra.mxu0 %v2209
        %2651 = vmatpush.bf16.msra.mxu0 %v2177
        %2652 = vmatpush.bf16.msra.mxu0 %v2145
        %2653 = vmatpush.bf16.msra.mxu0 %v2113
        %2654 = vmatpush.bf16.msra.mxu0 %v2081
        %2655 = vmatpush.bf16.msra.mxu0 %v2049
        %2656 = vmatpush.bf16.msra.mxu0 %v2017
        %2657 = vmatmul.bf16.gmra.mxu0 %v982
        %v2658 = vpop.f32.mrf.mxu0
        %v2659 = vadd.f32 0.0, %v2658
        %v2660 = vpop.f32.mrf.mxu0
        %2661 = vdwg.mxu0
        %2662 = vmatpush.bf16.msra.mxu0 %v2242
        %2663 = vmatpush.bf16.msra.mxu0 %v2210
        %2664 = vmatpush.bf16.msra.mxu0 %v2178
        %2665 = vmatpush.bf16.msra.mxu0 %v2146
        %2666 = vmatpush.bf16.msra.mxu0 %v2114
        %2667 = vmatpush.bf16.msra.mxu0 %v2082
        %2668 = vmatpush.bf16.msra.mxu0 %v2050
        %2669 = vmatpush.bf16.msra.mxu0 %v2018
        %2670 = vmatmul.bf16.gmra.mxu0 %v982
        %v2671 = vpop.f32.mrf.mxu0
        %v2672 = vadd.f32 0.0, %v2671
        %v2673 = vpop.f32.mrf.mxu0
        %2674 = vdwg.mxu0
        %2675 = vmatpush.bf16.msra.mxu0 %v2243
        %2676 = vmatpush.bf16.msra.mxu0 %v2211
        %2677 = vmatpush.bf16.msra.mxu0 %v2179
        %2678 = vmatpush.bf16.msra.mxu0 %v2147
        %2679 = vmatpush.bf16.msra.mxu0 %v2115
        %2680 = vmatpush.bf16.msra.mxu0 %v2083
        %2681 = vmatpush.bf16.msra.mxu0 %v2051
        %2682 = vmatpush.bf16.msra.mxu0 %v2019
        %2683 = vmatmul.bf16.gmra.mxu0 %v982
        %v2684 = vpop.f32.mrf.mxu0
        %v2685 = vadd.f32 0.0, %v2684
        %v2686 = vpop.f32.mrf.mxu0
        %2687 = vdwg.mxu0
        %2688 = vmatpush.bf16.msra.mxu0 %v2244
        %2689 = vmatpush.bf16.msra.mxu0 %v2212
        %2690 = vmatpush.bf16.msra.mxu0 %v2180
        %2691 = vmatpush.bf16.msra.mxu0 %v2148
        %2692 = vmatpush.bf16.msra.mxu0 %v2116
        %2693 = vmatpush.bf16.msra.mxu0 %v2084
        %2694 = vmatpush.bf16.msra.mxu0 %v2052
        %2695 = vmatpush.bf16.msra.mxu0 %v2020
        %2696 = vmatmul.bf16.gmra.mxu0 %v982
        %v2697 = vpop.f32.mrf.mxu0
        %v2698 = vadd.f32 0.0, %v2697
        %v2699 = vpop.f32.mrf.mxu0
        %2700 = vdwg.mxu0
        %2701 = vmatpush.bf16.msra.mxu0 %v2245
        %2702 = vmatpush.bf16.msra.mxu0 %v2213
        %2703 = vmatpush.bf16.msra.mxu0 %v2181
        %2704 = vmatpush.bf16.msra.mxu0 %v2149
        %2705 = vmatpush.bf16.msra.mxu0 %v2117
        %2706 = vmatpush.bf16.msra.mxu0 %v2085
        %2707 = vmatpush.bf16.msra.mxu0 %v2053
        %2708 = vmatpush.bf16.msra.mxu0 %v2021
        %2709 = vmatmul.bf16.gmra.mxu0 %v982
        %v2710 = vpop.f32.mrf.mxu0
        %v2711 = vadd.f32 0.0, %v2710
        %v2712 = vpop.f32.mrf.mxu0
        %2713 = vdwg.mxu0
        %2714 = vmatpush.bf16.msra.mxu0 %v2246
        %2715 = vmatpush.bf16.msra.mxu0 %v2214
        %2716 = vmatpush.bf16.msra.mxu0 %v2182
        %2717 = vmatpush.bf16.msra.mxu0 %v2150
        %2718 = vmatpush.bf16.msra.mxu0 %v2118
        %2719 = vmatpush.bf16.msra.mxu0 %v2086
        %2720 = vmatpush.bf16.msra.mxu0 %v2054
        %2721 = vmatpush.bf16.msra.mxu0 %v2022
        %2722 = vmatmul.bf16.gmra.mxu0 %v982
        %v2723 = vpop.f32.mrf.mxu0
        %v2724 = vadd.f32 0.0, %v2723
        %v2725 = vpop.f32.mrf.mxu0
        %2726 = vdwg.mxu0
        %2727 = vmatpush.bf16.msra.mxu0 %v2247
        %2728 = vmatpush.bf16.msra.mxu0 %v2215
        %2729 = vmatpush.bf16.msra.mxu0 %v2183
        %2730 = vmatpush.bf16.msra.mxu0 %v2151
        %2731 = vmatpush.bf16.msra.mxu0 %v2119
        %2732 = vmatpush.bf16.msra.mxu0 %v2087
        %2733 = vmatpush.bf16.msra.mxu0 %v2055
        %2734 = vmatpush.bf16.msra.mxu0 %v2023
        %2735 = vmatmul.bf16.gmra.mxu0 %v982
        %v2736 = vpop.f32.mrf.mxu0
        %v2737 = vadd.f32 0.0, %v2736
        %v2738 = vpop.f32.mrf.mxu0
        %2739 = vdwg.mxu0
        %2740 = vmatpush.bf16.msra.mxu0 %v2248
        %2741 = vmatpush.bf16.msra.mxu0 %v2216
        %2742 = vmatpush.bf16.msra.mxu0 %v2184
        %2743 = vmatpush.bf16.msra.mxu0 %v2152
        %2744 = vmatpush.bf16.msra.mxu0 %v2120
        %2745 = vmatpush.bf16.msra.mxu0 %v2088
        %2746 = vmatpush.bf16.msra.mxu0 %v2056
        %2747 = vmatpush.bf16.msra.mxu0 %v2024
        %2748 = vmatmul.bf16.gmra.mxu0 %v982
        %v2749 = vpop.f32.mrf.mxu0
        %v2750 = vadd.f32 0.0, %v2749
        %v2751 = vpop.f32.mrf.mxu0
        %2752 = vdwg.mxu0
        %2753 = vmatpush.bf16.msra.mxu0 %v2249
        %2754 = vmatpush.bf16.msra.mxu0 %v2217
        %2755 = vmatpush.bf16.msra.mxu0 %v2185
        %2756 = vmatpush.bf16.msra.mxu0 %v2153
        %2757 = vmatpush.bf16.msra.mxu0 %v2121
        %2758 = vmatpush.bf16.msra.mxu0 %v2089
        %2759 = vmatpush.bf16.msra.mxu0 %v2057
        %2760 = vmatpush.bf16.msra.mxu0 %v2025
        %2761 = vmatmul.bf16.gmra.mxu0 %v982
        %v2762 = vpop.f32.mrf.mxu0
        %v2763 = vadd.f32 0.0, %v2762
        %v2764 = vpop.f32.mrf.mxu0
        %2765 = vdwg.mxu0
        %2766 = vmatpush.bf16.msra.mxu0 %v2250
        %2767 = vmatpush.bf16.msra.mxu0 %v2218
        %2768 = vmatpush.bf16.msra.mxu0 %v2186
        %2769 = vmatpush.bf16.msra.mxu0 %v2154
        %2770 = vmatpush.bf16.msra.mxu0 %v2122
        %2771 = vmatpush.bf16.msra.mxu0 %v2090
        %2772 = vmatpush.bf16.msra.mxu0 %v2058
        %2773 = vmatpush.bf16.msra.mxu0 %v2026
        %2774 = vmatmul.bf16.gmra.mxu0 %v982
        %v2775 = vpop.f32.mrf.mxu0
        %v2776 = vadd.f32 0.0, %v2775
        %v2777 = vpop.f32.mrf.mxu0
        %2778 = vdwg.mxu0
        %2779 = vmatpush.bf16.msra.mxu0 %v2251
        %2780 = vmatpush.bf16.msra.mxu0 %v2219
        %2781 = vmatpush.bf16.msra.mxu0 %v2187
        %2782 = vmatpush.bf16.msra.mxu0 %v2155
        %2783 = vmatpush.bf16.msra.mxu0 %v2123
        %2784 = vmatpush.bf16.msra.mxu0 %v2091
        %2785 = vmatpush.bf16.msra.mxu0 %v2059
        %2786 = vmatpush.bf16.msra.mxu0 %v2027
        %2787 = vmatmul.bf16.gmra.mxu0 %v982
        %v2788 = vpop.f32.mrf.mxu0
        %v2789 = vadd.f32 0.0, %v2788
        %v2790 = vpop.f32.mrf.mxu0
        %2791 = vdwg.mxu0
        %2792 = vmatpush.bf16.msra.mxu0 %v2252
        %2793 = vmatpush.bf16.msra.mxu0 %v2220
        %2794 = vmatpush.bf16.msra.mxu0 %v2188
        %2795 = vmatpush.bf16.msra.mxu0 %v2156
        %2796 = vmatpush.bf16.msra.mxu0 %v2124
        %2797 = vmatpush.bf16.msra.mxu0 %v2092
        %2798 = vmatpush.bf16.msra.mxu0 %v2060
        %2799 = vmatpush.bf16.msra.mxu0 %v2028
        %2800 = vmatmul.bf16.gmra.mxu0 %v982
        %v2801 = vpop.f32.mrf.mxu0
        %v2802 = vadd.f32 0.0, %v2801
        %v2803 = vpop.f32.mrf.mxu0
        %2804 = vdwg.mxu0
        %2805 = vmatpush.bf16.msra.mxu0 %v2253
        %2806 = vmatpush.bf16.msra.mxu0 %v2221
        %2807 = vmatpush.bf16.msra.mxu0 %v2189
        %2808 = vmatpush.bf16.msra.mxu0 %v2157
        %2809 = vmatpush.bf16.msra.mxu0 %v2125
        %2810 = vmatpush.bf16.msra.mxu0 %v2093
        %2811 = vmatpush.bf16.msra.mxu0 %v2061
        %2812 = vmatpush.bf16.msra.mxu0 %v2029
        %2813 = vmatmul.bf16.gmra.mxu0 %v982
        %v2814 = vpop.f32.mrf.mxu0
        %v2815 = vadd.f32 0.0, %v2814
        %v2816 = vpop.f32.mrf.mxu0
        %2817 = vdwg.mxu0
        %2818 = vmatpush.bf16.msra.mxu0 %v2254
        %2819 = vmatpush.bf16.msra.mxu0 %v2222
        %2820 = vmatpush.bf16.msra.mxu0 %v2190
        %2821 = vmatpush.bf16.msra.mxu0 %v2158
        %2822 = vmatpush.bf16.msra.mxu0 %v2126
        %2823 = vmatpush.bf16.msra.mxu0 %v2094
        %2824 = vmatpush.bf16.msra.mxu0 %v2062
        %2825 = vmatpush.bf16.msra.mxu0 %v2030
        %2826 = vmatmul.bf16.gmra.mxu0 %v982
        %v2827 = vpop.f32.mrf.mxu0
        %v2828 = vadd.f32 0.0, %v2827
        %v2829 = vpop.f32.mrf.mxu0
        %2830 = vdwg.mxu0
        %2831 = vmatpush.bf16.msra.mxu0 %v2255
        %2832 = vmatpush.bf16.msra.mxu0 %v2223
        %2833 = vmatpush.bf16.msra.mxu0 %v2191
        %2834 = vmatpush.bf16.msra.mxu0 %v2159
        %2835 = vmatpush.bf16.msra.mxu0 %v2127
        %2836 = vmatpush.bf16.msra.mxu0 %v2095
        %2837 = vmatpush.bf16.msra.mxu0 %v2063
        %2838 = vmatpush.bf16.msra.mxu0 %v2031
        %2839 = vmatmul.bf16.gmra.mxu0 %v982
        %v2840 = vpop.f32.mrf.mxu0
        %v2841 = vadd.f32 0.0, %v2840
        %v2842 = vpop.f32.mrf.mxu0
        %2843 = vdwg.mxu0
        %2844 = vmatpush.bf16.msra.mxu0 %v2256
        %2845 = vmatpush.bf16.msra.mxu0 %v2224
        %2846 = vmatpush.bf16.msra.mxu0 %v2192
        %2847 = vmatpush.bf16.msra.mxu0 %v2160
        %2848 = vmatpush.bf16.msra.mxu0 %v2128
        %2849 = vmatpush.bf16.msra.mxu0 %v2096
        %2850 = vmatpush.bf16.msra.mxu0 %v2064
        %2851 = vmatpush.bf16.msra.mxu0 %v2032
        %2852 = vmatmul.bf16.gmra.mxu0 %v982
        %v2853 = vpop.f32.mrf.mxu0
        %v2854 = vadd.f32 0.0, %v2853
        %v2855 = vpop.f32.mrf.mxu0
        %2856 = vdwg.mxu0
        %2857 = vmatpush.bf16.msra.mxu0 %v2257
        %2858 = vmatpush.bf16.msra.mxu0 %v2225
        %2859 = vmatpush.bf16.msra.mxu0 %v2193
        %2860 = vmatpush.bf16.msra.mxu0 %v2161
        %2861 = vmatpush.bf16.msra.mxu0 %v2129
        %2862 = vmatpush.bf16.msra.mxu0 %v2097
        %2863 = vmatpush.bf16.msra.mxu0 %v2065
        %2864 = vmatpush.bf16.msra.mxu0 %v2033
        %2865 = vmatmul.bf16.gmra.mxu0 %v982
        %v2866 = vpop.f32.mrf.mxu0
        %v2867 = vadd.f32 0.0, %v2866
        %v2868 = vpop.f32.mrf.mxu0
        %2869 = vdwg.mxu0
        %2870 = vmatpush.bf16.msra.mxu0 %v2258
        %2871 = vmatpush.bf16.msra.mxu0 %v2226
        %2872 = vmatpush.bf16.msra.mxu0 %v2194
        %2873 = vmatpush.bf16.msra.mxu0 %v2162
        %2874 = vmatpush.bf16.msra.mxu0 %v2130
        %2875 = vmatpush.bf16.msra.mxu0 %v2098
        %2876 = vmatpush.bf16.msra.mxu0 %v2066
        %2877 = vmatpush.bf16.msra.mxu0 %v2034
        %2878 = vmatmul.bf16.gmra.mxu0 %v982
        %v2879 = vpop.f32.mrf.mxu0
        %v2880 = vadd.f32 0.0, %v2879
        %v2881 = vpop.f32.mrf.mxu0
        %2882 = vdwg.mxu0
        %2883 = vmatpush.bf16.msra.mxu0 %v2259
        %2884 = vmatpush.bf16.msra.mxu0 %v2227
        %2885 = vmatpush.bf16.msra.mxu0 %v2195
        %2886 = vmatpush.bf16.msra.mxu0 %v2163
        %2887 = vmatpush.bf16.msra.mxu0 %v2131
        %2888 = vmatpush.bf16.msra.mxu0 %v2099
        %2889 = vmatpush.bf16.msra.mxu0 %v2067
        %2890 = vmatpush.bf16.msra.mxu0 %v2035
        %2891 = vmatmul.bf16.gmra.mxu0 %v982
        %v2892 = vpop.f32.mrf.mxu0
        %v2893 = vadd.f32 0.0, %v2892
        %v2894 = vpop.f32.mrf.mxu0
        %2895 = vdwg.mxu0
        %2896 = vmatpush.bf16.msra.mxu0 %v2260
        %2897 = vmatpush.bf16.msra.mxu0 %v2228
        %2898 = vmatpush.bf16.msra.mxu0 %v2196
        %2899 = vmatpush.bf16.msra.mxu0 %v2164
        %2900 = vmatpush.bf16.msra.mxu0 %v2132
        %2901 = vmatpush.bf16.msra.mxu0 %v2100
        %2902 = vmatpush.bf16.msra.mxu0 %v2068
        %2903 = vmatpush.bf16.msra.mxu0 %v2036
        %2904 = vmatmul.bf16.gmra.mxu0 %v982
        %v2905 = vpop.f32.mrf.mxu0
        %v2906 = vadd.f32 0.0, %v2905
        %v2907 = vpop.f32.mrf.mxu0
        %2908 = vdwg.mxu0
        %2909 = vmatpush.bf16.msra.mxu0 %v2261
        %2910 = vmatpush.bf16.msra.mxu0 %v2229
        %2911 = vmatpush.bf16.msra.mxu0 %v2197
        %2912 = vmatpush.bf16.msra.mxu0 %v2165
        %2913 = vmatpush.bf16.msra.mxu0 %v2133
        %2914 = vmatpush.bf16.msra.mxu0 %v2101
        %2915 = vmatpush.bf16.msra.mxu0 %v2069
        %2916 = vmatpush.bf16.msra.mxu0 %v2037
        %2917 = vmatmul.bf16.gmra.mxu0 %v982
        %v2918 = vpop.f32.mrf.mxu0
        %v2919 = vadd.f32 0.0, %v2918
        %v2920 = vpop.f32.mrf.mxu0
        %2921 = vdwg.mxu0
        %2922 = vmatpush.bf16.msra.mxu0 %v2262
        %2923 = vmatpush.bf16.msra.mxu0 %v2230
        %2924 = vmatpush.bf16.msra.mxu0 %v2198
        %2925 = vmatpush.bf16.msra.mxu0 %v2166
        %2926 = vmatpush.bf16.msra.mxu0 %v2134
        %2927 = vmatpush.bf16.msra.mxu0 %v2102
        %2928 = vmatpush.bf16.msra.mxu0 %v2070
        %2929 = vmatpush.bf16.msra.mxu0 %v2038
        %2930 = vmatmul.bf16.gmra.mxu0 %v982
        %v2931 = vpop.f32.mrf.mxu0
        %v2932 = vadd.f32 0.0, %v2931
        %v2933 = vpop.f32.mrf.mxu0
        %2934 = vdwg.mxu0
        %2935 = vst [vmem:[%s510] sm:$0xff] %v2529
        %2936 = vst [vmem:[%s510 + $0x8] sm:$0xff] %v2542
        %2937 = vst [vmem:[%s510 + $0x10] sm:$0xff] %v2555
        %2938 = vst [vmem:[%s510 + $0x18] sm:$0xff] %v2568
        %2939 = vst [vmem:[%s510 + $0x20] sm:$0xff] %v2581
        %2940 = vst [vmem:[%s510 + $0x28] sm:$0xff] %v2594
        %2941 = vst [vmem:[%s510 + $0x30] sm:$0xff] %v2607
        %2942 = vst [vmem:[%s510 + $0x38] sm:$0xff] %v2620
        %2943 = vst [vmem:[%s510 + $0x40] sm:$0xff] %v2633
        %2944 = vst [vmem:[%s510 + $0x48] sm:$0xff] %v2646
        %2945 = vst [vmem:[%s510 + $0x50] sm:$0xff] %v2659
        %2946 = vst [vmem:[%s510 + $0x58] sm:$0xff] %v2672
        %2947 = vst [vmem:[%s510 + $0x60] sm:$0xff] %v2685
        %2948 = vst [vmem:[%s510 + $0x68] sm:$0xff] %v2698
        %2949 = vst [vmem:[%s510 + $0x70] sm:$0xff] %v2711
        %2950 = vst [vmem:[%s510 + $0x78] sm:$0xff] %v2724
        %2951 = vst [vmem:[%s510 + $0x80] sm:$0xff] %v2737
        %2952 = vst [vmem:[%s510 + $0x88] sm:$0xff] %v2750
        %2953 = vst [vmem:[%s510 + $0x90] sm:$0xff] %v2763
        %2954 = vst [vmem:[%s510 + $0x98] sm:$0xff] %v2776
        %2955 = vst [vmem:[%s510 + $0xa0] sm:$0xff] %v2789
        %2956 = vst [vmem:[%s510 + $0xa8] sm:$0xff] %v2802
        %2957 = vst [vmem:[%s510 + $0xb0] sm:$0xff] %v2815
        %2958 = vst [vmem:[%s510 + $0xb8] sm:$0xff] %v2828
        %2959 = vst [vmem:[%s510 + $0xc0] sm:$0xff] %v2841
        %2960 = vst [vmem:[%s510 + $0xc8] sm:$0xff] %v2854
        %2961 = vst [vmem:[%s510 + $0xd0] sm:$0xff] %v2867
        %2962 = vst [vmem:[%s510 + $0xd8] sm:$0xff] %v2880
        %2963 = vst [vmem:[%s510 + $0xe0] sm:$0xff] %v2893
        %2964 = vst [vmem:[%s510 + $0xe8] sm:$0xff] %v2906
        %2965 = vst [vmem:[%s510 + $0xf0] sm:$0xff] %v2919
        %2966 = vst [vmem:[%s510 + $0xf8] sm:$0xff] %v2932
        %s2967 = sand.u32 %s279, 1
        %s2968 = scalar_lea.sflag [#allocation22], %s2967
        %s2969 = sand.u32 %s279, 1
        %s2970 = smul.addr %s2969, 256
        %s2971 = scalar_lea.vmem [#allocation21], %s2970
        // Predicated region
        $region89: #{tpu_custom_call.1} parent=51 // pred_check
          %p2972 = pneg %p221
        $region90: #{tpu_custom_call.1} parent=51 // pred_check_branch
          %2974 = sbr.rel (%p2972) target = $region92
        $region91: #{tpu_custom_call.1} parent=51 // pred_region
          %2976 = vsyncadd [#allocation5], 0
          %s2978 = sshll.u32 [#allocation17], 4
          %s2979 = int_to_ptr.vmem [resolvable:$true] %s2978
          %s2980 = sshll.u32 %s8, 4
          %s2981 = int_to_ptr.hbm [resolvable:$true] %s2980
          %2983 = dma.vmem_to_hbm [thread:$0]  %s2979, 128, %s2981, [#allocation5]
        $region92: #{tpu_custom_call.1} parent=51 // pred_fallthru
          _
        // Predicated region
        $region93: #{tpu_custom_call.1} parent=51 // pred_check
          %p2984 = pneg %p242
        $region94: #{tpu_custom_call.1} parent=51 // pred_check_branch
          %2986 = sbr.rel (%p2984) target = $region96
        $region95: #{tpu_custom_call.1} parent=51 // pred_region
          %2988 = vsyncadd [#allocation19], 0
          %s2990 = sshll.u32 [#allocation18], 4
          %s2991 = int_to_ptr.vmem [resolvable:$true] %s2990
          %s2992 = sshll.u32 %s9, 4
          %s2993 = int_to_ptr.hbm [resolvable:$true] %s2992
          %2995 = dma.vmem_to_hbm [thread:$0]  %s2991, 128, %s2993, [#allocation19]
        $region96: #{tpu_custom_call.1} parent=51 // pred_fallthru
          _
        // Predicated region
        $region97: #{tpu_custom_call.1} parent=51 // pred_check
          %p2996 = pneg %p263
        $region98: #{tpu_custom_call.1} parent=51 // pred_check_branch
          %2998 = sbr.rel (%p2996) target = $region100
        $region99: #{tpu_custom_call.1} parent=51 // pred_region
          %3000 = vsyncadd [#allocation19], 0
          %s3002 = sshll.u32 [#allocation20], 4
          %s3003 = int_to_ptr.vmem [resolvable:$true] %s3002
          %s3004 = sshll.u32 %s10, 4
          %s3005 = int_to_ptr.hbm [resolvable:$true] %s3004
          %3007 = dma.vmem_to_hbm [thread:$0]  %s3003, 128, %s3005, [#allocation19]
        $region100: #{tpu_custom_call.1} parent=51 // pred_fallthru
          _
        // Predicated region
        $region101: #{tpu_custom_call.1} parent=51 // pred_check
          %p3008 = pneg %p289
        $region102: #{tpu_custom_call.1} parent=51 // pred_check_branch
          %3010 = sbr.rel (%p3008) target = $region104
        $region103: #{tpu_custom_call.1} parent=51 // pred_region
          %s3011 = smul.u32 32, %s35
          %3013 = vsyncadd %s2968, 0
          %s3014 = smul.addr %s3011, 8
          %s3015 = scalar_lea.hbm %s11, %s3014
          %s3017 = sshll.u32 %s2971, 4
          %s3018 = int_to_ptr.vmem [resolvable:$true] %s3017
          %s3019 = sshll.u32 %s3015, 4
          %s3020 = int_to_ptr.hbm [resolvable:$true] %s3019
          %3022 = dma.vmem_to_hbm [thread:$0]  %s3018, 4096, %s3020, %s2968
        $region104: #{tpu_custom_call.1} parent=51 // pred_fallthru
          _
        // Predicated region
        $region105: #{tpu_custom_call.1} parent=51 // pred_check
          %p3023 = pneg %p221
        $region106: #{tpu_custom_call.1} parent=51 // pred_check_branch
          %3025 = sbr.rel (%p3023) target = $region108
        $region107: #{tpu_custom_call.1} parent=51 // pred_region
          %3027 = dma.done [#allocation5], 128
        $region108: #{tpu_custom_call.1} parent=51 // pred_fallthru
          _
        // Predicated region
        $region109: #{tpu_custom_call.1} parent=51 // pred_check
          %p3028 = pneg %p242
        $region110: #{tpu_custom_call.1} parent=51 // pred_check_branch
          %3030 = sbr.rel (%p3028) target = $region112
        $region111: #{tpu_custom_call.1} parent=51 // pred_region
          %3032 = dma.done [#allocation19], 128
        $region112: #{tpu_custom_call.1} parent=51 // pred_fallthru
          _
        // Predicated region
        $region113: #{tpu_custom_call.1} parent=51 // pred_check
          %p3033 = pneg %p263
        $region114: #{tpu_custom_call.1} parent=51 // pred_check_branch
          %3035 = sbr.rel (%p3033) target = $region116
        $region115: #{tpu_custom_call.1} parent=51 // pred_region
          %3037 = dma.done [#allocation19], 128
        $region116: #{tpu_custom_call.1} parent=51 // pred_fallthru
          _
      $region52: #{tpu_custom_call.1} parent=5 // pred_fallthru
        _
      %p3038 = scmp.le.s32.totalorder 2, %s30
      // Predicated region
      $region117: #{tpu_custom_call.1} parent=5 // pred_check
        %p3039 = pneg %p3038
      $region118: #{tpu_custom_call.1} parent=5 // pred_check_branch
        %3041 = sbr.rel (%p3039) target = $region120
      $region119: #{tpu_custom_call.1} parent=5 // pred_region
        %s3042 = ssub.s32 %s30, 2
        // Predicated region
        $region121: #{tpu_custom_call.1} parent=119 // pred_check
          %p3043 = pneg %p295
        $region122: #{tpu_custom_call.1} parent=119 // pred_check_branch
          %3045 = sbr.rel (%p3043) target = $region124
        $region123: #{tpu_custom_call.1} parent=119 // pred_region
          %s3046 = sand.u32 %s280, 1
          %s3047 = scalar_lea.sflag [#allocation22], %s3046
          %s3048 = sand.u32 %s280, 1
          %s3049 = smul.addr %s3048, 256
          %s3050 = scalar_lea.vmem [#allocation21], %s3049
          %3052 = dma.done %s3047, 4096
        $region124: #{tpu_custom_call.1} parent=119 // pred_fallthru
          _
      $region120: #{tpu_custom_call.1} parent=5 // pred_fallthru
        _
    $region6: #{tpu_custom_call.1} parent=1 // loop_footer
      %s34 = sadd.s32 1, %s30
    $region7: #{tpu_custom_call.1} parent=1 // loop_footer_branch
      %29 = sbr.rel target = $region3
    $region8: #{tpu_custom_call.1} parent=1 // loop_exit
      _
    %3053 = vsyncpa [#allocation4], 1
    %s3054 = scalar_lea.sflag [#allocation4], 1
    %3055 = vsyncpa %s3054, 1
    %3056 = vsyncpa [#allocation7], 1
    %3057 = vsyncpa [#allocation10], 1
    %3058 = vsyncpa [#allocation13], 1
    %3059 = vsyncpa [#allocation16], 1
    %s3060 = scalar_lea.sflag [#allocation16], 1
    %3061 = vsyncpa %s3060, 1
    %3062 = vsyncpa [#allocation5], 1
    %s3063 = scalar_lea.sflag [#allocation5], 1
    %3064 = vsyncpa %s3063, 1
    %3065 = vsyncpa [#allocation19], 1
    %3066 = vsyncpa [#allocation22], 1
    %s3067 = scalar_lea.sflag [#allocation22], 1
    %3068 = vsyncpa %s3067, 1

</llo_original>
